<compile_context>
chip_gen: v7x
topology: tpu7x:2x2x1
jax: 0.10.0
libtpu: 0.0.40
codegen_flags: <defaults>
</compile_context>

<pallas_src>
import functools

import jax
import jax.numpy as jnp
from jax.experimental import pallas as pl
from jax.experimental.pallas import tpu as pltpu

NEG_SLOPE = 0.2   # nn.LeakyReLU(0.2)
BN_EPS = 1e-5     # nn.BatchNorm2d default eps


# ----------------------------- Pallas kernels -----------------------------

def _conv_act_kernel(p_ref, w_ref, b_ref, o_ref):
    # (Cout, K) @ (K, M_blk) -> lane-dense (Cout, M_blk), bias + LeakyReLU fused.
    y = jnp.dot(w_ref[...], p_ref[...], preferred_element_type=jnp.float32)
    y = y + b_ref[...]
    o_ref[...] = jnp.where(y >= 0, y, NEG_SLOPE * y)


def _conv_bn_act_kernel(p_ref, w_ref, b_ref, g_ref, bt_ref, o_ref):
    # conv (+bias) + BatchNorm2d (train mode, batch statistics) + LeakyReLU,
    # all fused in one kernel; full M lives in VMEM so the batch mean / var
    # are computed directly (two-pass, numerically safer than E[x^2]-E[x]^2).
    y = jnp.dot(w_ref[...], p_ref[...], preferred_element_type=jnp.float32)
    y = y + b_ref[...]                                     # (Cout, M)
    mean = jnp.mean(y, axis=1, keepdims=True)              # per-channel mean
    d = y - mean
    var = jnp.mean(d * d, axis=1, keepdims=True)           # biased batch var
    z = d * (g_ref[...] * jax.lax.rsqrt(var + BN_EPS)) + bt_ref[...]
    o_ref[...] = jnp.where(z >= 0, z, NEG_SLOPE * z)


def _conv_fc_kernel(p_ref, w_ref, b_ref, wfc_ref, bfc_ref, o_ref, *,
                    n_batch, hw):
    # C4 conv + LeakyReLU + Linear(10*8*8 -> 1), fused (no extra HBM trip for
    # the tiny 640-wide feature vector).  Columns of y are ordered (n, h, w);
    # wfc_ref is the FC weight reordered to (Cout, h*w) and tiled per batch.
    y = jnp.dot(w_ref[...], p_ref[...], preferred_element_type=jnp.float32)
    y = y + b_ref[...]                                     # (Cout, N*hw)
    z = jnp.where(y >= 0, y, NEG_SLOPE * y)
    prod = z * wfc_ref[...]
    col = jax.lax.broadcasted_iota(jnp.int32, prod.shape, 1)
    parts = []
    for nb in range(n_batch):                              # static, tiny batch
        sel = jnp.where((col >= nb * hw) & (col < (nb + 1) * hw), prod, 0.0)
        s = jnp.sum(sel, axis=1, keepdims=True)            # (Cout, 1)
        parts.append(jnp.sum(s, axis=0, keepdims=True))    # (1, 1)
    o_ref[...] = jnp.concatenate(parts, axis=0) + bfc_ref[...]


# ----------------------------- host-side glue ------------------------------

def im2col_t(a, k=4, stride=2, pad=1):
    """Channel-major transposed im2col.

    a: (Cin, N, H, W)  ->  (k*k*Cin, N*Ho*Wo) with row order (kh, kw, cin)
    and column order (n, ho, wo)."""
    c, n, h, w = a.shape
    ho = (h + 2 * pad - k) // stride + 1
    wo = (w + 2 * pad - k) // stride + 1
    ap = jnp.pad(a, ((0, 0), (0, 0), (pad, pad), (pad, pad)))
    taps = []
    for kh in range(k):
        for kw in range(k):
            sl = ap[:, :, kh:kh + stride * ho:stride, kw:kw + stride * wo:stride]
            taps.append(sl.reshape(c, n * ho * wo))
    return jnp.concatenate(taps, axis=0), n, ho, wo


def _weight_matrix(w):
    # PyTorch conv weight (Cout, Cin, KH, KW) -> (Cout, KH*KW*Cin), matching
    # the (kh, kw, cin) row order produced by im2col_t.
    cout, cin, k, _ = w.shape
    return jnp.transpose(w, (0, 2, 3, 1)).reshape(cout, k * k * cin)


# ----------------------------- layer wrappers ------------------------------

def conv_leaky(a, w, b):
    """Conv + bias + LeakyReLU.  a, result are channel-major (C, N, H, W)."""
    cout, cin, k, _ = w.shape
    p_t, n, ho, wo = im2col_t(a, k=k)
    kk = k * k * cin
    mo = n * ho * wo
    wm = _weight_matrix(w)
    # Split the lane-major M axis across grid steps (v7x megacore) when the
    # blocks stay 128-aligned; otherwise one step (full-M block).
    nb = 2 if (mo % 256 == 0 and mo >= 2048) else 1
    mb = mo // nb
    out = pl.pallas_call(
        _conv_act_kernel,
        out_shape=jax.ShapeDtypeStruct((cout, mo), jnp.float32),
        grid_spec=pltpu.PrefetchScalarGridSpec(
            num_scalar_prefetch=0,
            grid=(nb,),
            in_specs=[
                pl.BlockSpec((kk, mb), lambda i: (0, i)),
                pl.BlockSpec((cout, kk), lambda i: (0, 0)),
                pl.BlockSpec((cout, 1), lambda i: (0, 0)),
            ],
            out_specs=pl.BlockSpec((cout, mb), lambda i: (0, i)),
        ),
        compiler_params=pltpu.CompilerParams(
            dimension_semantics=("parallel",)),
    )(p_t, wm, b.reshape(cout, 1))
    return out.reshape(cout, n, ho, wo)


def conv_bn_leaky(a, w, b, gamma, beta):
    """Conv + bias + BatchNorm (batch stats) + LeakyReLU, one pallas_call."""
    cout, cin, k, _ = w.shape
    p_t, n, ho, wo = im2col_t(a, k=k)
    kk = k * k * cin
    mo = n * ho * wo
    wm = _weight_matrix(w)
    out = pl.pallas_call(
        _conv_bn_act_kernel,
        out_shape=jax.ShapeDtypeStruct((cout, mo), jnp.float32),
        grid_spec=pltpu.PrefetchScalarGridSpec(
            num_scalar_prefetch=0,
            grid=(1,),  # full M in one step: stats computed in-kernel
            in_specs=[
                pl.BlockSpec((kk, mo), lambda i: (0, 0)),
                pl.BlockSpec((cout, kk), lambda i: (0, 0)),
                pl.BlockSpec((cout, 1), lambda i: (0, 0)),
                pl.BlockSpec((cout, 1), lambda i: (0, 0)),
                pl.BlockSpec((cout, 1), lambda i: (0, 0)),
            ],
            out_specs=pl.BlockSpec((cout, mo), lambda i: (0, 0)),
        ),
        compiler_params=pltpu.CompilerParams(
            dimension_semantics=("arbitrary",)),
    )(p_t, wm, b.reshape(cout, 1), gamma.reshape(cout, 1), beta.reshape(cout, 1))
    return out.reshape(cout, n, ho, wo)


def conv_fc(a, w, b, wfc, bfc):
    """Final conv + LeakyReLU + Linear head fused; returns (N, 1)."""
    cout, cin, k, _ = w.shape
    p_t, n, ho, wo = im2col_t(a, k=k)
    kk = k * k * cin
    mo = n * ho * wo
    hw = ho * wo
    wm = _weight_matrix(w)
    # FC1 weight (1, Cout*Ho*Wo) is ordered (c, h, w) by torch's .view(N, -1);
    # reorder to (Cout, Ho*Wo) and tile along the (n, h, w) column axis.
    wfc2 = wfc.reshape(cout, hw)
    wfc_t = jnp.tile(wfc2, (1, n))                        # (Cout, N*hw)
    kernel = functools.partial(_conv_fc_kernel, n_batch=n, hw=hw)
    return pl.pallas_call(
        kernel,
        out_shape=jax.ShapeDtypeStruct((n, 1), jnp.float32),
        grid_spec=pltpu.PrefetchScalarGridSpec(
            num_scalar_prefetch=0,
            grid=(1,),
            in_specs=[
                pl.BlockSpec((kk, mo), lambda i: (0, 0)),
                pl.BlockSpec((cout, kk), lambda i: (0, 0)),
                pl.BlockSpec((cout, 1), lambda i: (0, 0)),
                pl.BlockSpec((cout, mo), lambda i: (0, 0)),
                pl.BlockSpec((1, 1), lambda i: (0, 0)),
            ],
            out_specs=pl.BlockSpec((n, 1), lambda i: (0, 0)),
        ),
        compiler_params=pltpu.CompilerParams(
            dimension_semantics=("arbitrary",)),
    )(p_t, wm, b.reshape(cout, 1), wfc_t, bfc.reshape(1, 1))


# ----------------------------- model_d forward -----------------------------

def model_d_forward(params, image_nchw):
    # B1, B4, dropout, ReLU, tanh are declared in __init__ but unused in forward.
    a = jnp.transpose(image_nchw, (1, 0, 2, 3))           # (C=1, N, H, W)
    a = conv_leaky(a, params["C1_w"], params["C1_b"])
    a = conv_bn_leaky(a, params["C2_w"], params["C2_b"],
                      params["B2_g"], params["B2_b"])
    a = conv_bn_leaky(a, params["C3_w"], params["C3_b"],
                      params["B3_g"], params["B3_b"])
    out = conv_fc(a, params["C4_w"], params["C4_b"],
                  params["FC1_w"], params["FC1_b"])        # (N, 1)
    return out


# ----------------------------- parameter init ------------------------------

def init_params(key, hidden):
    ks = jax.random.split(key, 10)

    def conv_w(k, cout, cin):
        fan_in = cin * 16
        return jax.random.normal(k, (cout, cin, 4, 4), jnp.float32) \
            * jnp.sqrt(2.0 / fan_in)                       # kaiming_normal_

    def conv_b(k, cout, cin):
        bound = 1.0 / jnp.sqrt(cin * 16.0)
        return jax.random.uniform(k, (cout,), jnp.float32, -bound, bound)

    h = hidden
    return {
        "C1_w": conv_w(ks[0], h, 1),         "C1_b": conv_b(ks[1], h, 1),
        "C2_w": conv_w(ks[2], 2 * h, h),     "C2_b": conv_b(ks[3], 2 * h, h),
        "C3_w": conv_w(ks[4], 4 * h, 2 * h), "C3_b": conv_b(ks[5], 4 * h, 2 * h),
        "C4_w": conv_w(ks[6], 10, 4 * h),    "C4_b": conv_b(ks[7], 10, 4 * h),
        "B2_g": jnp.ones((2 * h,), jnp.float32),
        "B2_b": jnp.zeros((2 * h,), jnp.float32),
        "B3_g": jnp.ones((4 * h,), jnp.float32),
        "B3_b": jnp.zeros((4 * h,), jnp.float32),
        "FC1_w": jax.random.normal(ks[8], (1, 640), jnp.float32)
                 * jnp.sqrt(2.0 / 640.0),
        "FC1_b": jax.random.uniform(ks[9], (1,), jnp.float32,
                                    -1.0 / jnp.sqrt(640.0), 1.0 / jnp.sqrt(640.0)),
    }


if __name__ == "__main__":
    key = jax.random.PRNGKey(0)
    k_params, k_img = jax.random.split(key)
    hidden = 8
    params = init_params(k_params, hidden)
    # FC1 expects 10*8*8 = 640 features => input spatial must be 128x128.
    image = jax.random.normal(k_img, (2, 1, 128, 128), jnp.float32)

    out = jax.jit(model_d_forward)(params, image)
    out = jax.block_until_ready(out)
    assert out.shape == (2, 1)
    assert bool(jnp.all(jnp.isfinite(out)))
    print("KERNEL_OK")
</pallas_src>

<mosaic_0001>
module attributes {stable_mosaic.version = 11 : i64} {
  func.func @_conv_act_kernel(%arg0: i32, %arg1: memref<16x4096xf32, #tpu.memory_space<vmem>>, %arg2: memref<8x16xf32, #tpu.memory_space<vmem>>, %arg3: memref<8x1xf32, #tpu.memory_space<vmem>>, %arg4: memref<8x4096xf32, #tpu.memory_space<vmem>>) attributes {dimension_semantics = [#tpu.dimension_semantics<parallel>], iteration_bounds = array<i64: 2>, scalar_prefetch = 0 : i64, scratch_operands = 0 : i64, tpu.core_type = #tpu.core_type<tc>, window_params = [{transform_indices = @transform_0, window_bounds = array<i64: 16, 4096>}, {pipeline_mode = #tpu.pipeline_mode<synchronous>, transform_indices = @transform_1, window_bounds = array<i64: 8, 16>}, {pipeline_mode = #tpu.pipeline_mode<synchronous>, transform_indices = @transform_2, window_bounds = array<i64: 8, 1>}, {transform_indices = @transform_3, window_bounds = array<i64: 8, 4096>}]} {
    %c0 = arith.constant 0 : index
    %c0_0 = arith.constant 0 : index
    %0 = vector.load %arg2[%c0, %c0_0] : memref<8x16xf32, #tpu.memory_space<vmem>>, vector<8x16xf32>
    %c0_1 = arith.constant 0 : index
    %c0_2 = arith.constant 0 : index
    %1 = vector.load %arg1[%c0_1, %c0_2] : memref<16x4096xf32, #tpu.memory_space<vmem>>, vector<16x4096xf32>
    %cst = arith.constant dense<0.000000e+00> : vector<8x4096xf32>
    %2 = tpu.matmul %0, %1, %cst {dimension_numbers = #tpu.dot_dimension_numbers<[1], [0], [0], [1], [0, 0, 1, 1], [], []>} : vector<8x16xf32>, vector<16x4096xf32>, vector<8x4096xf32> -> vector<8x4096xf32>
    %c0_3 = arith.constant 0 : index
    %c0_4 = arith.constant 0 : index
    %3 = vector.load %arg3[%c0_3, %c0_4] : memref<8x1xf32, #tpu.memory_space<vmem>>, vector<8x1xf32>
    %4 = vector.broadcast %3 : vector<8x1xf32> to vector<8x4096xf32>
    %5 = arith.addf %2, %4 : vector<8x4096xf32>
    %cst_5 = arith.constant 0.000000e+00 : f32
    %6 = vector.broadcast %cst_5 : f32 to vector<8x4096xf32>
    %7 = arith.cmpf oge, %5, %6 : vector<8x4096xf32>
    %cst_6 = arith.constant 2.000000e-01 : f32
    %8 = vector.broadcast %cst_6 : f32 to vector<8x4096xf32>
    %9 = arith.mulf %8, %5 : vector<8x4096xf32>
    %10 = arith.select %7, %5, %9 : vector<8x4096xi1>, vector<8x4096xf32>
    %c0_7 = arith.constant 0 : index
    %c0_8 = arith.constant 0 : index
    %11 = vector.load %arg4[%c0_7, %c0_8] : memref<8x4096xf32, #tpu.memory_space<vmem>>, vector<8x4096xf32>
    tpu.vector_store %arg4[%c0_7, %c0_8], %10 {strides = array<i32>} : memref<8x4096xf32, #tpu.memory_space<vmem>>, vector<8x4096xf32>,
    return
  }
  func.func @transform_0(%arg0: i32) -> (i32, i32) {
    %c0_i32 = arith.constant 0 : i32
    %c0_i32_0 = arith.constant 0 : i32
    return %c0_i32, %arg0 : i32, i32
  }
  func.func @transform_1(%arg0: i32) -> (i32, i32) {
    %c0_i32 = arith.constant 0 : i32
    %c0_i32_0 = arith.constant 0 : i32
    %c0_i32_1 = arith.constant 0 : i32
    return %c0_i32, %c0_i32_0 : i32, i32
  }
  func.func @transform_2(%arg0: i32) -> (i32, i32) {
    %c0_i32 = arith.constant 0 : i32
    %c0_i32_0 = arith.constant 0 : i32
    %c0_i32_1 = arith.constant 0 : i32
    return %c0_i32, %c0_i32_0 : i32, i32
  }
  func.func @transform_3(%arg0: i32) -> (i32, i32) {
    %c0_i32 = arith.constant 0 : i32
    %c0_i32_0 = arith.constant 0 : i32
    return %c0_i32, %arg0 : i32, i32
  }
}

module attributes {stable_mosaic.version = 11 : i64} {
  func.func @_conv_bn_act_kernel(%arg0: i32, %arg1: memref<128x2048xf32, #tpu.memory_space<vmem>>, %arg2: memref<16x128xf32, #tpu.memory_space<vmem>>, %arg3: memref<16x1xf32, #tpu.memory_space<vmem>>, %arg4: memref<16x1xf32, #tpu.memory_space<vmem>>, %arg5: memref<16x1xf32, #tpu.memory_space<vmem>>, %arg6: memref<16x2048xf32, #tpu.memory_space<vmem>>) attributes {dimension_semantics = [#tpu.dimension_semantics<arbitrary>], iteration_bounds = array<i64: 1>, scalar_prefetch = 0 : i64, scratch_operands = 0 : i64, tpu.core_type = #tpu.core_type<tc>, window_params = [{pipeline_mode = #tpu.pipeline_mode<synchronous>, transform_indices = @transform_0, window_bounds = array<i64: 128, 2048>}, {pipeline_mode = #tpu.pipeline_mode<synchronous>, transform_indices = @transform_1, window_bounds = array<i64: 16, 128>}, {pipeline_mode = #tpu.pipeline_mode<synchronous>, transform_indices = @transform_2, window_bounds = array<i64: 16, 1>}, {pipeline_mode = #tpu.pipeline_mode<synchronous>, transform_indices = @transform_3, window_bounds = array<i64: 16, 1>}, {pipeline_mode = #tpu.pipeline_mode<synchronous>, transform_indices = @transform_4, window_bounds = array<i64: 16, 1>}, {pipeline_mode = #tpu.pipeline_mode<synchronous>, transform_indices = @transform_5, window_bounds = array<i64: 16, 2048>}]} {
    %c0 = arith.constant 0 : index
    %c0_0 = arith.constant 0 : index
    %0 = vector.load %arg2[%c0, %c0_0] : memref<16x128xf32, #tpu.memory_space<vmem>>, vector<16x128xf32>
    %c0_1 = arith.constant 0 : index
    %c0_2 = arith.constant 0 : index
    %1 = vector.load %arg1[%c0_1, %c0_2] : memref<128x2048xf32, #tpu.memory_space<vmem>>, vector<128x2048xf32>
    %cst = arith.constant dense<0.000000e+00> : vector<16x2048xf32>
    %2 = tpu.matmul %0, %1, %cst {dimension_numbers = #tpu.dot_dimension_numbers<[1], [0], [0], [1], [0, 0, 1, 1], [], []>} : vector<16x128xf32>, vector<128x2048xf32>, vector<16x2048xf32> -> vector<16x2048xf32>
    %c0_3 = arith.constant 0 : index
    %c0_4 = arith.constant 0 : index
    %3 = vector.load %arg3[%c0_3, %c0_4] : memref<16x1xf32, #tpu.memory_space<vmem>>, vector<16x1xf32>
    %4 = vector.broadcast %3 : vector<16x1xf32> to vector<16x2048xf32>
    %5 = arith.addf %2, %4 : vector<16x2048xf32>
    %cst_5 = arith.constant dense<0.000000e+00> : vector<16xf32>
    %6 = vector.multi_reduction <add>, %5, %cst_5 [1] : vector<16x2048xf32> to vector<16xf32>
    %7 = vector.shape_cast %6 : vector<16xf32> to vector<16x1xf32>
    %cst_6 = arith.constant 2.048000e+03 : f32
    %8 = vector.broadcast %cst_6 : f32 to vector<16x1xf32>
    %9 = arith.divf %7, %8 : vector<16x1xf32>
    %10 = vector.broadcast %9 : vector<16x1xf32> to vector<16x2048xf32>
    %11 = arith.subf %5, %10 : vector<16x2048xf32>
    %12 = arith.mulf %11, %11 : vector<16x2048xf32>
    %cst_7 = arith.constant dense<0.000000e+00> : vector<16xf32>
    %13 = vector.multi_reduction <add>, %12, %cst_7 [1] : vector<16x2048xf32> to vector<16xf32>
    %14 = vector.shape_cast %13 : vector<16xf32> to vector<16x1xf32>
    %cst_8 = arith.constant 2.048000e+03 : f32
    %15 = vector.broadcast %cst_8 : f32 to vector<16x1xf32>
    %16 = arith.divf %14, %15 : vector<16x1xf32>
    %c0_9 = arith.constant 0 : index
    %c0_10 = arith.constant 0 : index
    %17 = vector.load %arg4[%c0_9, %c0_10] : memref<16x1xf32, #tpu.memory_space<vmem>>, vector<16x1xf32>
    %cst_11 = arith.constant 9.99999974E-6 : f32
    %18 = vector.broadcast %cst_11 : f32 to vector<16x1xf32>
    %19 = arith.addf %16, %18 : vector<16x1xf32>
    %20 = math.rsqrt %19 : vector<16x1xf32>
    %21 = arith.mulf %17, %20 : vector<16x1xf32>
    %22 = vector.broadcast %21 : vector<16x1xf32> to vector<16x2048xf32>
    %23 = arith.mulf %11, %22 : vector<16x2048xf32>
    %c0_12 = arith.constant 0 : index
    %c0_13 = arith.constant 0 : index
    %24 = vector.load %arg5[%c0_12, %c0_13] : memref<16x1xf32, #tpu.memory_space<vmem>>, vector<16x1xf32>
    %25 = vector.broadcast %24 : vector<16x1xf32> to vector<16x2048xf32>
    %26 = arith.addf %23, %25 : vector<16x2048xf32>
    %cst_14 = arith.constant 0.000000e+00 : f32
    %27 = vector.broadcast %cst_14 : f32 to vector<16x2048xf32>
    %28 = arith.cmpf oge, %26, %27 : vector<16x2048xf32>
    %cst_15 = arith.constant 2.000000e-01 : f32
    %29 = vector.broadcast %cst_15 : f32 to vector<16x2048xf32>
    %30 = arith.mulf %29, %26 : vector<16x2048xf32>
    %31 = arith.select %28, %26, %30 : vector<16x2048xi1>, vector<16x2048xf32>
    %c0_16 = arith.constant 0 : index
    %c0_17 = arith.constant 0 : index
    %32 = vector.load %arg6[%c0_16, %c0_17] : memref<16x2048xf32, #tpu.memory_space<vmem>>, vector<16x2048xf32>
    tpu.vector_store %arg6[%c0_16, %c0_17], %31 {strides = array<i32>} : memref<16x2048xf32, #tpu.memory_space<vmem>>, vector<16x2048xf32>,
    return
  }
  func.func @transform_0(%arg0: i32) -> (i32, i32) {
    %c0_i32 = arith.constant 0 : i32
    %c0_i32_0 = arith.constant 0 : i32
    %c0_i32_1 = arith.constant 0 : i32
    return %c0_i32, %c0_i32_0 : i32, i32
  }
  func.func @transform_1(%arg0: i32) -> (i32, i32) {
    %c0_i32 = arith.constant 0 : i32
    %c0_i32_0 = arith.constant 0 : i32
    %c0_i32_1 = arith.constant 0 : i32
    return %c0_i32, %c0_i32_0 : i32, i32
  }
  func.func @transform_2(%arg0: i32) -> (i32, i32) {
    %c0_i32 = arith.constant 0 : i32
    %c0_i32_0 = arith.constant 0 : i32
    %c0_i32_1 = arith.constant 0 : i32
    return %c0_i32, %c0_i32_0 : i32, i32
  }
  func.func @transform_3(%arg0: i32) -> (i32, i32) {
    %c0_i32 = arith.constant 0 : i32
    %c0_i32_0 = arith.constant 0 : i32
    %c0_i32_1 = arith.constant 0 : i32
    return %c0_i32, %c0_i32_0 : i32, i32
  }
  func.func @transform_4(%arg0: i32) -> (i32, i32) {
    %c0_i32 = arith.constant 0 : i32
    %c0_i32_0 = arith.constant 0 : i32
    %c0_i32_1 = arith.constant 0 : i32
    return %c0_i32, %c0_i32_0 : i32, i32
  }
  func.func @transform_5(%arg0: i32) -> (i32, i32) {
    %c0_i32 = arith.constant 0 : i32
    %c0_i32_0 = arith.constant 0 : i32
    %c0_i32_1 = arith.constant 0 : i32
    return %c0_i32, %c0_i32_0 : i32, i32
  }
}

module attributes {stable_mosaic.version = 11 : i64} {
  func.func @_conv_bn_act_kernel(%arg0: i32, %arg1: memref<256x512xf32, #tpu.memory_space<vmem>>, %arg2: memref<32x256xf32, #tpu.memory_space<vmem>>, %arg3: memref<32x1xf32, #tpu.memory_space<vmem>>, %arg4: memref<32x1xf32, #tpu.memory_space<vmem>>, %arg5: memref<32x1xf32, #tpu.memory_space<vmem>>, %arg6: memref<32x512xf32, #tpu.memory_space<vmem>>) attributes {dimension_semantics = [#tpu.dimension_semantics<arbitrary>], iteration_bounds = array<i64: 1>, scalar_prefetch = 0 : i64, scratch_operands = 0 : i64, tpu.core_type = #tpu.core_type<tc>, window_params = [{pipeline_mode = #tpu.pipeline_mode<synchronous>, transform_indices = @transform_0, window_bounds = array<i64: 256, 512>}, {pipeline_mode = #tpu.pipeline_mode<synchronous>, transform_indices = @transform_1, window_bounds = array<i64: 32, 256>}, {pipeline_mode = #tpu.pipeline_mode<synchronous>, transform_indices = @transform_2, window_bounds = array<i64: 32, 1>}, {pipeline_mode = #tpu.pipeline_mode<synchronous>, transform_indices = @transform_3, window_bounds = array<i64: 32, 1>}, {pipeline_mode = #tpu.pipeline_mode<synchronous>, transform_indices = @transform_4, window_bounds = array<i64: 32, 1>}, {pipeline_mode = #tpu.pipeline_mode<synchronous>, transform_indices = @transform_5, window_bounds = array<i64: 32, 512>}]} {
    %c0 = arith.constant 0 : index
    %c0_0 = arith.constant 0 : index
    %0 = vector.load %arg2[%c0, %c0_0] : memref<32x256xf32, #tpu.memory_space<vmem>>, vector<32x256xf32>
    %c0_1 = arith.constant 0 : index
    %c0_2 = arith.constant 0 : index
    %1 = vector.load %arg1[%c0_1, %c0_2] : memref<256x512xf32, #tpu.memory_space<vmem>>, vector<256x512xf32>
    %cst = arith.constant dense<0.000000e+00> : vector<32x512xf32>
    %2 = tpu.matmul %0, %1, %cst {dimension_numbers = #tpu.dot_dimension_numbers<[1], [0], [0], [1], [0, 0, 1, 1], [], []>} : vector<32x256xf32>, vector<256x512xf32>, vector<32x512xf32> -> vector<32x512xf32>
    %c0_3 = arith.constant 0 : index
    %c0_4 = arith.constant 0 : index
    %3 = vector.load %arg3[%c0_3, %c0_4] : memref<32x1xf32, #tpu.memory_space<vmem>>, vector<32x1xf32>
    %4 = vector.broadcast %3 : vector<32x1xf32> to vector<32x512xf32>
    %5 = arith.addf %2, %4 : vector<32x512xf32>
    %cst_5 = arith.constant dense<0.000000e+00> : vector<32xf32>
    %6 = vector.multi_reduction <add>, %5, %cst_5 [1] : vector<32x512xf32> to vector<32xf32>
    %7 = vector.shape_cast %6 : vector<32xf32> to vector<32x1xf32>
    %cst_6 = arith.constant 5.120000e+02 : f32
    %8 = vector.broadcast %cst_6 : f32 to vector<32x1xf32>
    %9 = arith.divf %7, %8 : vector<32x1xf32>
    %10 = vector.broadcast %9 : vector<32x1xf32> to vector<32x512xf32>
    %11 = arith.subf %5, %10 : vector<32x512xf32>
    %12 = arith.mulf %11, %11 : vector<32x512xf32>
    %cst_7 = arith.constant dense<0.000000e+00> : vector<32xf32>
    %13 = vector.multi_reduction <add>, %12, %cst_7 [1] : vector<32x512xf32> to vector<32xf32>
    %14 = vector.shape_cast %13 : vector<32xf32> to vector<32x1xf32>
    %cst_8 = arith.constant 5.120000e+02 : f32
    %15 = vector.broadcast %cst_8 : f32 to vector<32x1xf32>
    %16 = arith.divf %14, %15 : vector<32x1xf32>
    %c0_9 = arith.constant 0 : index
    %c0_10 = arith.constant 0 : index
    %17 = vector.load %arg4[%c0_9, %c0_10] : memref<32x1xf32, #tpu.memory_space<vmem>>, vector<32x1xf32>
    %cst_11 = arith.constant 9.99999974E-6 : f32
    %18 = vector.broadcast %cst_11 : f32 to vector<32x1xf32>
    %19 = arith.addf %16, %18 : vector<32x1xf32>
    %20 = math.rsqrt %19 : vector<32x1xf32>
    %21 = arith.mulf %17, %20 : vector<32x1xf32>
    %22 = vector.broadcast %21 : vector<32x1xf32> to vector<32x512xf32>
    %23 = arith.mulf %11, %22 : vector<32x512xf32>
    %c0_12 = arith.constant 0 : index
    %c0_13 = arith.constant 0 : index
    %24 = vector.load %arg5[%c0_12, %c0_13] : memref<32x1xf32, #tpu.memory_space<vmem>>, vector<32x1xf32>
    %25 = vector.broadcast %24 : vector<32x1xf32> to vector<32x512xf32>
    %26 = arith.addf %23, %25 : vector<32x512xf32>
    %cst_14 = arith.constant 0.000000e+00 : f32
    %27 = vector.broadcast %cst_14 : f32 to vector<32x512xf32>
    %28 = arith.cmpf oge, %26, %27 : vector<32x512xf32>
    %cst_15 = arith.constant 2.000000e-01 : f32
    %29 = vector.broadcast %cst_15 : f32 to vector<32x512xf32>
    %30 = arith.mulf %29, %26 : vector<32x512xf32>
    %31 = arith.select %28, %26, %30 : vector<32x512xi1>, vector<32x512xf32>
    %c0_16 = arith.constant 0 : index
    %c0_17 = arith.constant 0 : index
    %32 = vector.load %arg6[%c0_16, %c0_17] : memref<32x512xf32, #tpu.memory_space<vmem>>, vector<32x512xf32>
    tpu.vector_store %arg6[%c0_16, %c0_17], %31 {strides = array<i32>} : memref<32x512xf32, #tpu.memory_space<vmem>>, vector<32x512xf32>,
    return
  }
  func.func @transform_0(%arg0: i32) -> (i32, i32) {
    %c0_i32 = arith.constant 0 : i32
    %c0_i32_0 = arith.constant 0 : i32
    %c0_i32_1 = arith.constant 0 : i32
    return %c0_i32, %c0_i32_0 : i32, i32
  }
  func.func @transform_1(%arg0: i32) -> (i32, i32) {
    %c0_i32 = arith.constant 0 : i32
    %c0_i32_0 = arith.constant 0 : i32
    %c0_i32_1 = arith.constant 0 : i32
    return %c0_i32, %c0_i32_0 : i32, i32
  }
  func.func @transform_2(%arg0: i32) -> (i32, i32) {
    %c0_i32 = arith.constant 0 : i32
    %c0_i32_0 = arith.constant 0 : i32
    %c0_i32_1 = arith.constant 0 : i32
    return %c0_i32, %c0_i32_0 : i32, i32
  }
  func.func @transform_3(%arg0: i32) -> (i32, i32) {
    %c0_i32 = arith.constant 0 : i32
    %c0_i32_0 = arith.constant 0 : i32
    %c0_i32_1 = arith.constant 0 : i32
    return %c0_i32, %c0_i32_0 : i32, i32
  }
  func.func @transform_4(%arg0: i32) -> (i32, i32) {
    %c0_i32 = arith.constant 0 : i32
    %c0_i32_0 = arith.constant 0 : i32
    %c0_i32_1 = arith.constant 0 : i32
    return %c0_i32, %c0_i32_0 : i32, i32
  }
  func.func @transform_5(%arg0: i32) -> (i32, i32) {
    %c0_i32 = arith.constant 0 : i32
    %c0_i32_0 = arith.constant 0 : i32
    %c0_i32_1 = arith.constant 0 : i32
    return %c0_i32, %c0_i32_0 : i32, i32
  }
}

module attributes {stable_mosaic.version = 11 : i64} {
  func.func @_conv_fc_kernel(%arg0: i32, %arg1: memref<512x128xf32, #tpu.memory_space<vmem>>, %arg2: memref<10x512xf32, #tpu.memory_space<vmem>>, %arg3: memref<10x1xf32, #tpu.memory_space<vmem>>, %arg4: memref<10x128xf32, #tpu.memory_space<vmem>>, %arg5: memref<1x1xf32, #tpu.memory_space<vmem>>, %arg6: memref<2x1xf32, #tpu.memory_space<vmem>>) attributes {dimension_semantics = [#tpu.dimension_semantics<arbitrary>], iteration_bounds = array<i64: 1>, scalar_prefetch = 0 : i64, scratch_operands = 0 : i64, tpu.core_type = #tpu.core_type<tc>, window_params = [{pipeline_mode = #tpu.pipeline_mode<synchronous>, transform_indices = @transform_0, window_bounds = array<i64: 512, 128>}, {pipeline_mode = #tpu.pipeline_mode<synchronous>, transform_indices = @transform_1, window_bounds = array<i64: 10, 512>}, {pipeline_mode = #tpu.pipeline_mode<synchronous>, transform_indices = @transform_2, window_bounds = array<i64: 10, 1>}, {pipeline_mode = #tpu.pipeline_mode<synchronous>, transform_indices = @transform_3, window_bounds = array<i64: 10, 128>}, {pipeline_mode = #tpu.pipeline_mode<synchronous>, transform_indices = @transform_4, window_bounds = array<i64: 1, 1>}, {pipeline_mode = #tpu.pipeline_mode<synchronous>, transform_indices = @transform_5, window_bounds = array<i64: 2, 1>}]} {
    %c0 = arith.constant 0 : index
    %c0_0 = arith.constant 0 : index
    %0 = vector.load %arg2[%c0, %c0_0] : memref<10x512xf32, #tpu.memory_space<vmem>>, vector<10x512xf32>
    %c0_1 = arith.constant 0 : index
    %c0_2 = arith.constant 0 : index
    %1 = vector.load %arg1[%c0_1, %c0_2] : memref<512x128xf32, #tpu.memory_space<vmem>>, vector<512x128xf32>
    %cst = arith.constant dense<0.000000e+00> : vector<10x128xf32>
    %2 = tpu.matmul %0, %1, %cst {dimension_numbers = #tpu.dot_dimension_numbers<[1], [0], [0], [1], [0, 0, 1, 1], [], []>} : vector<10x512xf32>, vector<512x128xf32>, vector<10x128xf32> -> vector<10x128xf32>
    %c0_3 = arith.constant 0 : index
    %c0_4 = arith.constant 0 : index
    %3 = vector.load %arg3[%c0_3, %c0_4] : memref<10x1xf32, #tpu.memory_space<vmem>>, vector<10x1xf32>
    %4 = vector.broadcast %3 : vector<10x1xf32> to vector<10x128xf32>
    %5 = arith.addf %2, %4 : vector<10x128xf32>
    %cst_5 = arith.constant 0.000000e+00 : f32
    %6 = vector.broadcast %cst_5 : f32 to vector<10x128xf32>
    %7 = arith.cmpf oge, %5, %6 : vector<10x128xf32>
    %cst_6 = arith.constant 2.000000e-01 : f32
    %8 = vector.broadcast %cst_6 : f32 to vector<10x128xf32>
    %9 = arith.mulf %8, %5 : vector<10x128xf32>
    %10 = arith.select %7, %5, %9 : vector<10x128xi1>, vector<10x128xf32>
    %c0_7 = arith.constant 0 : index
    %c0_8 = arith.constant 0 : index
    %11 = vector.load %arg4[%c0_7, %c0_8] : memref<10x128xf32, #tpu.memory_space<vmem>>, vector<10x128xf32>
    %12 = arith.mulf %10, %11 : vector<10x128xf32>
    %13 = tpu.iota {dimensions = array<i32: 1>} : vector<10x128xi32>
    %c0_i32 = arith.constant 0 : i32
    %14 = vector.broadcast %c0_i32 : i32 to vector<10x128xi32>
    %15 = arith.cmpi sge, %13, %14 : vector<10x128xi32>
    %c64_i32 = arith.constant 64 : i32
    %16 = vector.broadcast %c64_i32 : i32 to vector<10x128xi32>
    %17 = arith.cmpi slt, %13, %16 : vector<10x128xi32>
    %18 = arith.andi %15, %17 : vector<10x128xi1>
    %cst_9 = arith.constant 0.000000e+00 : f32
    %19 = vector.broadcast %cst_9 : f32 to vector<10x128xf32>
    %20 = arith.select %18, %12, %19 : vector<10x128xi1>, vector<10x128xf32>
    %cst_10 = arith.constant dense<0.000000e+00> : vector<10xf32>
    %21 = vector.multi_reduction <add>, %20, %cst_10 [1] : vector<10x128xf32> to vector<10xf32>
    %22 = vector.shape_cast %21 : vector<10xf32> to vector<10x1xf32>
    %cst_11 = arith.constant dense<0.000000e+00> : vector<1xf32>
    %23 = vector.multi_reduction <add>, %22, %cst_11 [0] : vector<10x1xf32> to vector<1xf32>
    %24 = vector.shape_cast %23 : vector<1xf32> to vector<1x1xf32>
    %c64_i32_12 = arith.constant 64 : i32
    %25 = vector.broadcast %c64_i32_12 : i32 to vector<10x128xi32>
    %26 = arith.cmpi sge, %13, %25 : vector<10x128xi32>
    %c128_i32 = arith.constant 128 : i32
    %27 = vector.broadcast %c128_i32 : i32 to vector<10x128xi32>
    %28 = arith.cmpi slt, %13, %27 : vector<10x128xi32>
    %29 = arith.andi %26, %28 : vector<10x128xi1>
    %cst_13 = arith.constant 0.000000e+00 : f32
    %30 = vector.broadcast %cst_13 : f32 to vector<10x128xf32>
    %31 = arith.select %29, %12, %30 : vector<10x128xi1>, vector<10x128xf32>
    %cst_14 = arith.constant dense<0.000000e+00> : vector<10xf32>
    %32 = vector.multi_reduction <add>, %31, %cst_14 [1] : vector<10x128xf32> to vector<10xf32>
    %33 = vector.shape_cast %32 : vector<10xf32> to vector<10x1xf32>
    %cst_15 = arith.constant dense<0.000000e+00> : vector<1xf32>
    %34 = vector.multi_reduction <add>, %33, %cst_15 [0] : vector<10x1xf32> to vector<1xf32>
    %35 = vector.shape_cast %34 : vector<1xf32> to vector<1x1xf32>
    %36 = tpu.concatenate %24, %35 in 0 : vector<1x1xf32>, vector<1x1xf32> -> vector<2x1xf32>
    %c0_16 = arith.constant 0 : index
    %c0_17 = arith.constant 0 : index
    %37 = vector.load %arg5[%c0_16, %c0_17] : memref<1x1xf32, #tpu.memory_space<vmem>>, vector<1x1xf32>
    %38 = vector.broadcast %37 : vector<1x1xf32> to vector<2x1xf32>
    %39 = arith.addf %36, %38 : vector<2x1xf32>
    %c0_18 = arith.constant 0 : index
    %c0_19 = arith.constant 0 : index
    %40 = vector.load %arg6[%c0_18, %c0_19] : memref<2x1xf32, #tpu.memory_space<vmem>>, vector<2x1xf32>
    tpu.vector_store %arg6[%c0_18, %c0_19], %39 {strides = array<i32>} : memref<2x1xf32, #tpu.memory_space<vmem>>, vector<2x1xf32>,
    return
  }
  func.func @transform_0(%arg0: i32) -> (i32, i32) {
    %c0_i32 = arith.constant 0 : i32
    %c0_i32_0 = arith.constant 0 : i32
    %c0_i32_1 = arith.constant 0 : i32
    return %c0_i32, %c0_i32_0 : i32, i32
  }
  func.func @transform_1(%arg0: i32) -> (i32, i32) {
    %c0_i32 = arith.constant 0 : i32
    %c0_i32_0 = arith.constant 0 : i32
    %c0_i32_1 = arith.constant 0 : i32
    return %c0_i32, %c0_i32_0 : i32, i32
  }
  func.func @transform_2(%arg0: i32) -> (i32, i32) {
    %c0_i32 = arith.constant 0 : i32
    %c0_i32_0 = arith.constant 0 : i32
    %c0_i32_1 = arith.constant 0 : i32
    return %c0_i32, %c0_i32_0 : i32, i32
  }
  func.func @transform_3(%arg0: i32) -> (i32, i32) {
    %c0_i32 = arith.constant 0 : i32
    %c0_i32_0 = arith.constant 0 : i32
    %c0_i32_1 = arith.constant 0 : i32
    return %c0_i32, %c0_i32_0 : i32, i32
  }
  func.func @transform_4(%arg0: i32) -> (i32, i32) {
    %c0_i32 = arith.constant 0 : i32
    %c0_i32_0 = arith.constant 0 : i32
    %c0_i32_1 = arith.constant 0 : i32
    return %c0_i32, %c0_i32_0 : i32, i32
  }
  func.func @transform_5(%arg0: i32) -> (i32, i32) {
    %c0_i32 = arith.constant 0 : i32
    %c0_i32_0 = arith.constant 0 : i32
    %c0_i32_1 = arith.constant 0 : i32
    return %c0_i32, %c0_i32_0 : i32, i32
  }
}

</mosaic_0001>

<llo_original>
// kernel: model_d_forward.4
$region0: #{model_d_forward.4}
  #allocation0 [shape = 'u32[]', space=smem, size = 0x4, offset = 0x4, fixed_abs, tag = 'smem constant byte address 0x4 - core index']
  #allocation1 [shape = 'u32[144,128]{1,0:T(1,128)}', space=vmem, size = 0x12000, scoped, tag = 'internal scratch']
  %s0 = inlined_call_operand.vmem [shape: f32[16,8192], index: 0, kind: input, shape index: {}]
  %s1 = inlined_call_operand.vmem [shape: f32[8,16], index: 1, kind: input, shape index: {}]
  %s2 = inlined_call_operand.vmem [shape: f32[8,1], index: 2, kind: input, shape index: {}]
  %s3 = inlined_call_operand.vmem [shape: f32[8,8192], index: 3, kind: output, shape index: {}]
  %s4 = sld [smem:[#allocation0]]
  $region68: #{model_d_forward.4} parent=0
    _
  %s6 = ssub.s32 1, %s4
  %s7 = scalar_select 0, %s6, %s4
  $region1: #{model_d_forward.4} parent=0
    #allocation2 [shape = 'u8[524288]{0}', space=vmem, size = 0x80000, scoped, tag = 'input window, operand 0']
    loop: start=0, step=1, limit=4
    $region2: #{model_d_forward.4} parent=1 // loop_pre_header
      _
    $region3: #{model_d_forward.4} parent=1 // loop_header
      %s9 = sphi 0, %s13
      %p10 = scmp.ge.s32.totalorder %s9, 4
      %s19 = sphi 0, %s21
      %s22 = sphi 0, %s19
      %s23 = sphi 0, %s22
      %s39 = sphi 0, %s23
      %s43 = sphi 0, %s43
      %s45 = sphi 0, %s43
      %s46 = sphi 0, %s45
      %s60 = sphi 0, %s46
      %s64 = sphi 0, %s64
      %s66 = sphi 0, %s64
      %s67 = sphi 0, %s66
      %s81 = sphi 0, %s67
      %s87 = sphi 0, %s89
      %s90 = sphi 0, %s87
      %s91 = sphi 0, %s90
      %s107 = sphi 0, %s91
    $region4: #{model_d_forward.4} parent=1 // loop_header_branch
      %12 = sbr.rel (%p10) target = $region8
    $region5: #{model_d_forward.4} parent=1 // loop_body
      %s14 = ssub.s32 %s9, 1
      %s15 = ssub.s32 %s9, 2
      %s16 = sadd.s32 %s9, 1
      %s17 = ssub.s32 %s9, %s16
      %p18 = scmp.eq.s32.totalorder %s17, 0
      %s20 = sadd.s32 %s19, 1
      %s21 = scalar_select %p18, %s19, %s20
      %p24 = pneg %p18
      %p25 = scmp.eq.s32.totalorder %s9, 1
      %p26 = por %p24, %p25
      %p27 = scmp.ne.s32.totalorder %s19, %s22
      %p28 = scmp.eq.s32.totalorder %s9, 0
      %p29 = por %p27, %p28
      %p30 = scmp.ne.s32.totalorder %s19, %s22
      %p31 = scmp.eq.s32.totalorder %s14, 1
      %p32 = por %p30, %p31
      %p33 = scmp.ne.s32.totalorder %s22, %s23
      %p34 = scmp.eq.s32.totalorder %s14, 0
      %p35 = por %p33, %p34
      %p36 = scmp.ne.s32.totalorder %s22, %s23
      %p37 = scmp.eq.s32.totalorder %s15, 1
      %p38 = por %p36, %p37
      %p40 = scmp.ne.s32.totalorder %s23, %s39
      %p41 = scmp.eq.s32.totalorder %s15, 0
      %p42 = por %p40, %p41
      %s44 = sadd.s32 %s43, 1
      %p47 = scmp.eq.s32.totalorder %s9, 1
      %p48 = scmp.ne.s32.totalorder %s43, %s45
      %p49 = scmp.eq.s32.totalorder %s9, 0
      %p50 = por %p48, %p49
      %p51 = scmp.ne.s32.totalorder %s43, %s45
      %p52 = scmp.eq.s32.totalorder %s14, 1
      %p53 = por %p51, %p52
      %p54 = scmp.ne.s32.totalorder %s45, %s46
      %p55 = scmp.eq.s32.totalorder %s14, 0
      %p56 = por %p54, %p55
      %p57 = scmp.ne.s32.totalorder %s45, %s46
      %p58 = scmp.eq.s32.totalorder %s15, 1
      %p59 = por %p57, %p58
      %p61 = scmp.ne.s32.totalorder %s46, %s60
      %p62 = scmp.eq.s32.totalorder %s15, 0
      %p63 = por %p61, %p62
      %s65 = sadd.s32 %s64, 1
      %p68 = scmp.eq.s32.totalorder %s9, 1
      %p69 = scmp.ne.s32.totalorder %s64, %s66
      %p70 = scmp.eq.s32.totalorder %s9, 0
      %p71 = por %p69, %p70
      %p72 = scmp.ne.s32.totalorder %s64, %s66
      %p73 = scmp.eq.s32.totalorder %s14, 1
      %p74 = por %p72, %p73
      %p75 = scmp.ne.s32.totalorder %s66, %s67
      %p76 = scmp.eq.s32.totalorder %s14, 0
      %p77 = por %p75, %p76
      %p78 = scmp.ne.s32.totalorder %s66, %s67
      %p79 = scmp.eq.s32.totalorder %s15, 1
      %p80 = por %p78, %p79
      %p82 = scmp.ne.s32.totalorder %s67, %s81
      %p83 = scmp.eq.s32.totalorder %s15, 0
      %p84 = por %p82, %p83
      %s85 = ssub.s32 %s9, %s16
      %p86 = scmp.eq.s32.totalorder %s85, 0
      %s88 = sadd.s32 %s87, 1
      %s89 = scalar_select %p86, %s87, %s88
      %p92 = pneg %p86
      %p93 = scmp.eq.s32.totalorder %s9, 1
      %p94 = por %p92, %p93
      %p95 = scmp.ne.s32.totalorder %s87, %s90
      %p96 = scmp.eq.s32.totalorder %s9, 0
      %p97 = por %p95, %p96
      %p98 = scmp.ne.s32.totalorder %s87, %s90
      %p99 = scmp.eq.s32.totalorder %s14, 1
      %p100 = por %p98, %p99
      %p101 = scmp.ne.s32.totalorder %s90, %s91
      %p102 = scmp.eq.s32.totalorder %s14, 0
      %p103 = por %p101, %p102
      %p104 = scmp.ne.s32.totalorder %s90, %s91
      %p105 = scmp.eq.s32.totalorder %s15, 1
      %p106 = por %p104, %p105
      %p108 = scmp.ne.s32.totalorder %s91, %s107
      %p109 = scmp.eq.s32.totalorder %s15, 0
      %p110 = por %p108, %p109
      %p111 = scmp.le.s32.totalorder 1, %s9
      %p112 = scmp.lt.s32.totalorder %s9, 3
      %p113 = pnand %p111, %p112
      %p114 = pneg %p113
      // Predicated region
      $region9: #{model_d_forward.4} parent=5 // pred_check
        _
      $region10: #{model_d_forward.4} parent=5 // pred_check_branch
        %116 = sbr.rel (%p113) target = $region12
      $region11: #{model_d_forward.4} parent=5 // pred_region
        %s117 = ssub.s32 %s9, 1
        // Predicated region
        $region13: #{model_d_forward.4} parent=11 // pred_check
          %p118 = pneg %p56
        $region14: #{model_d_forward.4} parent=11 // pred_check_branch
          %120 = sbr.rel (%p118) target = $region16
        $region15: #{model_d_forward.4} parent=11 // pred_region
          _
        $region16: #{model_d_forward.4} parent=11 // pred_fallthru
          _
        // Predicated region
        $region17: #{model_d_forward.4} parent=11 // pred_check
          %p121 = pneg %p77
        $region18: #{model_d_forward.4} parent=11 // pred_check_branch
          %123 = sbr.rel (%p121) target = $region20
        $region19: #{model_d_forward.4} parent=11 // pred_region
          _
        $region20: #{model_d_forward.4} parent=11 // pred_fallthru
          _
      $region12: #{model_d_forward.4} parent=5 // pred_fallthru
        _
      %p124 = scmp.lt.s32.totalorder %s9, 2
      // Predicated region
      $region21: #{model_d_forward.4} parent=5 // pred_check
        %p125 = pneg %p124
      $region22: #{model_d_forward.4} parent=5 // pred_check_branch
        %127 = sbr.rel (%p125) target = $region24
      $region23: #{model_d_forward.4} parent=5 // pred_region
        // Predicated region
        $region25: #{model_d_forward.4} parent=23 // pred_check
          %p128 = pneg %p29
        $region26: #{model_d_forward.4} parent=23 // pred_check_branch
          %130 = sbr.rel (%p128) target = $region28
        $region27: #{model_d_forward.4} parent=23 // pred_region
          %s131 = sand.u32 %s19, 1
          %s132 = sand.u32 %s19, 1
          %s133 = smul.addr %s132, 512
          %s134 = scalar_lea.vmem [#allocation2], %s133
          %s135 = smul.u32 32, %s9
          %s136 = smul.addr %s135, 8
          %s137 = scalar_lea.vmem %s0, %s136
          // Predicated region
          $region29: #{model_d_forward.4} parent=27 // pred_check
            _
          $region30: #{model_d_forward.4} parent=27 // pred_check_branch
            %139 = sbr.rel (0) target = $region32
          $region31: #{model_d_forward.4} parent=27 // pred_region
            // Predicated region
            $region33: #{model_d_forward.4} parent=31 // pred_check
              _
            $region34: #{model_d_forward.4} parent=31 // pred_check_branch
              %141 = sbr.rel (0) target = $region36
            $region35: #{model_d_forward.4} parent=31 // pred_region
              loop: start=0, step=1, limit=1
              $region37: #{model_d_forward.4} parent=35 // loop_pre_header
                _
              $region38: #{model_d_forward.4} parent=35 // loop_header
                %s143 = sphi 0, %s147
                %p144 = scmp.ge.s32.totalorder %s143, 1
                %s148 = sphi %s137, %s137
                %s149 = sphi %s134, %s134
              $region39: #{model_d_forward.4} parent=35 // loop_header_branch
                %146 = sbr.rel (%p144) target = $region43
              $region40: #{model_d_forward.4} parent=35 // loop_body
                %v150 = vld [vmem:[%s148] sm:$0xff]
                %151 = vst [vmem:[%s149] sm:$0xff] %v150
                %v152 = vld [vmem:[%s148 + $0x8] sm:$0xff]
                %153 = vst [vmem:[%s149 + $0x8] sm:$0xff] %v152
                %v154 = vld [vmem:[%s148 + $0x10] sm:$0xff]
                %155 = vst [vmem:[%s149 + $0x10] sm:$0xff] %v154
                %v156 = vld [vmem:[%s148 + $0x18] sm:$0xff]
                %157 = vst [vmem:[%s149 + $0x18] sm:$0xff] %v156
                %v158 = vld [vmem:[%s148 + $0x20] sm:$0xff]
                %159 = vst [vmem:[%s149 + $0x20] sm:$0xff] %v158
                %v160 = vld [vmem:[%s148 + $0x28] sm:$0xff]
                %161 = vst [vmem:[%s149 + $0x28] sm:$0xff] %v160
                %v162 = vld [vmem:[%s148 + $0x30] sm:$0xff]
                %163 = vst [vmem:[%s149 + $0x30] sm:$0xff] %v162
                %v164 = vld [vmem:[%s148 + $0x38] sm:$0xff]
                %165 = vst [vmem:[%s149 + $0x38] sm:$0xff] %v164
                %v166 = vld [vmem:[%s148 + $0x40] sm:$0xff]
                %167 = vst [vmem:[%s149 + $0x40] sm:$0xff] %v166
                %v168 = vld [vmem:[%s148 + $0x48] sm:$0xff]
                %169 = vst [vmem:[%s149 + $0x48] sm:$0xff] %v168
                %v170 = vld [vmem:[%s148 + $0x50] sm:$0xff]
                %171 = vst [vmem:[%s149 + $0x50] sm:$0xff] %v170
                %v172 = vld [vmem:[%s148 + $0x58] sm:$0xff]
                %173 = vst [vmem:[%s149 + $0x58] sm:$0xff] %v172
                %v174 = vld [vmem:[%s148 + $0x60] sm:$0xff]
                %175 = vst [vmem:[%s149 + $0x60] sm:$0xff] %v174
                %v176 = vld [vmem:[%s148 + $0x68] sm:$0xff]
                %177 = vst [vmem:[%s149 + $0x68] sm:$0xff] %v176
                %v178 = vld [vmem:[%s148 + $0x70] sm:$0xff]
                %179 = vst [vmem:[%s149 + $0x70] sm:$0xff] %v178
                %v180 = vld [vmem:[%s148 + $0x78] sm:$0xff]
                %181 = vst [vmem:[%s149 + $0x78] sm:$0xff] %v180
                %v182 = vld [vmem:[%s148 + $0x80] sm:$0xff]
                %183 = vst [vmem:[%s149 + $0x80] sm:$0xff] %v182
                %v184 = vld [vmem:[%s148 + $0x88] sm:$0xff]
                %185 = vst [vmem:[%s149 + $0x88] sm:$0xff] %v184
                %v186 = vld [vmem:[%s148 + $0x90] sm:$0xff]
                %187 = vst [vmem:[%s149 + $0x90] sm:$0xff] %v186
                %v188 = vld [vmem:[%s148 + $0x98] sm:$0xff]
                %189 = vst [vmem:[%s149 + $0x98] sm:$0xff] %v188
                %v190 = vld [vmem:[%s148 + $0xa0] sm:$0xff]
                %191 = vst [vmem:[%s149 + $0xa0] sm:$0xff] %v190
                %v192 = vld [vmem:[%s148 + $0xa8] sm:$0xff]
                %193 = vst [vmem:[%s149 + $0xa8] sm:$0xff] %v192
                %v194 = vld [vmem:[%s148 + $0xb0] sm:$0xff]
                %195 = vst [vmem:[%s149 + $0xb0] sm:$0xff] %v194
                %v196 = vld [vmem:[%s148 + $0xb8] sm:$0xff]
                %197 = vst [vmem:[%s149 + $0xb8] sm:$0xff] %v196
                %v198 = vld [vmem:[%s148 + $0xc0] sm:$0xff]
                %199 = vst [vmem:[%s149 + $0xc0] sm:$0xff] %v198
                %v200 = vld [vmem:[%s148 + $0xc8] sm:$0xff]
                %201 = vst [vmem:[%s149 + $0xc8] sm:$0xff] %v200
                %v202 = vld [vmem:[%s148 + $0xd0] sm:$0xff]
                %203 = vst [vmem:[%s149 + $0xd0] sm:$0xff] %v202
                %v204 = vld [vmem:[%s148 + $0xd8] sm:$0xff]
                %205 = vst [vmem:[%s149 + $0xd8] sm:$0xff] %v204
                %v206 = vld [vmem:[%s148 + $0xe0] sm:$0xff]
                %207 = vst [vmem:[%s149 + $0xe0] sm:$0xff] %v206
                %v208 = vld [vmem:[%s148 + $0xe8] sm:$0xff]
                %209 = vst [vmem:[%s149 + $0xe8] sm:$0xff] %v208
                %v210 = vld [vmem:[%s148 + $0xf0] sm:$0xff]
                %211 = vst [vmem:[%s149 + $0xf0] sm:$0xff] %v210
                %v212 = vld [vmem:[%s148 + $0xf8] sm:$0xff]
                %213 = vst [vmem:[%s149 + $0xf8] sm:$0xff] %v212
                %v214 = vld [vmem:[%s148 + $0x200] sm:$0xff]
                %215 = vst [vmem:[%s149 + $0x100] sm:$0xff] %v214
                %v216 = vld [vmem:[%s148 + $0x208] sm:$0xff]
                %217 = vst [vmem:[%s149 + $0x108] sm:$0xff] %v216
                %v218 = vld [vmem:[%s148 + $0x210] sm:$0xff]
                %219 = vst [vmem:[%s149 + $0x110] sm:$0xff] %v218
                %v220 = vld [vmem:[%s148 + $0x218] sm:$0xff]
                %221 = vst [vmem:[%s149 + $0x118] sm:$0xff] %v220
                %v222 = vld [vmem:[%s148 + $0x220] sm:$0xff]
                %223 = vst [vmem:[%s149 + $0x120] sm:$0xff] %v222
                %v224 = vld [vmem:[%s148 + $0x228] sm:$0xff]
                %225 = vst [vmem:[%s149 + $0x128] sm:$0xff] %v224
                %v226 = vld [vmem:[%s148 + $0x230] sm:$0xff]
                %227 = vst [vmem:[%s149 + $0x130] sm:$0xff] %v226
                %v228 = vld [vmem:[%s148 + $0x238] sm:$0xff]
                %229 = vst [vmem:[%s149 + $0x138] sm:$0xff] %v228
                %v230 = vld [vmem:[%s148 + $0x240] sm:$0xff]
                %231 = vst [vmem:[%s149 + $0x140] sm:$0xff] %v230
                %v232 = vld [vmem:[%s148 + $0x248] sm:$0xff]
                %233 = vst [vmem:[%s149 + $0x148] sm:$0xff] %v232
                %v234 = vld [vmem:[%s148 + $0x250] sm:$0xff]
                %235 = vst [vmem:[%s149 + $0x150] sm:$0xff] %v234
                %v236 = vld [vmem:[%s148 + $0x258] sm:$0xff]
                %237 = vst [vmem:[%s149 + $0x158] sm:$0xff] %v236
                %v238 = vld [vmem:[%s148 + $0x260] sm:$0xff]
                %239 = vst [vmem:[%s149 + $0x160] sm:$0xff] %v238
                %v240 = vld [vmem:[%s148 + $0x268] sm:$0xff]
                %241 = vst [vmem:[%s149 + $0x168] sm:$0xff] %v240
                %v242 = vld [vmem:[%s148 + $0x270] sm:$0xff]
                %243 = vst [vmem:[%s149 + $0x170] sm:$0xff] %v242
                %v244 = vld [vmem:[%s148 + $0x278] sm:$0xff]
                %245 = vst [vmem:[%s149 + $0x178] sm:$0xff] %v244
                %v246 = vld [vmem:[%s148 + $0x280] sm:$0xff]
                %247 = vst [vmem:[%s149 + $0x180] sm:$0xff] %v246
                %v248 = vld [vmem:[%s148 + $0x288] sm:$0xff]
                %249 = vst [vmem:[%s149 + $0x188] sm:$0xff] %v248
                %v250 = vld [vmem:[%s148 + $0x290] sm:$0xff]
                %251 = vst [vmem:[%s149 + $0x190] sm:$0xff] %v250
                %v252 = vld [vmem:[%s148 + $0x298] sm:$0xff]
                %253 = vst [vmem:[%s149 + $0x198] sm:$0xff] %v252
                %v254 = vld [vmem:[%s148 + $0x2a0] sm:$0xff]
                %255 = vst [vmem:[%s149 + $0x1a0] sm:$0xff] %v254
                %v256 = vld [vmem:[%s148 + $0x2a8] sm:$0xff]
                %257 = vst [vmem:[%s149 + $0x1a8] sm:$0xff] %v256
                %v258 = vld [vmem:[%s148 + $0x2b0] sm:$0xff]
                %259 = vst [vmem:[%s149 + $0x1b0] sm:$0xff] %v258
                %v260 = vld [vmem:[%s148 + $0x2b8] sm:$0xff]
                %261 = vst [vmem:[%s149 + $0x1b8] sm:$0xff] %v260
                %v262 = vld [vmem:[%s148 + $0x2c0] sm:$0xff]
                %263 = vst [vmem:[%s149 + $0x1c0] sm:$0xff] %v262
                %v264 = vld [vmem:[%s148 + $0x2c8] sm:$0xff]
                %265 = vst [vmem:[%s149 + $0x1c8] sm:$0xff] %v264
                %v266 = vld [vmem:[%s148 + $0x2d0] sm:$0xff]
                %267 = vst [vmem:[%s149 + $0x1d0] sm:$0xff] %v266
                %v268 = vld [vmem:[%s148 + $0x2d8] sm:$0xff]
                %269 = vst [vmem:[%s149 + $0x1d8] sm:$0xff] %v268
                %v270 = vld [vmem:[%s148 + $0x2e0] sm:$0xff]
                %271 = vst [vmem:[%s149 + $0x1e0] sm:$0xff] %v270
                %v272 = vld [vmem:[%s148 + $0x2e8] sm:$0xff]
                %273 = vst [vmem:[%s149 + $0x1e8] sm:$0xff] %v272
                %v274 = vld [vmem:[%s148 + $0x2f0] sm:$0xff]
                %275 = vst [vmem:[%s149 + $0x1f0] sm:$0xff] %v274
                %v276 = vld [vmem:[%s148 + $0x2f8] sm:$0xff]
                %277 = vst [vmem:[%s149 + $0x1f8] sm:$0xff] %v276
              $region41: #{model_d_forward.4} parent=35 // loop_footer
                %s147 = sadd.s32 1, %s143
              $region42: #{model_d_forward.4} parent=35 // loop_footer_branch
                %142 = sbr.rel target = $region38
              $region43: #{model_d_forward.4} parent=35 // loop_exit
                _
            $region36: #{model_d_forward.4} parent=31 // pred_fallthru
              _
            // Predicated region
            $region44: #{model_d_forward.4} parent=31 // pred_check
              _
            $region45: #{model_d_forward.4} parent=31 // pred_check_branch
              %279 = sbr.rel target = $region47
            $region46: #{model_d_forward.4} parent=31 // pred_region
              _
            $region47: #{model_d_forward.4} parent=31 // pred_fallthru
              _
          $region32: #{model_d_forward.4} parent=27 // pred_fallthru
            _
          %280 = vnop
        $region28: #{model_d_forward.4} parent=23 // pred_fallthru
          _
      $region24: #{model_d_forward.4} parent=5 // pred_fallthru
        _
      %p281 = scmp.le.s32.totalorder 1, %s9
      %p282 = scmp.lt.s32.totalorder %s9, 3
      %p283 = pnand %p281, %p282
      %p284 = pneg %p283
      // Predicated region
      $region48: #{model_d_forward.4} parent=5 // pred_check
        _
      $region49: #{model_d_forward.4} parent=5 // pred_check_branch
        %286 = sbr.rel (%p283) target = $region51
      $region50: #{model_d_forward.4} parent=5 // pred_region
        %s287 = ssub.s32 %s9, 1
        %s288 = sand.u32 %s22, 1
        %s289 = sand.u32 %s22, 1
        %s290 = smul.addr %s289, 512
        %s291 = scalar_lea.vmem [#allocation2], %s290
        // Predicated region
        $region52: #{model_d_forward.4} parent=50 // pred_check
          %p292 = pneg %p35
        $region53: #{model_d_forward.4} parent=50 // pred_check_branch
          %294 = sbr.rel (%p292) target = $region55
        $region54: #{model_d_forward.4} parent=50 // pred_region
          _
        $region55: #{model_d_forward.4} parent=50 // pred_fallthru
          _
        %s295 = sand.u32 %s22, 1
        %s296 = sand.u32 %s22, 1
        %s297 = smul.addr %s296, 512
        %s298 = scalar_lea.vmem [#allocation2], %s297
        %p299 = pneg %p35
        %p300 = pneg %p32
        %p301 = pneg %p56
        %p302 = pneg %p53
        %p303 = pneg %p77
        %p304 = pneg %p74
        %p305 = pneg %p103
        %p306 = pneg %p100
        %s307 = smul.u32 32, %s14
        %p308 = scmp.lt.s32.totalorder %s307, 63
        %s309 = scalar_select %p308, %s307, 63
        %s310 = smul.addr %s309, 8
        %s311 = scalar_lea.vmem %s3, %s310
        %s312 = smul.u32 32, %s14
        %s313 = smul.u32 32, %s14
        %p314 = scmp.lt.s32.totalorder %s313, 63
        %s315 = scalar_select %p314, %s313, 63
        %s316 = smul.addr %s315, 8
        %s317 = scalar_lea.vmem %s3, %s316
        %s318 = smul.u32 32, %s14
        %v319 = vld [vmem:[%s1] sm:$0xff]
        %v320 = vld [vmem:[%s291] sm:$0xff]
        %v321 = vld [vmem:[%s291 + $0x8] sm:$0xff]
        %v322 = vld [vmem:[%s291 + $0x10] sm:$0xff]
        %v323 = vld [vmem:[%s291 + $0x18] sm:$0xff]
        %v324 = vld [vmem:[%s291 + $0x20] sm:$0xff]
        %v325 = vld [vmem:[%s291 + $0x28] sm:$0xff]
        %v326 = vld [vmem:[%s291 + $0x30] sm:$0xff]
        %v327 = vld [vmem:[%s291 + $0x38] sm:$0xff]
        %v328 = vld [vmem:[%s291 + $0x40] sm:$0xff]
        %v329 = vld [vmem:[%s291 + $0x48] sm:$0xff]
        %v330 = vld [vmem:[%s291 + $0x50] sm:$0xff]
        %v331 = vld [vmem:[%s291 + $0x58] sm:$0xff]
        %v332 = vld [vmem:[%s291 + $0x60] sm:$0xff]
        %v333 = vld [vmem:[%s291 + $0x68] sm:$0xff]
        %v334 = vld [vmem:[%s291 + $0x70] sm:$0xff]
        %v335 = vld [vmem:[%s291 + $0x78] sm:$0xff]
        %v336 = vld [vmem:[%s291 + $0x80] sm:$0xff]
        %v337 = vld [vmem:[%s291 + $0x88] sm:$0xff]
        %v338 = vld [vmem:[%s291 + $0x90] sm:$0xff]
        %v339 = vld [vmem:[%s291 + $0x98] sm:$0xff]
        %v340 = vld [vmem:[%s291 + $0xa0] sm:$0xff]
        %v341 = vld [vmem:[%s291 + $0xa8] sm:$0xff]
        %v342 = vld [vmem:[%s291 + $0xb0] sm:$0xff]
        %v343 = vld [vmem:[%s291 + $0xb8] sm:$0xff]
        %v344 = vld [vmem:[%s291 + $0xc0] sm:$0xff]
        %v345 = vld [vmem:[%s291 + $0xc8] sm:$0xff]
        %v346 = vld [vmem:[%s291 + $0xd0] sm:$0xff]
        %v347 = vld [vmem:[%s291 + $0xd8] sm:$0xff]
        %v348 = vld [vmem:[%s291 + $0xe0] sm:$0xff]
        %v349 = vld [vmem:[%s291 + $0xe8] sm:$0xff]
        %v350 = vld [vmem:[%s291 + $0xf0] sm:$0xff]
        %v351 = vld [vmem:[%s291 + $0xf8] sm:$0xff]
        %v352 = vld [vmem:[%s291 + $0x100] sm:$0xff]
        %v353 = vld [vmem:[%s291 + $0x108] sm:$0xff]
        %v354 = vld [vmem:[%s291 + $0x110] sm:$0xff]
        %v355 = vld [vmem:[%s291 + $0x118] sm:$0xff]
        %v356 = vld [vmem:[%s291 + $0x120] sm:$0xff]
        %v357 = vld [vmem:[%s291 + $0x128] sm:$0xff]
        %v358 = vld [vmem:[%s291 + $0x130] sm:$0xff]
        %v359 = vld [vmem:[%s291 + $0x138] sm:$0xff]
        %v360 = vld [vmem:[%s291 + $0x140] sm:$0xff]
        %v361 = vld [vmem:[%s291 + $0x148] sm:$0xff]
        %v362 = vld [vmem:[%s291 + $0x150] sm:$0xff]
        %v363 = vld [vmem:[%s291 + $0x158] sm:$0xff]
        %v364 = vld [vmem:[%s291 + $0x160] sm:$0xff]
        %v365 = vld [vmem:[%s291 + $0x168] sm:$0xff]
        %v366 = vld [vmem:[%s291 + $0x170] sm:$0xff]
        %v367 = vld [vmem:[%s291 + $0x178] sm:$0xff]
        %v368 = vld [vmem:[%s291 + $0x180] sm:$0xff]
        %v369 = vld [vmem:[%s291 + $0x188] sm:$0xff]
        %v370 = vld [vmem:[%s291 + $0x190] sm:$0xff]
        %v371 = vld [vmem:[%s291 + $0x198] sm:$0xff]
        %v372 = vld [vmem:[%s291 + $0x1a0] sm:$0xff]
        %v373 = vld [vmem:[%s291 + $0x1a8] sm:$0xff]
        %v374 = vld [vmem:[%s291 + $0x1b0] sm:$0xff]
        %v375 = vld [vmem:[%s291 + $0x1b8] sm:$0xff]
        %v376 = vld [vmem:[%s291 + $0x1c0] sm:$0xff]
        %v377 = vld [vmem:[%s291 + $0x1c8] sm:$0xff]
        %v378 = vld [vmem:[%s291 + $0x1d0] sm:$0xff]
        %v379 = vld [vmem:[%s291 + $0x1d8] sm:$0xff]
        %v380 = vld [vmem:[%s291 + $0x1e0] sm:$0xff]
        %v381 = vld [vmem:[%s291 + $0x1e8] sm:$0xff]
        %v382 = vld [vmem:[%s291 + $0x1f0] sm:$0xff]
        %v383 = vld [vmem:[%s291 + $0x1f8] sm:$0xff]
        %v384 = vld [vmem:[%s2] sm:$0xff]
        %386 = vset.pattern.permute.xlu0 0
        %387 = vperm.xlu0 %386, %v384
        %v388 = vpop.permute.xlu0 %387
        %vm390 = vcmask 130048
        %v392 = vsel %vm390, %v319, 0
        %394 = vmatprep.subr.mxu0 %v321
        %395 = vmatpush1.msra.mxu0 %v320
        %396 = vmatprep.subr.mxu0 %v353
        %397 = vmatpush1.msra.mxu0 %v352
        %398 = vmatprep.subr.mxu0 0.0
        %399 = vmatpush1.msra.mxu0 0.0
        %400 = vmatprep.subr.mxu0 0.0
        %401 = vmatpush1.msra.mxu0 0.0
        %402 = vmatprep.subr.mxu0 0.0
        %403 = vmatpush1.msra.mxu0 0.0
        %404 = vmatprep.subr.mxu0 0.0
        %405 = vmatpush1.msra.mxu0 0.0
        %406 = vmatprep.subr.mxu0 0.0
        %407 = vmatpush1.msra.mxu0 0.0
        %408 = vmatprep.subr.mxu0 0.0
        %409 = vmatpush1.msra.mxu0 0.0
        %410 = vmatprep.subr.mxu0 0.0
        %411 = vmatpush1.msra.mxu0 0.0
        %412 = vmatprep.subr.mxu0 0.0
        %413 = vmatpush1.msra.mxu0 0.0
        %414 = vmatprep.subr.mxu0 0.0
        %415 = vmatpush1.msra.mxu0 0.0
        %416 = vmatprep.subr.mxu0 0.0
        %417 = vmatpush1.msra.mxu0 0.0
        %418 = vmatprep.subr.mxu0 0.0
        %419 = vmatpush1.msra.mxu0 0.0
        %420 = vmatprep.subr.mxu0 0.0
        %421 = vmatpush1.msra.mxu0 0.0
        %422 = vmatprep.subr.mxu0 0.0
        %423 = vmatpush1.msra.mxu0 0.0
        %424 = vmatprep.subr.mxu0 0.0
        %425 = vmatpush1.msra.mxu0 0.0
        %426 = vmatprep.subr.mxu0 0.0
        %427 = vmatpush1.msra.mxu0 0.0
        %428 = vmatprep.subr.mxu0 0.0
        %429 = vmatpush1.msra.mxu0 0.0
        %430 = vmatprep.subr.mxu0 0.0
        %431 = vmatpush1.msra.mxu0 0.0
        %432 = vmatprep.subr.mxu0 0.0
        %433 = vmatpush1.msra.mxu0 0.0
        %434 = vmatprep.subr.mxu0 0.0
        %435 = vmatpush1.msra.mxu0 0.0
        %436 = vmatprep.subr.mxu0 0.0
        %437 = vmatpush1.msra.mxu0 0.0
        %438 = vmatprep.subr.mxu0 0.0
        %439 = vmatpush1.msra.mxu0 0.0
        %440 = vmatprep.subr.mxu0 0.0
        %441 = vmatpush1.msra.mxu0 0.0
        %442 = vmatprep.subr.mxu0 0.0
        %443 = vmatpush1.msra.mxu0 0.0
        %444 = vmatprep.subr.mxu0 0.0
        %445 = vmatpush1.msra.mxu0 0.0
        %446 = vmatprep.subr.mxu0 0.0
        %447 = vmatpush1.msra.mxu0 0.0
        %448 = vmatprep.subr.mxu0 0.0
        %449 = vmatpush1.msra.mxu0 0.0
        %450 = vmatprep.subr.mxu0 0.0
        %451 = vmatpush1.msra.mxu0 0.0
        %452 = vmatprep.subr.mxu0 0.0
        %453 = vmatpush1.msra.mxu0 0.0
        %454 = vmatprep.subr.mxu0 0.0
        %455 = vmatpush1.msra.mxu0 0.0
        %456 = vmatprep.subr.mxu0 0.0
        %457 = vmatpush1.msra.mxu0 0.0
        %458 = vmatprep.mubr.f32.mxu0 0.0
        %459 = vmatmul.mubr.f32.gmra.mrb[0].mxu0 %v392
        %v460 = vpop.f32.mrb[0].mxu0
        %v461 = vadd.f32 %v388, %v460
        %v462 = vpop.f32.mrb[0].mxu0
        %v463 = vadd.f32 %v388, %v462
        %464 = vdwg.mxu0
        %465 = vmatprep.subr.mxu0 %v323
        %466 = vmatpush1.msra.mxu0 %v322
        %467 = vmatprep.subr.mxu0 %v355
        %468 = vmatpush1.msra.mxu0 %v354
        %469 = vmatprep.subr.mxu0 0.0
        %470 = vmatpush1.msra.mxu0 0.0
        %471 = vmatprep.subr.mxu0 0.0
        %472 = vmatpush1.msra.mxu0 0.0
        %473 = vmatprep.subr.mxu0 0.0
        %474 = vmatpush1.msra.mxu0 0.0
        %475 = vmatprep.subr.mxu0 0.0
        %476 = vmatpush1.msra.mxu0 0.0
        %477 = vmatprep.subr.mxu0 0.0
        %478 = vmatpush1.msra.mxu0 0.0
        %479 = vmatprep.subr.mxu0 0.0
        %480 = vmatpush1.msra.mxu0 0.0
        %481 = vmatprep.subr.mxu0 0.0
        %482 = vmatpush1.msra.mxu0 0.0
        %483 = vmatprep.subr.mxu0 0.0
        %484 = vmatpush1.msra.mxu0 0.0
        %485 = vmatprep.subr.mxu0 0.0
        %486 = vmatpush1.msra.mxu0 0.0
        %487 = vmatprep.subr.mxu0 0.0
        %488 = vmatpush1.msra.mxu0 0.0
        %489 = vmatprep.subr.mxu0 0.0
        %490 = vmatpush1.msra.mxu0 0.0
        %491 = vmatprep.subr.mxu0 0.0
        %492 = vmatpush1.msra.mxu0 0.0
        %493 = vmatprep.subr.mxu0 0.0
        %494 = vmatpush1.msra.mxu0 0.0
        %495 = vmatprep.subr.mxu0 0.0
        %496 = vmatpush1.msra.mxu0 0.0
        %497 = vmatprep.subr.mxu0 0.0
        %498 = vmatpush1.msra.mxu0 0.0
        %499 = vmatprep.subr.mxu0 0.0
        %500 = vmatpush1.msra.mxu0 0.0
        %501 = vmatprep.subr.mxu0 0.0
        %502 = vmatpush1.msra.mxu0 0.0
        %503 = vmatprep.subr.mxu0 0.0
        %504 = vmatpush1.msra.mxu0 0.0
        %505 = vmatprep.subr.mxu0 0.0
        %506 = vmatpush1.msra.mxu0 0.0
        %507 = vmatprep.subr.mxu0 0.0
        %508 = vmatpush1.msra.mxu0 0.0
        %509 = vmatprep.subr.mxu0 0.0
        %510 = vmatpush1.msra.mxu0 0.0
        %511 = vmatprep.subr.mxu0 0.0
        %512 = vmatpush1.msra.mxu0 0.0
        %513 = vmatprep.subr.mxu0 0.0
        %514 = vmatpush1.msra.mxu0 0.0
        %515 = vmatprep.subr.mxu0 0.0
        %516 = vmatpush1.msra.mxu0 0.0
        %517 = vmatprep.subr.mxu0 0.0
        %518 = vmatpush1.msra.mxu0 0.0
        %519 = vmatprep.subr.mxu0 0.0
        %520 = vmatpush1.msra.mxu0 0.0
        %521 = vmatprep.subr.mxu0 0.0
        %522 = vmatpush1.msra.mxu0 0.0
        %523 = vmatprep.subr.mxu0 0.0
        %524 = vmatpush1.msra.mxu0 0.0
        %525 = vmatprep.subr.mxu0 0.0
        %526 = vmatpush1.msra.mxu0 0.0
        %527 = vmatprep.subr.mxu0 0.0
        %528 = vmatpush1.msra.mxu0 0.0
        %529 = vmatprep.mubr.f32.mxu0 0.0
        %530 = vmatmul.mubr.f32.gmra.mrb[0].mxu0 %v392
        %v531 = vpop.f32.mrb[0].mxu0
        %v532 = vadd.f32 %v388, %v531
        %v533 = vpop.f32.mrb[0].mxu0
        %v534 = vadd.f32 %v388, %v533
        %535 = vdwg.mxu0
        %536 = vmatprep.subr.mxu0 %v325
        %537 = vmatpush1.msra.mxu0 %v324
        %538 = vmatprep.subr.mxu0 %v357
        %539 = vmatpush1.msra.mxu0 %v356
        %540 = vmatprep.subr.mxu0 0.0
        %541 = vmatpush1.msra.mxu0 0.0
        %542 = vmatprep.subr.mxu0 0.0
        %543 = vmatpush1.msra.mxu0 0.0
        %544 = vmatprep.subr.mxu0 0.0
        %545 = vmatpush1.msra.mxu0 0.0
        %546 = vmatprep.subr.mxu0 0.0
        %547 = vmatpush1.msra.mxu0 0.0
        %548 = vmatprep.subr.mxu0 0.0
        %549 = vmatpush1.msra.mxu0 0.0
        %550 = vmatprep.subr.mxu0 0.0
        %551 = vmatpush1.msra.mxu0 0.0
        %552 = vmatprep.subr.mxu0 0.0
        %553 = vmatpush1.msra.mxu0 0.0
        %554 = vmatprep.subr.mxu0 0.0
        %555 = vmatpush1.msra.mxu0 0.0
        %556 = vmatprep.subr.mxu0 0.0
        %557 = vmatpush1.msra.mxu0 0.0
        %558 = vmatprep.subr.mxu0 0.0
        %559 = vmatpush1.msra.mxu0 0.0
        %560 = vmatprep.subr.mxu0 0.0
        %561 = vmatpush1.msra.mxu0 0.0
        %562 = vmatprep.subr.mxu0 0.0
        %563 = vmatpush1.msra.mxu0 0.0
        %564 = vmatprep.subr.mxu0 0.0
        %565 = vmatpush1.msra.mxu0 0.0
        %566 = vmatprep.subr.mxu0 0.0
        %567 = vmatpush1.msra.mxu0 0.0
        %568 = vmatprep.subr.mxu0 0.0
        %569 = vmatpush1.msra.mxu0 0.0
        %570 = vmatprep.subr.mxu0 0.0
        %571 = vmatpush1.msra.mxu0 0.0
        %572 = vmatprep.subr.mxu0 0.0
        %573 = vmatpush1.msra.mxu0 0.0
        %574 = vmatprep.subr.mxu0 0.0
        %575 = vmatpush1.msra.mxu0 0.0
        %576 = vmatprep.subr.mxu0 0.0
        %577 = vmatpush1.msra.mxu0 0.0
        %578 = vmatprep.subr.mxu0 0.0
        %579 = vmatpush1.msra.mxu0 0.0
        %580 = vmatprep.subr.mxu0 0.0
        %581 = vmatpush1.msra.mxu0 0.0
        %582 = vmatprep.subr.mxu0 0.0
        %583 = vmatpush1.msra.mxu0 0.0
        %584 = vmatprep.subr.mxu0 0.0
        %585 = vmatpush1.msra.mxu0 0.0
        %586 = vmatprep.subr.mxu0 0.0
        %587 = vmatpush1.msra.mxu0 0.0
        %588 = vmatprep.subr.mxu0 0.0
        %589 = vmatpush1.msra.mxu0 0.0
        %590 = vmatprep.subr.mxu0 0.0
        %591 = vmatpush1.msra.mxu0 0.0
        %592 = vmatprep.subr.mxu0 0.0
        %593 = vmatpush1.msra.mxu0 0.0
        %594 = vmatprep.subr.mxu0 0.0
        %595 = vmatpush1.msra.mxu0 0.0
        %596 = vmatprep.subr.mxu0 0.0
        %597 = vmatpush1.msra.mxu0 0.0
        %598 = vmatprep.subr.mxu0 0.0
        %599 = vmatpush1.msra.mxu0 0.0
        %600 = vmatprep.mubr.f32.mxu0 0.0
        %601 = vmatmul.mubr.f32.gmra.mrb[0].mxu0 %v392
        %v602 = vpop.f32.mrb[0].mxu0
        %v603 = vadd.f32 %v388, %v602
        %v604 = vpop.f32.mrb[0].mxu0
        %v605 = vadd.f32 %v388, %v604
        %606 = vdwg.mxu0
        %607 = vmatprep.subr.mxu0 %v327
        %608 = vmatpush1.msra.mxu0 %v326
        %609 = vmatprep.subr.mxu0 %v359
        %610 = vmatpush1.msra.mxu0 %v358
        %611 = vmatprep.subr.mxu0 0.0
        %612 = vmatpush1.msra.mxu0 0.0
        %613 = vmatprep.subr.mxu0 0.0
        %614 = vmatpush1.msra.mxu0 0.0
        %615 = vmatprep.subr.mxu0 0.0
        %616 = vmatpush1.msra.mxu0 0.0
        %617 = vmatprep.subr.mxu0 0.0
        %618 = vmatpush1.msra.mxu0 0.0
        %619 = vmatprep.subr.mxu0 0.0
        %620 = vmatpush1.msra.mxu0 0.0
        %621 = vmatprep.subr.mxu0 0.0
        %622 = vmatpush1.msra.mxu0 0.0
        %623 = vmatprep.subr.mxu0 0.0
        %624 = vmatpush1.msra.mxu0 0.0
        %625 = vmatprep.subr.mxu0 0.0
        %626 = vmatpush1.msra.mxu0 0.0
        %627 = vmatprep.subr.mxu0 0.0
        %628 = vmatpush1.msra.mxu0 0.0
        %629 = vmatprep.subr.mxu0 0.0
        %630 = vmatpush1.msra.mxu0 0.0
        %631 = vmatprep.subr.mxu0 0.0
        %632 = vmatpush1.msra.mxu0 0.0
        %633 = vmatprep.subr.mxu0 0.0
        %634 = vmatpush1.msra.mxu0 0.0
        %635 = vmatprep.subr.mxu0 0.0
        %636 = vmatpush1.msra.mxu0 0.0
        %637 = vmatprep.subr.mxu0 0.0
        %638 = vmatpush1.msra.mxu0 0.0
        %639 = vmatprep.subr.mxu0 0.0
        %640 = vmatpush1.msra.mxu0 0.0
        %641 = vmatprep.subr.mxu0 0.0
        %642 = vmatpush1.msra.mxu0 0.0
        %643 = vmatprep.subr.mxu0 0.0
        %644 = vmatpush1.msra.mxu0 0.0
        %645 = vmatprep.subr.mxu0 0.0
        %646 = vmatpush1.msra.mxu0 0.0
        %647 = vmatprep.subr.mxu0 0.0
        %648 = vmatpush1.msra.mxu0 0.0
        %649 = vmatprep.subr.mxu0 0.0
        %650 = vmatpush1.msra.mxu0 0.0
        %651 = vmatprep.subr.mxu0 0.0
        %652 = vmatpush1.msra.mxu0 0.0
        %653 = vmatprep.subr.mxu0 0.0
        %654 = vmatpush1.msra.mxu0 0.0
        %655 = vmatprep.subr.mxu0 0.0
        %656 = vmatpush1.msra.mxu0 0.0
        %657 = vmatprep.subr.mxu0 0.0
        %658 = vmatpush1.msra.mxu0 0.0
        %659 = vmatprep.subr.mxu0 0.0
        %660 = vmatpush1.msra.mxu0 0.0
        %661 = vmatprep.subr.mxu0 0.0
        %662 = vmatpush1.msra.mxu0 0.0
        %663 = vmatprep.subr.mxu0 0.0
        %664 = vmatpush1.msra.mxu0 0.0
        %665 = vmatprep.subr.mxu0 0.0
        %666 = vmatpush1.msra.mxu0 0.0
        %667 = vmatprep.subr.mxu0 0.0
        %668 = vmatpush1.msra.mxu0 0.0
        %669 = vmatprep.subr.mxu0 0.0
        %670 = vmatpush1.msra.mxu0 0.0
        %671 = vmatprep.mubr.f32.mxu0 0.0
        %672 = vmatmul.mubr.f32.gmra.mrb[0].mxu0 %v392
        %v673 = vpop.f32.mrb[0].mxu0
        %v674 = vadd.f32 %v388, %v673
        %v675 = vpop.f32.mrb[0].mxu0
        %v676 = vadd.f32 %v388, %v675
        %677 = vdwg.mxu0
        %678 = vmatprep.subr.mxu0 %v329
        %679 = vmatpush1.msra.mxu0 %v328
        %680 = vmatprep.subr.mxu0 %v361
        %681 = vmatpush1.msra.mxu0 %v360
        %682 = vmatprep.subr.mxu0 0.0
        %683 = vmatpush1.msra.mxu0 0.0
        %684 = vmatprep.subr.mxu0 0.0
        %685 = vmatpush1.msra.mxu0 0.0
        %686 = vmatprep.subr.mxu0 0.0
        %687 = vmatpush1.msra.mxu0 0.0
        %688 = vmatprep.subr.mxu0 0.0
        %689 = vmatpush1.msra.mxu0 0.0
        %690 = vmatprep.subr.mxu0 0.0
        %691 = vmatpush1.msra.mxu0 0.0
        %692 = vmatprep.subr.mxu0 0.0
        %693 = vmatpush1.msra.mxu0 0.0
        %694 = vmatprep.subr.mxu0 0.0
        %695 = vmatpush1.msra.mxu0 0.0
        %696 = vmatprep.subr.mxu0 0.0
        %697 = vmatpush1.msra.mxu0 0.0
        %698 = vmatprep.subr.mxu0 0.0
        %699 = vmatpush1.msra.mxu0 0.0
        %700 = vmatprep.subr.mxu0 0.0
        %701 = vmatpush1.msra.mxu0 0.0
        %702 = vmatprep.subr.mxu0 0.0
        %703 = vmatpush1.msra.mxu0 0.0
        %704 = vmatprep.subr.mxu0 0.0
        %705 = vmatpush1.msra.mxu0 0.0
        %706 = vmatprep.subr.mxu0 0.0
        %707 = vmatpush1.msra.mxu0 0.0
        %708 = vmatprep.subr.mxu0 0.0
        %709 = vmatpush1.msra.mxu0 0.0
        %710 = vmatprep.subr.mxu0 0.0
        %711 = vmatpush1.msra.mxu0 0.0
        %712 = vmatprep.subr.mxu0 0.0
        %713 = vmatpush1.msra.mxu0 0.0
        %714 = vmatprep.subr.mxu0 0.0
        %715 = vmatpush1.msra.mxu0 0.0
        %716 = vmatprep.subr.mxu0 0.0
        %717 = vmatpush1.msra.mxu0 0.0
        %718 = vmatprep.subr.mxu0 0.0
        %719 = vmatpush1.msra.mxu0 0.0
        %720 = vmatprep.subr.mxu0 0.0
        %721 = vmatpush1.msra.mxu0 0.0
        %722 = vmatprep.subr.mxu0 0.0
        %723 = vmatpush1.msra.mxu0 0.0
        %724 = vmatprep.subr.mxu0 0.0
        %725 = vmatpush1.msra.mxu0 0.0
        %726 = vmatprep.subr.mxu0 0.0
        %727 = vmatpush1.msra.mxu0 0.0
        %728 = vmatprep.subr.mxu0 0.0
        %729 = vmatpush1.msra.mxu0 0.0
        %730 = vmatprep.subr.mxu0 0.0
        %731 = vmatpush1.msra.mxu0 0.0
        %732 = vmatprep.subr.mxu0 0.0
        %733 = vmatpush1.msra.mxu0 0.0
        %734 = vmatprep.subr.mxu0 0.0
        %735 = vmatpush1.msra.mxu0 0.0
        %736 = vmatprep.subr.mxu0 0.0
        %737 = vmatpush1.msra.mxu0 0.0
        %738 = vmatprep.subr.mxu0 0.0
        %739 = vmatpush1.msra.mxu0 0.0
        %740 = vmatprep.subr.mxu0 0.0
        %741 = vmatpush1.msra.mxu0 0.0
        %742 = vmatprep.mubr.f32.mxu0 0.0
        %743 = vmatmul.mubr.f32.gmra.mrb[0].mxu0 %v392
        %v744 = vpop.f32.mrb[0].mxu0
        %v745 = vadd.f32 %v388, %v744
        %v746 = vpop.f32.mrb[0].mxu0
        %v747 = vadd.f32 %v388, %v746
        %748 = vdwg.mxu0
        %749 = vmatprep.subr.mxu0 %v331
        %750 = vmatpush1.msra.mxu0 %v330
        %751 = vmatprep.subr.mxu0 %v363
        %752 = vmatpush1.msra.mxu0 %v362
        %753 = vmatprep.subr.mxu0 0.0
        %754 = vmatpush1.msra.mxu0 0.0
        %755 = vmatprep.subr.mxu0 0.0
        %756 = vmatpush1.msra.mxu0 0.0
        %757 = vmatprep.subr.mxu0 0.0
        %758 = vmatpush1.msra.mxu0 0.0
        %759 = vmatprep.subr.mxu0 0.0
        %760 = vmatpush1.msra.mxu0 0.0
        %761 = vmatprep.subr.mxu0 0.0
        %762 = vmatpush1.msra.mxu0 0.0
        %763 = vmatprep.subr.mxu0 0.0
        %764 = vmatpush1.msra.mxu0 0.0
        %765 = vmatprep.subr.mxu0 0.0
        %766 = vmatpush1.msra.mxu0 0.0
        %767 = vmatprep.subr.mxu0 0.0
        %768 = vmatpush1.msra.mxu0 0.0
        %769 = vmatprep.subr.mxu0 0.0
        %770 = vmatpush1.msra.mxu0 0.0
        %771 = vmatprep.subr.mxu0 0.0
        %772 = vmatpush1.msra.mxu0 0.0
        %773 = vmatprep.subr.mxu0 0.0
        %774 = vmatpush1.msra.mxu0 0.0
        %775 = vmatprep.subr.mxu0 0.0
        %776 = vmatpush1.msra.mxu0 0.0
        %777 = vmatprep.subr.mxu0 0.0
        %778 = vmatpush1.msra.mxu0 0.0
        %779 = vmatprep.subr.mxu0 0.0
        %780 = vmatpush1.msra.mxu0 0.0
        %781 = vmatprep.subr.mxu0 0.0
        %782 = vmatpush1.msra.mxu0 0.0
        %783 = vmatprep.subr.mxu0 0.0
        %784 = vmatpush1.msra.mxu0 0.0
        %785 = vmatprep.subr.mxu0 0.0
        %786 = vmatpush1.msra.mxu0 0.0
        %787 = vmatprep.subr.mxu0 0.0
        %788 = vmatpush1.msra.mxu0 0.0
        %789 = vmatprep.subr.mxu0 0.0
        %790 = vmatpush1.msra.mxu0 0.0
        %791 = vmatprep.subr.mxu0 0.0
        %792 = vmatpush1.msra.mxu0 0.0
        %793 = vmatprep.subr.mxu0 0.0
        %794 = vmatpush1.msra.mxu0 0.0
        %795 = vmatprep.subr.mxu0 0.0
        %796 = vmatpush1.msra.mxu0 0.0
        %797 = vmatprep.subr.mxu0 0.0
        %798 = vmatpush1.msra.mxu0 0.0
        %799 = vmatprep.subr.mxu0 0.0
        %800 = vmatpush1.msra.mxu0 0.0
        %801 = vmatprep.subr.mxu0 0.0
        %802 = vmatpush1.msra.mxu0 0.0
        %803 = vmatprep.subr.mxu0 0.0
        %804 = vmatpush1.msra.mxu0 0.0
        %805 = vmatprep.subr.mxu0 0.0
        %806 = vmatpush1.msra.mxu0 0.0
        %807 = vmatprep.subr.mxu0 0.0
        %808 = vmatpush1.msra.mxu0 0.0
        %809 = vmatprep.subr.mxu0 0.0
        %810 = vmatpush1.msra.mxu0 0.0
        %811 = vmatprep.subr.mxu0 0.0
        %812 = vmatpush1.msra.mxu0 0.0
        %813 = vmatprep.mubr.f32.mxu0 0.0
        %814 = vmatmul.mubr.f32.gmra.mrb[0].mxu0 %v392
        %v815 = vpop.f32.mrb[0].mxu0
        %v816 = vadd.f32 %v388, %v815
        %v817 = vpop.f32.mrb[0].mxu0
        %v818 = vadd.f32 %v388, %v817
        %819 = vdwg.mxu0
        %820 = vmatprep.subr.mxu0 %v333
        %821 = vmatpush1.msra.mxu0 %v332
        %822 = vmatprep.subr.mxu0 %v365
        %823 = vmatpush1.msra.mxu0 %v364
        %824 = vmatprep.subr.mxu0 0.0
        %825 = vmatpush1.msra.mxu0 0.0
        %826 = vmatprep.subr.mxu0 0.0
        %827 = vmatpush1.msra.mxu0 0.0
        %828 = vmatprep.subr.mxu0 0.0
        %829 = vmatpush1.msra.mxu0 0.0
        %830 = vmatprep.subr.mxu0 0.0
        %831 = vmatpush1.msra.mxu0 0.0
        %832 = vmatprep.subr.mxu0 0.0
        %833 = vmatpush1.msra.mxu0 0.0
        %834 = vmatprep.subr.mxu0 0.0
        %835 = vmatpush1.msra.mxu0 0.0
        %836 = vmatprep.subr.mxu0 0.0
        %837 = vmatpush1.msra.mxu0 0.0
        %838 = vmatprep.subr.mxu0 0.0
        %839 = vmatpush1.msra.mxu0 0.0
        %840 = vmatprep.subr.mxu0 0.0
        %841 = vmatpush1.msra.mxu0 0.0
        %842 = vmatprep.subr.mxu0 0.0
        %843 = vmatpush1.msra.mxu0 0.0
        %844 = vmatprep.subr.mxu0 0.0
        %845 = vmatpush1.msra.mxu0 0.0
        %846 = vmatprep.subr.mxu0 0.0
        %847 = vmatpush1.msra.mxu0 0.0
        %848 = vmatprep.subr.mxu0 0.0
        %849 = vmatpush1.msra.mxu0 0.0
        %850 = vmatprep.subr.mxu0 0.0
        %851 = vmatpush1.msra.mxu0 0.0
        %852 = vmatprep.subr.mxu0 0.0
        %853 = vmatpush1.msra.mxu0 0.0
        %854 = vmatprep.subr.mxu0 0.0
        %855 = vmatpush1.msra.mxu0 0.0
        %856 = vmatprep.subr.mxu0 0.0
        %857 = vmatpush1.msra.mxu0 0.0
        %858 = vmatprep.subr.mxu0 0.0
        %859 = vmatpush1.msra.mxu0 0.0
        %860 = vmatprep.subr.mxu0 0.0
        %861 = vmatpush1.msra.mxu0 0.0
        %862 = vmatprep.subr.mxu0 0.0
        %863 = vmatpush1.msra.mxu0 0.0
        %864 = vmatprep.subr.mxu0 0.0
        %865 = vmatpush1.msra.mxu0 0.0
        %866 = vmatprep.subr.mxu0 0.0
        %867 = vmatpush1.msra.mxu0 0.0
        %868 = vmatprep.subr.mxu0 0.0
        %869 = vmatpush1.msra.mxu0 0.0
        %870 = vmatprep.subr.mxu0 0.0
        %871 = vmatpush1.msra.mxu0 0.0
        %872 = vmatprep.subr.mxu0 0.0
        %873 = vmatpush1.msra.mxu0 0.0
        %874 = vmatprep.subr.mxu0 0.0
        %875 = vmatpush1.msra.mxu0 0.0
        %876 = vmatprep.subr.mxu0 0.0
        %877 = vmatpush1.msra.mxu0 0.0
        %878 = vmatprep.subr.mxu0 0.0
        %879 = vmatpush1.msra.mxu0 0.0
        %880 = vmatprep.subr.mxu0 0.0
        %881 = vmatpush1.msra.mxu0 0.0
        %882 = vmatprep.subr.mxu0 0.0
        %883 = vmatpush1.msra.mxu0 0.0
        %884 = vmatprep.mubr.f32.mxu0 0.0
        %885 = vmatmul.mubr.f32.gmra.mrb[0].mxu0 %v392
        %v886 = vpop.f32.mrb[0].mxu0
        %v887 = vadd.f32 %v388, %v886
        %v888 = vpop.f32.mrb[0].mxu0
        %v889 = vadd.f32 %v388, %v888
        %890 = vdwg.mxu0
        %891 = vmatprep.subr.mxu0 %v335
        %892 = vmatpush1.msra.mxu0 %v334
        %893 = vmatprep.subr.mxu0 %v367
        %894 = vmatpush1.msra.mxu0 %v366
        %895 = vmatprep.subr.mxu0 0.0
        %896 = vmatpush1.msra.mxu0 0.0
        %897 = vmatprep.subr.mxu0 0.0
        %898 = vmatpush1.msra.mxu0 0.0
        %899 = vmatprep.subr.mxu0 0.0
        %900 = vmatpush1.msra.mxu0 0.0
        %901 = vmatprep.subr.mxu0 0.0
        %902 = vmatpush1.msra.mxu0 0.0
        %903 = vmatprep.subr.mxu0 0.0
        %904 = vmatpush1.msra.mxu0 0.0
        %905 = vmatprep.subr.mxu0 0.0
        %906 = vmatpush1.msra.mxu0 0.0
        %907 = vmatprep.subr.mxu0 0.0
        %908 = vmatpush1.msra.mxu0 0.0
        %909 = vmatprep.subr.mxu0 0.0
        %910 = vmatpush1.msra.mxu0 0.0
        %911 = vmatprep.subr.mxu0 0.0
        %912 = vmatpush1.msra.mxu0 0.0
        %913 = vmatprep.subr.mxu0 0.0
        %914 = vmatpush1.msra.mxu0 0.0
        %915 = vmatprep.subr.mxu0 0.0
        %916 = vmatpush1.msra.mxu0 0.0
        %917 = vmatprep.subr.mxu0 0.0
        %918 = vmatpush1.msra.mxu0 0.0
        %919 = vmatprep.subr.mxu0 0.0
        %920 = vmatpush1.msra.mxu0 0.0
        %921 = vmatprep.subr.mxu0 0.0
        %922 = vmatpush1.msra.mxu0 0.0
        %923 = vmatprep.subr.mxu0 0.0
        %924 = vmatpush1.msra.mxu0 0.0
        %925 = vmatprep.subr.mxu0 0.0
        %926 = vmatpush1.msra.mxu0 0.0
        %927 = vmatprep.subr.mxu0 0.0
        %928 = vmatpush1.msra.mxu0 0.0
        %929 = vmatprep.subr.mxu0 0.0
        %930 = vmatpush1.msra.mxu0 0.0
        %931 = vmatprep.subr.mxu0 0.0
        %932 = vmatpush1.msra.mxu0 0.0
        %933 = vmatprep.subr.mxu0 0.0
        %934 = vmatpush1.msra.mxu0 0.0
        %935 = vmatprep.subr.mxu0 0.0
        %936 = vmatpush1.msra.mxu0 0.0
        %937 = vmatprep.subr.mxu0 0.0
        %938 = vmatpush1.msra.mxu0 0.0
        %939 = vmatprep.subr.mxu0 0.0
        %940 = vmatpush1.msra.mxu0 0.0
        %941 = vmatprep.subr.mxu0 0.0
        %942 = vmatpush1.msra.mxu0 0.0
        %943 = vmatprep.subr.mxu0 0.0
        %944 = vmatpush1.msra.mxu0 0.0
        %945 = vmatprep.subr.mxu0 0.0
        %946 = vmatpush1.msra.mxu0 0.0
        %947 = vmatprep.subr.mxu0 0.0
        %948 = vmatpush1.msra.mxu0 0.0
        %949 = vmatprep.subr.mxu0 0.0
        %950 = vmatpush1.msra.mxu0 0.0
        %951 = vmatprep.subr.mxu0 0.0
        %952 = vmatpush1.msra.mxu0 0.0
        %953 = vmatprep.subr.mxu0 0.0
        %954 = vmatpush1.msra.mxu0 0.0
        %955 = vmatprep.mubr.f32.mxu0 0.0
        %956 = vmatmul.mubr.f32.gmra.mrb[0].mxu0 %v392
        %v957 = vpop.f32.mrb[0].mxu0
        %v958 = vadd.f32 %v388, %v957
        %v959 = vpop.f32.mrb[0].mxu0
        %v960 = vadd.f32 %v388, %v959
        %961 = vdwg.mxu0
        %962 = vmatprep.subr.mxu0 %v337
        %963 = vmatpush1.msra.mxu0 %v336
        %964 = vmatprep.subr.mxu0 %v369
        %965 = vmatpush1.msra.mxu0 %v368
        %966 = vmatprep.subr.mxu0 0.0
        %967 = vmatpush1.msra.mxu0 0.0
        %968 = vmatprep.subr.mxu0 0.0
        %969 = vmatpush1.msra.mxu0 0.0
        %970 = vmatprep.subr.mxu0 0.0
        %971 = vmatpush1.msra.mxu0 0.0
        %972 = vmatprep.subr.mxu0 0.0
        %973 = vmatpush1.msra.mxu0 0.0
        %974 = vmatprep.subr.mxu0 0.0
        %975 = vmatpush1.msra.mxu0 0.0
        %976 = vmatprep.subr.mxu0 0.0
        %977 = vmatpush1.msra.mxu0 0.0
        %978 = vmatprep.subr.mxu0 0.0
        %979 = vmatpush1.msra.mxu0 0.0
        %980 = vmatprep.subr.mxu0 0.0
        %981 = vmatpush1.msra.mxu0 0.0
        %982 = vmatprep.subr.mxu0 0.0
        %983 = vmatpush1.msra.mxu0 0.0
        %984 = vmatprep.subr.mxu0 0.0
        %985 = vmatpush1.msra.mxu0 0.0
        %986 = vmatprep.subr.mxu0 0.0
        %987 = vmatpush1.msra.mxu0 0.0
        %988 = vmatprep.subr.mxu0 0.0
        %989 = vmatpush1.msra.mxu0 0.0
        %990 = vmatprep.subr.mxu0 0.0
        %991 = vmatpush1.msra.mxu0 0.0
        %992 = vmatprep.subr.mxu0 0.0
        %993 = vmatpush1.msra.mxu0 0.0
        %994 = vmatprep.subr.mxu0 0.0
        %995 = vmatpush1.msra.mxu0 0.0
        %996 = vmatprep.subr.mxu0 0.0
        %997 = vmatpush1.msra.mxu0 0.0
        %998 = vmatprep.subr.mxu0 0.0
        %999 = vmatpush1.msra.mxu0 0.0
        %1000 = vmatprep.subr.mxu0 0.0
        %1001 = vmatpush1.msra.mxu0 0.0
        %1002 = vmatprep.subr.mxu0 0.0
        %1003 = vmatpush1.msra.mxu0 0.0
        %1004 = vmatprep.subr.mxu0 0.0
        %1005 = vmatpush1.msra.mxu0 0.0
        %1006 = vmatprep.subr.mxu0 0.0
        %1007 = vmatpush1.msra.mxu0 0.0
        %1008 = vmatprep.subr.mxu0 0.0
        %1009 = vmatpush1.msra.mxu0 0.0
        %1010 = vmatprep.subr.mxu0 0.0
        %1011 = vmatpush1.msra.mxu0 0.0
        %1012 = vmatprep.subr.mxu0 0.0
        %1013 = vmatpush1.msra.mxu0 0.0
        %1014 = vmatprep.subr.mxu0 0.0
        %1015 = vmatpush1.msra.mxu0 0.0
        %1016 = vmatprep.subr.mxu0 0.0
        %1017 = vmatpush1.msra.mxu0 0.0
        %1018 = vmatprep.subr.mxu0 0.0
        %1019 = vmatpush1.msra.mxu0 0.0
        %1020 = vmatprep.subr.mxu0 0.0
        %1021 = vmatpush1.msra.mxu0 0.0
        %1022 = vmatprep.subr.mxu0 0.0
        %1023 = vmatpush1.msra.mxu0 0.0
        %1024 = vmatprep.subr.mxu0 0.0
        %1025 = vmatpush1.msra.mxu0 0.0
        %1026 = vmatprep.mubr.f32.mxu0 0.0
        %1027 = vmatmul.mubr.f32.gmra.mrb[0].mxu0 %v392
        %v1028 = vpop.f32.mrb[0].mxu0
        %v1029 = vadd.f32 %v388, %v1028
        %v1030 = vpop.f32.mrb[0].mxu0
        %v1031 = vadd.f32 %v388, %v1030
        %1032 = vdwg.mxu0
        %1033 = vmatprep.subr.mxu0 %v339
        %1034 = vmatpush1.msra.mxu0 %v338
        %1035 = vmatprep.subr.mxu0 %v371
        %1036 = vmatpush1.msra.mxu0 %v370
        %1037 = vmatprep.subr.mxu0 0.0
        %1038 = vmatpush1.msra.mxu0 0.0
        %1039 = vmatprep.subr.mxu0 0.0
        %1040 = vmatpush1.msra.mxu0 0.0
        %1041 = vmatprep.subr.mxu0 0.0
        %1042 = vmatpush1.msra.mxu0 0.0
        %1043 = vmatprep.subr.mxu0 0.0
        %1044 = vmatpush1.msra.mxu0 0.0
        %1045 = vmatprep.subr.mxu0 0.0
        %1046 = vmatpush1.msra.mxu0 0.0
        %1047 = vmatprep.subr.mxu0 0.0
        %1048 = vmatpush1.msra.mxu0 0.0
        %1049 = vmatprep.subr.mxu0 0.0
        %1050 = vmatpush1.msra.mxu0 0.0
        %1051 = vmatprep.subr.mxu0 0.0
        %1052 = vmatpush1.msra.mxu0 0.0
        %1053 = vmatprep.subr.mxu0 0.0
        %1054 = vmatpush1.msra.mxu0 0.0
        %1055 = vmatprep.subr.mxu0 0.0
        %1056 = vmatpush1.msra.mxu0 0.0
        %1057 = vmatprep.subr.mxu0 0.0
        %1058 = vmatpush1.msra.mxu0 0.0
        %1059 = vmatprep.subr.mxu0 0.0
        %1060 = vmatpush1.msra.mxu0 0.0
        %1061 = vmatprep.subr.mxu0 0.0
        %1062 = vmatpush1.msra.mxu0 0.0
        %1063 = vmatprep.subr.mxu0 0.0
        %1064 = vmatpush1.msra.mxu0 0.0
        %1065 = vmatprep.subr.mxu0 0.0
        %1066 = vmatpush1.msra.mxu0 0.0
        %1067 = vmatprep.subr.mxu0 0.0
        %1068 = vmatpush1.msra.mxu0 0.0
        %1069 = vmatprep.subr.mxu0 0.0
        %1070 = vmatpush1.msra.mxu0 0.0
        %1071 = vmatprep.subr.mxu0 0.0
        %1072 = vmatpush1.msra.mxu0 0.0
        %1073 = vmatprep.subr.mxu0 0.0
        %1074 = vmatpush1.msra.mxu0 0.0
        %1075 = vmatprep.subr.mxu0 0.0
        %1076 = vmatpush1.msra.mxu0 0.0
        %1077 = vmatprep.subr.mxu0 0.0
        %1078 = vmatpush1.msra.mxu0 0.0
        %1079 = vmatprep.subr.mxu0 0.0
        %1080 = vmatpush1.msra.mxu0 0.0
        %1081 = vmatprep.subr.mxu0 0.0
        %1082 = vmatpush1.msra.mxu0 0.0
        %1083 = vmatprep.subr.mxu0 0.0
        %1084 = vmatpush1.msra.mxu0 0.0
        %1085 = vmatprep.subr.mxu0 0.0
        %1086 = vmatpush1.msra.mxu0 0.0
        %1087 = vmatprep.subr.mxu0 0.0
        %1088 = vmatpush1.msra.mxu0 0.0
        %1089 = vmatprep.subr.mxu0 0.0
        %1090 = vmatpush1.msra.mxu0 0.0
        %1091 = vmatprep.subr.mxu0 0.0
        %1092 = vmatpush1.msra.mxu0 0.0
        %1093 = vmatprep.subr.mxu0 0.0
        %1094 = vmatpush1.msra.mxu0 0.0
        %1095 = vmatprep.subr.mxu0 0.0
        %1096 = vmatpush1.msra.mxu0 0.0
        %1097 = vmatprep.mubr.f32.mxu0 0.0
        %1098 = vmatmul.mubr.f32.gmra.mrb[0].mxu0 %v392
        %v1099 = vpop.f32.mrb[0].mxu0
        %v1100 = vadd.f32 %v388, %v1099
        %v1101 = vpop.f32.mrb[0].mxu0
        %v1102 = vadd.f32 %v388, %v1101
        %1103 = vdwg.mxu0
        %1104 = vmatprep.subr.mxu0 %v341
        %1105 = vmatpush1.msra.mxu0 %v340
        %1106 = vmatprep.subr.mxu0 %v373
        %1107 = vmatpush1.msra.mxu0 %v372
        %1108 = vmatprep.subr.mxu0 0.0
        %1109 = vmatpush1.msra.mxu0 0.0
        %1110 = vmatprep.subr.mxu0 0.0
        %1111 = vmatpush1.msra.mxu0 0.0
        %1112 = vmatprep.subr.mxu0 0.0
        %1113 = vmatpush1.msra.mxu0 0.0
        %1114 = vmatprep.subr.mxu0 0.0
        %1115 = vmatpush1.msra.mxu0 0.0
        %1116 = vmatprep.subr.mxu0 0.0
        %1117 = vmatpush1.msra.mxu0 0.0
        %1118 = vmatprep.subr.mxu0 0.0
        %1119 = vmatpush1.msra.mxu0 0.0
        %1120 = vmatprep.subr.mxu0 0.0
        %1121 = vmatpush1.msra.mxu0 0.0
        %1122 = vmatprep.subr.mxu0 0.0
        %1123 = vmatpush1.msra.mxu0 0.0
        %1124 = vmatprep.subr.mxu0 0.0
        %1125 = vmatpush1.msra.mxu0 0.0
        %1126 = vmatprep.subr.mxu0 0.0
        %1127 = vmatpush1.msra.mxu0 0.0
        %1128 = vmatprep.subr.mxu0 0.0
        %1129 = vmatpush1.msra.mxu0 0.0
        %1130 = vmatprep.subr.mxu0 0.0
        %1131 = vmatpush1.msra.mxu0 0.0
        %1132 = vmatprep.subr.mxu0 0.0
        %1133 = vmatpush1.msra.mxu0 0.0
        %1134 = vmatprep.subr.mxu0 0.0
        %1135 = vmatpush1.msra.mxu0 0.0
        %1136 = vmatprep.subr.mxu0 0.0
        %1137 = vmatpush1.msra.mxu0 0.0
        %1138 = vmatprep.subr.mxu0 0.0
        %1139 = vmatpush1.msra.mxu0 0.0
        %1140 = vmatprep.subr.mxu0 0.0
        %1141 = vmatpush1.msra.mxu0 0.0
        %1142 = vmatprep.subr.mxu0 0.0
        %1143 = vmatpush1.msra.mxu0 0.0
        %1144 = vmatprep.subr.mxu0 0.0
        %1145 = vmatpush1.msra.mxu0 0.0
        %1146 = vmatprep.subr.mxu0 0.0
        %1147 = vmatpush1.msra.mxu0 0.0
        %1148 = vmatprep.subr.mxu0 0.0
        %1149 = vmatpush1.msra.mxu0 0.0
        %1150 = vmatprep.subr.mxu0 0.0
        %1151 = vmatpush1.msra.mxu0 0.0
        %1152 = vmatprep.subr.mxu0 0.0
        %1153 = vmatpush1.msra.mxu0 0.0
        %1154 = vmatprep.subr.mxu0 0.0
        %1155 = vmatpush1.msra.mxu0 0.0
        %1156 = vmatprep.subr.mxu0 0.0
        %1157 = vmatpush1.msra.mxu0 0.0
        %1158 = vmatprep.subr.mxu0 0.0
        %1159 = vmatpush1.msra.mxu0 0.0
        %1160 = vmatprep.subr.mxu0 0.0
        %1161 = vmatpush1.msra.mxu0 0.0
        %1162 = vmatprep.subr.mxu0 0.0
        %1163 = vmatpush1.msra.mxu0 0.0
        %1164 = vmatprep.subr.mxu0 0.0
        %1165 = vmatpush1.msra.mxu0 0.0
        %1166 = vmatprep.subr.mxu0 0.0
        %1167 = vmatpush1.msra.mxu0 0.0
        %1168 = vmatprep.mubr.f32.mxu0 0.0
        %1169 = vmatmul.mubr.f32.gmra.mrb[0].mxu0 %v392
        %v1170 = vpop.f32.mrb[0].mxu0
        %v1171 = vadd.f32 %v388, %v1170
        %v1172 = vpop.f32.mrb[0].mxu0
        %v1173 = vadd.f32 %v388, %v1172
        %1174 = vdwg.mxu0
        %1175 = vmatprep.subr.mxu0 %v343
        %1176 = vmatpush1.msra.mxu0 %v342
        %1177 = vmatprep.subr.mxu0 %v375
        %1178 = vmatpush1.msra.mxu0 %v374
        %1179 = vmatprep.subr.mxu0 0.0
        %1180 = vmatpush1.msra.mxu0 0.0
        %1181 = vmatprep.subr.mxu0 0.0
        %1182 = vmatpush1.msra.mxu0 0.0
        %1183 = vmatprep.subr.mxu0 0.0
        %1184 = vmatpush1.msra.mxu0 0.0
        %1185 = vmatprep.subr.mxu0 0.0
        %1186 = vmatpush1.msra.mxu0 0.0
        %1187 = vmatprep.subr.mxu0 0.0
        %1188 = vmatpush1.msra.mxu0 0.0
        %1189 = vmatprep.subr.mxu0 0.0
        %1190 = vmatpush1.msra.mxu0 0.0
        %1191 = vmatprep.subr.mxu0 0.0
        %1192 = vmatpush1.msra.mxu0 0.0
        %1193 = vmatprep.subr.mxu0 0.0
        %1194 = vmatpush1.msra.mxu0 0.0
        %1195 = vmatprep.subr.mxu0 0.0
        %1196 = vmatpush1.msra.mxu0 0.0
        %1197 = vmatprep.subr.mxu0 0.0
        %1198 = vmatpush1.msra.mxu0 0.0
        %1199 = vmatprep.subr.mxu0 0.0
        %1200 = vmatpush1.msra.mxu0 0.0
        %1201 = vmatprep.subr.mxu0 0.0
        %1202 = vmatpush1.msra.mxu0 0.0
        %1203 = vmatprep.subr.mxu0 0.0
        %1204 = vmatpush1.msra.mxu0 0.0
        %1205 = vmatprep.subr.mxu0 0.0
        %1206 = vmatpush1.msra.mxu0 0.0
        %1207 = vmatprep.subr.mxu0 0.0
        %1208 = vmatpush1.msra.mxu0 0.0
        %1209 = vmatprep.subr.mxu0 0.0
        %1210 = vmatpush1.msra.mxu0 0.0
        %1211 = vmatprep.subr.mxu0 0.0
        %1212 = vmatpush1.msra.mxu0 0.0
        %1213 = vmatprep.subr.mxu0 0.0
        %1214 = vmatpush1.msra.mxu0 0.0
        %1215 = vmatprep.subr.mxu0 0.0
        %1216 = vmatpush1.msra.mxu0 0.0
        %1217 = vmatprep.subr.mxu0 0.0
        %1218 = vmatpush1.msra.mxu0 0.0
        %1219 = vmatprep.subr.mxu0 0.0
        %1220 = vmatpush1.msra.mxu0 0.0
        %1221 = vmatprep.subr.mxu0 0.0
        %1222 = vmatpush1.msra.mxu0 0.0
        %1223 = vmatprep.subr.mxu0 0.0
        %1224 = vmatpush1.msra.mxu0 0.0
        %1225 = vmatprep.subr.mxu0 0.0
        %1226 = vmatpush1.msra.mxu0 0.0
        %1227 = vmatprep.subr.mxu0 0.0
        %1228 = vmatpush1.msra.mxu0 0.0
        %1229 = vmatprep.subr.mxu0 0.0
        %1230 = vmatpush1.msra.mxu0 0.0
        %1231 = vmatprep.subr.mxu0 0.0
        %1232 = vmatpush1.msra.mxu0 0.0
        %1233 = vmatprep.subr.mxu0 0.0
        %1234 = vmatpush1.msra.mxu0 0.0
        %1235 = vmatprep.subr.mxu0 0.0
        %1236 = vmatpush1.msra.mxu0 0.0
        %1237 = vmatprep.subr.mxu0 0.0
        %1238 = vmatpush1.msra.mxu0 0.0
        %1239 = vmatprep.mubr.f32.mxu0 0.0
        %1240 = vmatmul.mubr.f32.gmra.mrb[0].mxu0 %v392
        %v1241 = vpop.f32.mrb[0].mxu0
        %v1242 = vadd.f32 %v388, %v1241
        %v1243 = vpop.f32.mrb[0].mxu0
        %v1244 = vadd.f32 %v388, %v1243
        %1245 = vdwg.mxu0
        %1246 = vmatprep.subr.mxu0 %v345
        %1247 = vmatpush1.msra.mxu0 %v344
        %1248 = vmatprep.subr.mxu0 %v377
        %1249 = vmatpush1.msra.mxu0 %v376
        %1250 = vmatprep.subr.mxu0 0.0
        %1251 = vmatpush1.msra.mxu0 0.0
        %1252 = vmatprep.subr.mxu0 0.0
        %1253 = vmatpush1.msra.mxu0 0.0
        %1254 = vmatprep.subr.mxu0 0.0
        %1255 = vmatpush1.msra.mxu0 0.0
        %1256 = vmatprep.subr.mxu0 0.0
        %1257 = vmatpush1.msra.mxu0 0.0
        %1258 = vmatprep.subr.mxu0 0.0
        %1259 = vmatpush1.msra.mxu0 0.0
        %1260 = vmatprep.subr.mxu0 0.0
        %1261 = vmatpush1.msra.mxu0 0.0
        %1262 = vmatprep.subr.mxu0 0.0
        %1263 = vmatpush1.msra.mxu0 0.0
        %1264 = vmatprep.subr.mxu0 0.0
        %1265 = vmatpush1.msra.mxu0 0.0
        %1266 = vmatprep.subr.mxu0 0.0
        %1267 = vmatpush1.msra.mxu0 0.0
        %1268 = vmatprep.subr.mxu0 0.0
        %1269 = vmatpush1.msra.mxu0 0.0
        %1270 = vmatprep.subr.mxu0 0.0
        %1271 = vmatpush1.msra.mxu0 0.0
        %1272 = vmatprep.subr.mxu0 0.0
        %1273 = vmatpush1.msra.mxu0 0.0
        %1274 = vmatprep.subr.mxu0 0.0
        %1275 = vmatpush1.msra.mxu0 0.0
        %1276 = vmatprep.subr.mxu0 0.0
        %1277 = vmatpush1.msra.mxu0 0.0
        %1278 = vmatprep.subr.mxu0 0.0
        %1279 = vmatpush1.msra.mxu0 0.0
        %1280 = vmatprep.subr.mxu0 0.0
        %1281 = vmatpush1.msra.mxu0 0.0
        %1282 = vmatprep.subr.mxu0 0.0
        %1283 = vmatpush1.msra.mxu0 0.0
        %1284 = vmatprep.subr.mxu0 0.0
        %1285 = vmatpush1.msra.mxu0 0.0
        %1286 = vmatprep.subr.mxu0 0.0
        %1287 = vmatpush1.msra.mxu0 0.0
        %1288 = vmatprep.subr.mxu0 0.0
        %1289 = vmatpush1.msra.mxu0 0.0
        %1290 = vmatprep.subr.mxu0 0.0
        %1291 = vmatpush1.msra.mxu0 0.0
        %1292 = vmatprep.subr.mxu0 0.0
        %1293 = vmatpush1.msra.mxu0 0.0
        %1294 = vmatprep.subr.mxu0 0.0
        %1295 = vmatpush1.msra.mxu0 0.0
        %1296 = vmatprep.subr.mxu0 0.0
        %1297 = vmatpush1.msra.mxu0 0.0
        %1298 = vmatprep.subr.mxu0 0.0
        %1299 = vmatpush1.msra.mxu0 0.0
        %1300 = vmatprep.subr.mxu0 0.0
        %1301 = vmatpush1.msra.mxu0 0.0
        %1302 = vmatprep.subr.mxu0 0.0
        %1303 = vmatpush1.msra.mxu0 0.0
        %1304 = vmatprep.subr.mxu0 0.0
        %1305 = vmatpush1.msra.mxu0 0.0
        %1306 = vmatprep.subr.mxu0 0.0
        %1307 = vmatpush1.msra.mxu0 0.0
        %1308 = vmatprep.subr.mxu0 0.0
        %1309 = vmatpush1.msra.mxu0 0.0
        %1310 = vmatprep.mubr.f32.mxu0 0.0
        %1311 = vmatmul.mubr.f32.gmra.mrb[0].mxu0 %v392
        %v1312 = vpop.f32.mrb[0].mxu0
        %v1313 = vadd.f32 %v388, %v1312
        %v1314 = vpop.f32.mrb[0].mxu0
        %v1315 = vadd.f32 %v388, %v1314
        %1316 = vdwg.mxu0
        %1317 = vmatprep.subr.mxu0 %v347
        %1318 = vmatpush1.msra.mxu0 %v346
        %1319 = vmatprep.subr.mxu0 %v379
        %1320 = vmatpush1.msra.mxu0 %v378
        %1321 = vmatprep.subr.mxu0 0.0
        %1322 = vmatpush1.msra.mxu0 0.0
        %1323 = vmatprep.subr.mxu0 0.0
        %1324 = vmatpush1.msra.mxu0 0.0
        %1325 = vmatprep.subr.mxu0 0.0
        %1326 = vmatpush1.msra.mxu0 0.0
        %1327 = vmatprep.subr.mxu0 0.0
        %1328 = vmatpush1.msra.mxu0 0.0
        %1329 = vmatprep.subr.mxu0 0.0
        %1330 = vmatpush1.msra.mxu0 0.0
        %1331 = vmatprep.subr.mxu0 0.0
        %1332 = vmatpush1.msra.mxu0 0.0
        %1333 = vmatprep.subr.mxu0 0.0
        %1334 = vmatpush1.msra.mxu0 0.0
        %1335 = vmatprep.subr.mxu0 0.0
        %1336 = vmatpush1.msra.mxu0 0.0
        %1337 = vmatprep.subr.mxu0 0.0
        %1338 = vmatpush1.msra.mxu0 0.0
        %1339 = vmatprep.subr.mxu0 0.0
        %1340 = vmatpush1.msra.mxu0 0.0
        %1341 = vmatprep.subr.mxu0 0.0
        %1342 = vmatpush1.msra.mxu0 0.0
        %1343 = vmatprep.subr.mxu0 0.0
        %1344 = vmatpush1.msra.mxu0 0.0
        %1345 = vmatprep.subr.mxu0 0.0
        %1346 = vmatpush1.msra.mxu0 0.0
        %1347 = vmatprep.subr.mxu0 0.0
        %1348 = vmatpush1.msra.mxu0 0.0
        %1349 = vmatprep.subr.mxu0 0.0
        %1350 = vmatpush1.msra.mxu0 0.0
        %1351 = vmatprep.subr.mxu0 0.0
        %1352 = vmatpush1.msra.mxu0 0.0
        %1353 = vmatprep.subr.mxu0 0.0
        %1354 = vmatpush1.msra.mxu0 0.0
        %1355 = vmatprep.subr.mxu0 0.0
        %1356 = vmatpush1.msra.mxu0 0.0
        %1357 = vmatprep.subr.mxu0 0.0
        %1358 = vmatpush1.msra.mxu0 0.0
        %1359 = vmatprep.subr.mxu0 0.0
        %1360 = vmatpush1.msra.mxu0 0.0
        %1361 = vmatprep.subr.mxu0 0.0
        %1362 = vmatpush1.msra.mxu0 0.0
        %1363 = vmatprep.subr.mxu0 0.0
        %1364 = vmatpush1.msra.mxu0 0.0
        %1365 = vmatprep.subr.mxu0 0.0
        %1366 = vmatpush1.msra.mxu0 0.0
        %1367 = vmatprep.subr.mxu0 0.0
        %1368 = vmatpush1.msra.mxu0 0.0
        %1369 = vmatprep.subr.mxu0 0.0
        %1370 = vmatpush1.msra.mxu0 0.0
        %1371 = vmatprep.subr.mxu0 0.0
        %1372 = vmatpush1.msra.mxu0 0.0
        %1373 = vmatprep.subr.mxu0 0.0
        %1374 = vmatpush1.msra.mxu0 0.0
        %1375 = vmatprep.subr.mxu0 0.0
        %1376 = vmatpush1.msra.mxu0 0.0
        %1377 = vmatprep.subr.mxu0 0.0
        %1378 = vmatpush1.msra.mxu0 0.0
        %1379 = vmatprep.subr.mxu0 0.0
        %1380 = vmatpush1.msra.mxu0 0.0
        %1381 = vmatprep.mubr.f32.mxu0 0.0
        %1382 = vmatmul.mubr.f32.gmra.mrb[0].mxu0 %v392
        %v1383 = vpop.f32.mrb[0].mxu0
        %v1384 = vadd.f32 %v388, %v1383
        %v1385 = vpop.f32.mrb[0].mxu0
        %v1386 = vadd.f32 %v388, %v1385
        %1387 = vdwg.mxu0
        %1388 = vmatprep.subr.mxu0 %v349
        %1389 = vmatpush1.msra.mxu0 %v348
        %1390 = vmatprep.subr.mxu0 %v381
        %1391 = vmatpush1.msra.mxu0 %v380
        %1392 = vmatprep.subr.mxu0 0.0
        %1393 = vmatpush1.msra.mxu0 0.0
        %1394 = vmatprep.subr.mxu0 0.0
        %1395 = vmatpush1.msra.mxu0 0.0
        %1396 = vmatprep.subr.mxu0 0.0
        %1397 = vmatpush1.msra.mxu0 0.0
        %1398 = vmatprep.subr.mxu0 0.0
        %1399 = vmatpush1.msra.mxu0 0.0
        %1400 = vmatprep.subr.mxu0 0.0
        %1401 = vmatpush1.msra.mxu0 0.0
        %1402 = vmatprep.subr.mxu0 0.0
        %1403 = vmatpush1.msra.mxu0 0.0
        %1404 = vmatprep.subr.mxu0 0.0
        %1405 = vmatpush1.msra.mxu0 0.0
        %1406 = vmatprep.subr.mxu0 0.0
        %1407 = vmatpush1.msra.mxu0 0.0
        %1408 = vmatprep.subr.mxu0 0.0
        %1409 = vmatpush1.msra.mxu0 0.0
        %1410 = vmatprep.subr.mxu0 0.0
        %1411 = vmatpush1.msra.mxu0 0.0
        %1412 = vmatprep.subr.mxu0 0.0
        %1413 = vmatpush1.msra.mxu0 0.0
        %1414 = vmatprep.subr.mxu0 0.0
        %1415 = vmatpush1.msra.mxu0 0.0
        %1416 = vmatprep.subr.mxu0 0.0
        %1417 = vmatpush1.msra.mxu0 0.0
        %1418 = vmatprep.subr.mxu0 0.0
        %1419 = vmatpush1.msra.mxu0 0.0
        %1420 = vmatprep.subr.mxu0 0.0
        %1421 = vmatpush1.msra.mxu0 0.0
        %1422 = vmatprep.subr.mxu0 0.0
        %1423 = vmatpush1.msra.mxu0 0.0
        %1424 = vmatprep.subr.mxu0 0.0
        %1425 = vmatpush1.msra.mxu0 0.0
        %1426 = vmatprep.subr.mxu0 0.0
        %1427 = vmatpush1.msra.mxu0 0.0
        %1428 = vmatprep.subr.mxu0 0.0
        %1429 = vmatpush1.msra.mxu0 0.0
        %1430 = vmatprep.subr.mxu0 0.0
        %1431 = vmatpush1.msra.mxu0 0.0
        %1432 = vmatprep.subr.mxu0 0.0
        %1433 = vmatpush1.msra.mxu0 0.0
        %1434 = vmatprep.subr.mxu0 0.0
        %1435 = vmatpush1.msra.mxu0 0.0
        %1436 = vmatprep.subr.mxu0 0.0
        %1437 = vmatpush1.msra.mxu0 0.0
        %1438 = vmatprep.subr.mxu0 0.0
        %1439 = vmatpush1.msra.mxu0 0.0
        %1440 = vmatprep.subr.mxu0 0.0
        %1441 = vmatpush1.msra.mxu0 0.0
        %1442 = vmatprep.subr.mxu0 0.0
        %1443 = vmatpush1.msra.mxu0 0.0
        %1444 = vmatprep.subr.mxu0 0.0
        %1445 = vmatpush1.msra.mxu0 0.0
        %1446 = vmatprep.subr.mxu0 0.0
        %1447 = vmatpush1.msra.mxu0 0.0
        %1448 = vmatprep.subr.mxu0 0.0
        %1449 = vmatpush1.msra.mxu0 0.0
        %1450 = vmatprep.subr.mxu0 0.0
        %1451 = vmatpush1.msra.mxu0 0.0
        %1452 = vmatprep.mubr.f32.mxu0 0.0
        %1453 = vmatmul.mubr.f32.gmra.mrb[0].mxu0 %v392
        %v1454 = vpop.f32.mrb[0].mxu0
        %v1455 = vadd.f32 %v388, %v1454
        %v1456 = vpop.f32.mrb[0].mxu0
        %v1457 = vadd.f32 %v388, %v1456
        %1458 = vdwg.mxu0
        %1459 = vmatprep.subr.mxu0 %v351
        %1460 = vmatpush1.msra.mxu0 %v350
        %1461 = vmatprep.subr.mxu0 %v383
        %1462 = vmatpush1.msra.mxu0 %v382
        %1463 = vmatprep.subr.mxu0 0.0
        %1464 = vmatpush1.msra.mxu0 0.0
        %1465 = vmatprep.subr.mxu0 0.0
        %1466 = vmatpush1.msra.mxu0 0.0
        %1467 = vmatprep.subr.mxu0 0.0
        %1468 = vmatpush1.msra.mxu0 0.0
        %1469 = vmatprep.subr.mxu0 0.0
        %1470 = vmatpush1.msra.mxu0 0.0
        %1471 = vmatprep.subr.mxu0 0.0
        %1472 = vmatpush1.msra.mxu0 0.0
        %1473 = vmatprep.subr.mxu0 0.0
        %1474 = vmatpush1.msra.mxu0 0.0
        %1475 = vmatprep.subr.mxu0 0.0
        %1476 = vmatpush1.msra.mxu0 0.0
        %1477 = vmatprep.subr.mxu0 0.0
        %1478 = vmatpush1.msra.mxu0 0.0
        %1479 = vmatprep.subr.mxu0 0.0
        %1480 = vmatpush1.msra.mxu0 0.0
        %1481 = vmatprep.subr.mxu0 0.0
        %1482 = vmatpush1.msra.mxu0 0.0
        %1483 = vmatprep.subr.mxu0 0.0
        %1484 = vmatpush1.msra.mxu0 0.0
        %1485 = vmatprep.subr.mxu0 0.0
        %1486 = vmatpush1.msra.mxu0 0.0
        %1487 = vmatprep.subr.mxu0 0.0
        %1488 = vmatpush1.msra.mxu0 0.0
        %1489 = vmatprep.subr.mxu0 0.0
        %1490 = vmatpush1.msra.mxu0 0.0
        %1491 = vmatprep.subr.mxu0 0.0
        %1492 = vmatpush1.msra.mxu0 0.0
        %1493 = vmatprep.subr.mxu0 0.0
        %1494 = vmatpush1.msra.mxu0 0.0
        %1495 = vmatprep.subr.mxu0 0.0
        %1496 = vmatpush1.msra.mxu0 0.0
        %1497 = vmatprep.subr.mxu0 0.0
        %1498 = vmatpush1.msra.mxu0 0.0
        %1499 = vmatprep.subr.mxu0 0.0
        %1500 = vmatpush1.msra.mxu0 0.0
        %1501 = vmatprep.subr.mxu0 0.0
        %1502 = vmatpush1.msra.mxu0 0.0
        %1503 = vmatprep.subr.mxu0 0.0
        %1504 = vmatpush1.msra.mxu0 0.0
        %1505 = vmatprep.subr.mxu0 0.0
        %1506 = vmatpush1.msra.mxu0 0.0
        %1507 = vmatprep.subr.mxu0 0.0
        %1508 = vmatpush1.msra.mxu0 0.0
        %1509 = vmatprep.subr.mxu0 0.0
        %1510 = vmatpush1.msra.mxu0 0.0
        %1511 = vmatprep.subr.mxu0 0.0
        %1512 = vmatpush1.msra.mxu0 0.0
        %1513 = vmatprep.subr.mxu0 0.0
        %1514 = vmatpush1.msra.mxu0 0.0
        %1515 = vmatprep.subr.mxu0 0.0
        %1516 = vmatpush1.msra.mxu0 0.0
        %1517 = vmatprep.subr.mxu0 0.0
        %1518 = vmatpush1.msra.mxu0 0.0
        %1519 = vmatprep.subr.mxu0 0.0
        %1520 = vmatpush1.msra.mxu0 0.0
        %1521 = vmatprep.subr.mxu0 0.0
        %1522 = vmatpush1.msra.mxu0 0.0
        %1523 = vmatprep.mubr.f32.mxu0 0.0
        %1524 = vmatmul.mubr.f32.gmra.mrb[0].mxu0 %v392
        %v1525 = vpop.f32.mrb[0].mxu0
        %v1526 = vadd.f32 %v388, %v1525
        %v1527 = vpop.f32.mrb[0].mxu0
        %v1528 = vadd.f32 %v388, %v1527
        %1529 = vdwg.mxu0
        %vm1530 = vcmp.ge.f32.partialorder %v461, 0.0
        %vm1531 = vcmp.ge.f32.partialorder %v463, 0.0
        %vm1532 = vcmp.ge.f32.partialorder %v532, 0.0
        %vm1533 = vcmp.ge.f32.partialorder %v534, 0.0
        %vm1534 = vcmp.ge.f32.partialorder %v603, 0.0
        %vm1535 = vcmp.ge.f32.partialorder %v605, 0.0
        %vm1536 = vcmp.ge.f32.partialorder %v674, 0.0
        %vm1537 = vcmp.ge.f32.partialorder %v676, 0.0
        %vm1538 = vcmp.ge.f32.partialorder %v745, 0.0
        %vm1539 = vcmp.ge.f32.partialorder %v747, 0.0
        %vm1540 = vcmp.ge.f32.partialorder %v816, 0.0
        %vm1541 = vcmp.ge.f32.partialorder %v818, 0.0
        %vm1542 = vcmp.ge.f32.partialorder %v887, 0.0
        %vm1543 = vcmp.ge.f32.partialorder %v889, 0.0
        %vm1544 = vcmp.ge.f32.partialorder %v958, 0.0
        %vm1545 = vcmp.ge.f32.partialorder %v960, 0.0
        %vm1546 = vcmp.ge.f32.partialorder %v1029, 0.0
        %vm1547 = vcmp.ge.f32.partialorder %v1031, 0.0
        %vm1548 = vcmp.ge.f32.partialorder %v1100, 0.0
        %vm1549 = vcmp.ge.f32.partialorder %v1102, 0.0
        %vm1550 = vcmp.ge.f32.partialorder %v1171, 0.0
        %vm1551 = vcmp.ge.f32.partialorder %v1173, 0.0
        %vm1552 = vcmp.ge.f32.partialorder %v1242, 0.0
        %vm1553 = vcmp.ge.f32.partialorder %v1244, 0.0
        %vm1554 = vcmp.ge.f32.partialorder %v1313, 0.0
        %vm1555 = vcmp.ge.f32.partialorder %v1315, 0.0
        %vm1556 = vcmp.ge.f32.partialorder %v1384, 0.0
        %vm1557 = vcmp.ge.f32.partialorder %v1386, 0.0
        %vm1558 = vcmp.ge.f32.partialorder %v1455, 0.0
        %vm1559 = vcmp.ge.f32.partialorder %v1457, 0.0
        %vm1560 = vcmp.ge.f32.partialorder %v1526, 0.0
        %vm1561 = vcmp.ge.f32.partialorder %v1528, 0.0
        %v1562 = vmul.f32 %v461, 0.2
        %v1563 = vmul.f32 %v463, 0.2
        %v1564 = vmul.f32 %v532, 0.2
        %v1565 = vmul.f32 %v534, 0.2
        %v1566 = vmul.f32 %v603, 0.2
        %v1567 = vmul.f32 %v605, 0.2
        %v1568 = vmul.f32 %v674, 0.2
        %v1569 = vmul.f32 %v676, 0.2
        %v1570 = vmul.f32 %v745, 0.2
        %v1571 = vmul.f32 %v747, 0.2
        %v1572 = vmul.f32 %v816, 0.2
        %v1573 = vmul.f32 %v818, 0.2
        %v1574 = vmul.f32 %v887, 0.2
        %v1575 = vmul.f32 %v889, 0.2
        %v1576 = vmul.f32 %v958, 0.2
        %v1577 = vmul.f32 %v960, 0.2
        %v1578 = vmul.f32 %v1029, 0.2
        %v1579 = vmul.f32 %v1031, 0.2
        %v1580 = vmul.f32 %v1100, 0.2
        %v1581 = vmul.f32 %v1102, 0.2
        %v1582 = vmul.f32 %v1171, 0.2
        %v1583 = vmul.f32 %v1173, 0.2
        %v1584 = vmul.f32 %v1242, 0.2
        %v1585 = vmul.f32 %v1244, 0.2
        %v1586 = vmul.f32 %v1313, 0.2
        %v1587 = vmul.f32 %v1315, 0.2
        %v1588 = vmul.f32 %v1384, 0.2
        %v1589 = vmul.f32 %v1386, 0.2
        %v1590 = vmul.f32 %v1455, 0.2
        %v1591 = vmul.f32 %v1457, 0.2
        %v1592 = vmul.f32 %v1526, 0.2
        %v1593 = vmul.f32 %v1528, 0.2
        %v1594 = vsel %vm1530, %v461, %v1562
        %v1595 = vsel %vm1531, %v463, %v1563
        %v1596 = vsel %vm1532, %v532, %v1564
        %v1597 = vsel %vm1533, %v534, %v1565
        %v1598 = vsel %vm1534, %v603, %v1566
        %v1599 = vsel %vm1535, %v605, %v1567
        %v1600 = vsel %vm1536, %v674, %v1568
        %v1601 = vsel %vm1537, %v676, %v1569
        %v1602 = vsel %vm1538, %v745, %v1570
        %v1603 = vsel %vm1539, %v747, %v1571
        %v1604 = vsel %vm1540, %v816, %v1572
        %v1605 = vsel %vm1541, %v818, %v1573
        %v1606 = vsel %vm1542, %v887, %v1574
        %v1607 = vsel %vm1543, %v889, %v1575
        %v1608 = vsel %vm1544, %v958, %v1576
        %v1609 = vsel %vm1545, %v960, %v1577
        %v1610 = vsel %vm1546, %v1029, %v1578
        %v1611 = vsel %vm1547, %v1031, %v1579
        %v1612 = vsel %vm1548, %v1100, %v1580
        %v1613 = vsel %vm1549, %v1102, %v1581
        %v1614 = vsel %vm1550, %v1171, %v1582
        %v1615 = vsel %vm1551, %v1173, %v1583
        %v1616 = vsel %vm1552, %v1242, %v1584
        %v1617 = vsel %vm1553, %v1244, %v1585
        %v1618 = vsel %vm1554, %v1313, %v1586
        %v1619 = vsel %vm1555, %v1315, %v1587
        %v1620 = vsel %vm1556, %v1384, %v1588
        %v1621 = vsel %vm1557, %v1386, %v1589
        %v1622 = vsel %vm1558, %v1455, %v1590
        %v1623 = vsel %vm1559, %v1457, %v1591
        %v1624 = vsel %vm1560, %v1526, %v1592
        %v1625 = vsel %vm1561, %v1528, %v1593
        %1626 = vst [vmem:[%s317] sm:$0xff] %v1594
        %1627 = vst [vmem:[%s317 + $0x8] sm:$0xff] %v1595
        %1628 = vst [vmem:[%s317 + $0x10] sm:$0xff] %v1596
        %1629 = vst [vmem:[%s317 + $0x18] sm:$0xff] %v1597
        %1630 = vst [vmem:[%s317 + $0x20] sm:$0xff] %v1598
        %1631 = vst [vmem:[%s317 + $0x28] sm:$0xff] %v1599
        %1632 = vst [vmem:[%s317 + $0x30] sm:$0xff] %v1600
        %1633 = vst [vmem:[%s317 + $0x38] sm:$0xff] %v1601
        %1634 = vst [vmem:[%s317 + $0x40] sm:$0xff] %v1602
        %1635 = vst [vmem:[%s317 + $0x48] sm:$0xff] %v1603
        %1636 = vst [vmem:[%s317 + $0x50] sm:$0xff] %v1604
        %1637 = vst [vmem:[%s317 + $0x58] sm:$0xff] %v1605
        %1638 = vst [vmem:[%s317 + $0x60] sm:$0xff] %v1606
        %1639 = vst [vmem:[%s317 + $0x68] sm:$0xff] %v1607
        %1640 = vst [vmem:[%s317 + $0x70] sm:$0xff] %v1608
        %1641 = vst [vmem:[%s317 + $0x78] sm:$0xff] %v1609
        %1642 = vst [vmem:[%s317 + $0x80] sm:$0xff] %v1610
        %1643 = vst [vmem:[%s317 + $0x88] sm:$0xff] %v1611
        %1644 = vst [vmem:[%s317 + $0x90] sm:$0xff] %v1612
        %1645 = vst [vmem:[%s317 + $0x98] sm:$0xff] %v1613
        %1646 = vst [vmem:[%s317 + $0xa0] sm:$0xff] %v1614
        %1647 = vst [vmem:[%s317 + $0xa8] sm:$0xff] %v1615
        %1648 = vst [vmem:[%s317 + $0xb0] sm:$0xff] %v1616
        %1649 = vst [vmem:[%s317 + $0xb8] sm:$0xff] %v1617
        %1650 = vst [vmem:[%s317 + $0xc0] sm:$0xff] %v1618
        %1651 = vst [vmem:[%s317 + $0xc8] sm:$0xff] %v1619
        %1652 = vst [vmem:[%s317 + $0xd0] sm:$0xff] %v1620
        %1653 = vst [vmem:[%s317 + $0xd8] sm:$0xff] %v1621
        %1654 = vst [vmem:[%s317 + $0xe0] sm:$0xff] %v1622
        %1655 = vst [vmem:[%s317 + $0xe8] sm:$0xff] %v1623
        %1656 = vst [vmem:[%s317 + $0xf0] sm:$0xff] %v1624
        %1657 = vst [vmem:[%s317 + $0xf8] sm:$0xff] %v1625
        %s1658 = smul.u32 32, %s14
        %p1659 = scmp.lt.s32.totalorder %s1658, 63
        %s1660 = scalar_select %p1659, %s1658, 63
        %s1661 = smul.addr %s1660, 8
        %s1662 = scalar_lea.vmem %s3, %s1661
        // Predicated region
        $region56: #{model_d_forward.4} parent=50 // pred_check
          %p1663 = pneg %p100
        $region57: #{model_d_forward.4} parent=50 // pred_check_branch
          %1665 = sbr.rel (%p1663) target = $region59
        $region58: #{model_d_forward.4} parent=50 // pred_region
          %s1666 = smul.u32 32, %s14
        $region59: #{model_d_forward.4} parent=50 // pred_fallthru
          _
      $region51: #{model_d_forward.4} parent=5 // pred_fallthru
        _
      %p1667 = scmp.le.s32.totalorder 2, %s9
      // Predicated region
      $region60: #{model_d_forward.4} parent=5 // pred_check
        %p1668 = pneg %p1667
      $region61: #{model_d_forward.4} parent=5 // pred_check_branch
        %1670 = sbr.rel (%p1668) target = $region63
      $region62: #{model_d_forward.4} parent=5 // pred_region
        %s1671 = ssub.s32 %s9, 2
        // Predicated region
        $region64: #{model_d_forward.4} parent=62 // pred_check
          %p1672 = pneg %p106
        $region65: #{model_d_forward.4} parent=62 // pred_check_branch
          %1674 = sbr.rel (%p1672) target = $region67
        $region66: #{model_d_forward.4} parent=62 // pred_region
          %s1675 = smul.u32 32, %s15
          %p1676 = scmp.lt.s32.totalorder %s1675, 63
          %s1677 = scalar_select %p1676, %s1675, 63
          %s1678 = smul.addr %s1677, 8
          %s1679 = scalar_lea.vmem %s3, %s1678
        $region67: #{model_d_forward.4} parent=62 // pred_fallthru
          _
      $region63: #{model_d_forward.4} parent=5 // pred_fallthru
        _
    $region6: #{model_d_forward.4} parent=1 // loop_footer
      %s13 = sadd.s32 1, %s9
    $region7: #{model_d_forward.4} parent=1 // loop_footer_branch
      %8 = sbr.rel target = $region3
    $region8: #{model_d_forward.4} parent=1 // loop_exit
      _

// kernel: model_d_forward.5
$region0: #{model_d_forward.5}
  #allocation0 [shape = 'u32[]', space=smem, size = 0x4, offset = 0x4, fixed_abs, tag = 'smem constant byte address 0x4 - core index']
  #allocation1 [shape = 'u32[144,128]{1,0:T(1,128)}', space=vmem, size = 0x12000, scoped, tag = 'internal scratch']
  %s0 = inlined_call_operand.vmem [shape: f32[128,2048], index: 0, kind: input, shape index: {}]
  %s1 = inlined_call_operand.vmem [shape: f32[16,128], index: 1, kind: input, shape index: {}]
  %s2 = inlined_call_operand.vmem [shape: f32[16,1], index: 2, kind: input, shape index: {}]
  %s3 = inlined_call_operand.vmem [shape: f32[16,1], index: 3, kind: input, shape index: {}]
  %s4 = inlined_call_operand.vmem [shape: f32[16,1], index: 4, kind: input, shape index: {}]
  %s5 = inlined_call_operand.vmem [shape: f32[16,2048], index: 5, kind: output, shape index: {}]
  %s6 = sld [smem:[#allocation0]]
  $region30: #{model_d_forward.5} parent=0
    _
  %s8 = ssub.s32 1, %s6
  %s9 = scalar_select 0, %s8, %s6
  // Predicated region
  $region2: #{model_d_forward.5} parent=0 // pred_check
    _
  $region3: #{model_d_forward.5} parent=0 // pred_check_branch
    %11 = sbr.rel (0) target = $region5
  $region4: #{model_d_forward.5} parent=0 // pred_region
    _
  $region5: #{model_d_forward.5} parent=0 // pred_fallthru
    _
  // Predicated region
  $region6: #{model_d_forward.5} parent=0 // pred_check
    _
  $region7: #{model_d_forward.5} parent=0 // pred_check_branch
    %13 = sbr.rel (0) target = $region9
  $region8: #{model_d_forward.5} parent=0 // pred_region
    _
  $region9: #{model_d_forward.5} parent=0 // pred_fallthru
    _
  // Predicated region
  $region10: #{model_d_forward.5} parent=0 // pred_check
    _
  $region11: #{model_d_forward.5} parent=0 // pred_check_branch
    %15 = sbr.rel (0) target = $region13
  $region12: #{model_d_forward.5} parent=0 // pred_region
    _
  $region13: #{model_d_forward.5} parent=0 // pred_fallthru
    _
  // Predicated region
  $region14: #{model_d_forward.5} parent=0 // pred_check
    _
  $region15: #{model_d_forward.5} parent=0 // pred_check_branch
    %17 = sbr.rel (0) target = $region17
  $region16: #{model_d_forward.5} parent=0 // pred_region
    _
  $region17: #{model_d_forward.5} parent=0 // pred_fallthru
    _
  // Predicated region
  $region18: #{model_d_forward.5} parent=0 // pred_check
    _
  $region19: #{model_d_forward.5} parent=0 // pred_check_branch
    %19 = sbr.rel (0) target = $region21
  $region20: #{model_d_forward.5} parent=0 // pred_region
    _
  $region21: #{model_d_forward.5} parent=0 // pred_fallthru
    _
  %v20 = vld [vmem:[%s1] sm:$0xff]
  %v21 = vld [vmem:[%s1 + $0x8] sm:$0xff]
  %v22 = vld [vmem:[%s0] sm:$0xff]
  %v23 = vld [vmem:[%s0 + $0x8] sm:$0xff]
  %v24 = vld [vmem:[%s0 + $0x10] sm:$0xff]
  %v25 = vld [vmem:[%s0 + $0x18] sm:$0xff]
  %v26 = vld [vmem:[%s0 + $0x20] sm:$0xff]
  %v27 = vld [vmem:[%s0 + $0x28] sm:$0xff]
  %v28 = vld [vmem:[%s0 + $0x30] sm:$0xff]
  %v29 = vld [vmem:[%s0 + $0x38] sm:$0xff]
  %v30 = vld [vmem:[%s0 + $0x40] sm:$0xff]
  %v31 = vld [vmem:[%s0 + $0x48] sm:$0xff]
  %v32 = vld [vmem:[%s0 + $0x50] sm:$0xff]
  %v33 = vld [vmem:[%s0 + $0x58] sm:$0xff]
  %v34 = vld [vmem:[%s0 + $0x60] sm:$0xff]
  %v35 = vld [vmem:[%s0 + $0x68] sm:$0xff]
  %v36 = vld [vmem:[%s0 + $0x70] sm:$0xff]
  %v37 = vld [vmem:[%s0 + $0x78] sm:$0xff]
  %v38 = vld [vmem:[%s0 + $0x80] sm:$0xff]
  %v39 = vld [vmem:[%s0 + $0x88] sm:$0xff]
  %v40 = vld [vmem:[%s0 + $0x90] sm:$0xff]
  %v41 = vld [vmem:[%s0 + $0x98] sm:$0xff]
  %v42 = vld [vmem:[%s0 + $0xa0] sm:$0xff]
  %v43 = vld [vmem:[%s0 + $0xa8] sm:$0xff]
  %v44 = vld [vmem:[%s0 + $0xb0] sm:$0xff]
  %v45 = vld [vmem:[%s0 + $0xb8] sm:$0xff]
  %v46 = vld [vmem:[%s0 + $0xc0] sm:$0xff]
  %v47 = vld [vmem:[%s0 + $0xc8] sm:$0xff]
  %v48 = vld [vmem:[%s0 + $0xd0] sm:$0xff]
  %v49 = vld [vmem:[%s0 + $0xd8] sm:$0xff]
  %v50 = vld [vmem:[%s0 + $0xe0] sm:$0xff]
  %v51 = vld [vmem:[%s0 + $0xe8] sm:$0xff]
  %v52 = vld [vmem:[%s0 + $0xf0] sm:$0xff]
  %v53 = vld [vmem:[%s0 + $0xf8] sm:$0xff]
  %v54 = vld [vmem:[%s0 + $0x100] sm:$0xff]
  %v55 = vld [vmem:[%s0 + $0x108] sm:$0xff]
  %v56 = vld [vmem:[%s0 + $0x110] sm:$0xff]
  %v57 = vld [vmem:[%s0 + $0x118] sm:$0xff]
  %v58 = vld [vmem:[%s0 + $0x120] sm:$0xff]
  %v59 = vld [vmem:[%s0 + $0x128] sm:$0xff]
  %v60 = vld [vmem:[%s0 + $0x130] sm:$0xff]
  %v61 = vld [vmem:[%s0 + $0x138] sm:$0xff]
  %v62 = vld [vmem:[%s0 + $0x140] sm:$0xff]
  %v63 = vld [vmem:[%s0 + $0x148] sm:$0xff]
  %v64 = vld [vmem:[%s0 + $0x150] sm:$0xff]
  %v65 = vld [vmem:[%s0 + $0x158] sm:$0xff]
  %v66 = vld [vmem:[%s0 + $0x160] sm:$0xff]
  %v67 = vld [vmem:[%s0 + $0x168] sm:$0xff]
  %v68 = vld [vmem:[%s0 + $0x170] sm:$0xff]
  %v69 = vld [vmem:[%s0 + $0x178] sm:$0xff]
  %v70 = vld [vmem:[%s0 + $0x180] sm:$0xff]
  %v71 = vld [vmem:[%s0 + $0x188] sm:$0xff]
  %v72 = vld [vmem:[%s0 + $0x190] sm:$0xff]
  %v73 = vld [vmem:[%s0 + $0x198] sm:$0xff]
  %v74 = vld [vmem:[%s0 + $0x1a0] sm:$0xff]
  %v75 = vld [vmem:[%s0 + $0x1a8] sm:$0xff]
  %v76 = vld [vmem:[%s0 + $0x1b0] sm:$0xff]
  %v77 = vld [vmem:[%s0 + $0x1b8] sm:$0xff]
  %v78 = vld [vmem:[%s0 + $0x1c0] sm:$0xff]
  %v79 = vld [vmem:[%s0 + $0x1c8] sm:$0xff]
  %v80 = vld [vmem:[%s0 + $0x1d0] sm:$0xff]
  %v81 = vld [vmem:[%s0 + $0x1d8] sm:$0xff]
  %v82 = vld [vmem:[%s0 + $0x1e0] sm:$0xff]
  %v83 = vld [vmem:[%s0 + $0x1e8] sm:$0xff]
  %v84 = vld [vmem:[%s0 + $0x1f0] sm:$0xff]
  %v85 = vld [vmem:[%s0 + $0x1f8] sm:$0xff]
  %v86 = vld [vmem:[%s0 + $0x200] sm:$0xff]
  %v87 = vld [vmem:[%s0 + $0x208] sm:$0xff]
  %v88 = vld [vmem:[%s0 + $0x210] sm:$0xff]
  %v89 = vld [vmem:[%s0 + $0x218] sm:$0xff]
  %v90 = vld [vmem:[%s0 + $0x220] sm:$0xff]
  %v91 = vld [vmem:[%s0 + $0x228] sm:$0xff]
  %v92 = vld [vmem:[%s0 + $0x230] sm:$0xff]
  %v93 = vld [vmem:[%s0 + $0x238] sm:$0xff]
  %v94 = vld [vmem:[%s0 + $0x240] sm:$0xff]
  %v95 = vld [vmem:[%s0 + $0x248] sm:$0xff]
  %v96 = vld [vmem:[%s0 + $0x250] sm:$0xff]
  %v97 = vld [vmem:[%s0 + $0x258] sm:$0xff]
  %v98 = vld [vmem:[%s0 + $0x260] sm:$0xff]
  %v99 = vld [vmem:[%s0 + $0x268] sm:$0xff]
  %v100 = vld [vmem:[%s0 + $0x270] sm:$0xff]
  %v101 = vld [vmem:[%s0 + $0x278] sm:$0xff]
  %v102 = vld [vmem:[%s0 + $0x280] sm:$0xff]
  %v103 = vld [vmem:[%s0 + $0x288] sm:$0xff]
  %v104 = vld [vmem:[%s0 + $0x290] sm:$0xff]
  %v105 = vld [vmem:[%s0 + $0x298] sm:$0xff]
  %v106 = vld [vmem:[%s0 + $0x2a0] sm:$0xff]
  %v107 = vld [vmem:[%s0 + $0x2a8] sm:$0xff]
  %v108 = vld [vmem:[%s0 + $0x2b0] sm:$0xff]
  %v109 = vld [vmem:[%s0 + $0x2b8] sm:$0xff]
  %v110 = vld [vmem:[%s0 + $0x2c0] sm:$0xff]
  %v111 = vld [vmem:[%s0 + $0x2c8] sm:$0xff]
  %v112 = vld [vmem:[%s0 + $0x2d0] sm:$0xff]
  %v113 = vld [vmem:[%s0 + $0x2d8] sm:$0xff]
  %v114 = vld [vmem:[%s0 + $0x2e0] sm:$0xff]
  %v115 = vld [vmem:[%s0 + $0x2e8] sm:$0xff]
  %v116 = vld [vmem:[%s0 + $0x2f0] sm:$0xff]
  %v117 = vld [vmem:[%s0 + $0x2f8] sm:$0xff]
  %v118 = vld [vmem:[%s0 + $0x300] sm:$0xff]
  %v119 = vld [vmem:[%s0 + $0x308] sm:$0xff]
  %v120 = vld [vmem:[%s0 + $0x310] sm:$0xff]
  %v121 = vld [vmem:[%s0 + $0x318] sm:$0xff]
  %v122 = vld [vmem:[%s0 + $0x320] sm:$0xff]
  %v123 = vld [vmem:[%s0 + $0x328] sm:$0xff]
  %v124 = vld [vmem:[%s0 + $0x330] sm:$0xff]
  %v125 = vld [vmem:[%s0 + $0x338] sm:$0xff]
  %v126 = vld [vmem:[%s0 + $0x340] sm:$0xff]
  %v127 = vld [vmem:[%s0 + $0x348] sm:$0xff]
  %v128 = vld [vmem:[%s0 + $0x350] sm:$0xff]
  %v129 = vld [vmem:[%s0 + $0x358] sm:$0xff]
  %v130 = vld [vmem:[%s0 + $0x360] sm:$0xff]
  %v131 = vld [vmem:[%s0 + $0x368] sm:$0xff]
  %v132 = vld [vmem:[%s0 + $0x370] sm:$0xff]
  %v133 = vld [vmem:[%s0 + $0x378] sm:$0xff]
  %v134 = vld [vmem:[%s0 + $0x380] sm:$0xff]
  %v135 = vld [vmem:[%s0 + $0x388] sm:$0xff]
  %v136 = vld [vmem:[%s0 + $0x390] sm:$0xff]
  %v137 = vld [vmem:[%s0 + $0x398] sm:$0xff]
  %v138 = vld [vmem:[%s0 + $0x3a0] sm:$0xff]
  %v139 = vld [vmem:[%s0 + $0x3a8] sm:$0xff]
  %v140 = vld [vmem:[%s0 + $0x3b0] sm:$0xff]
  %v141 = vld [vmem:[%s0 + $0x3b8] sm:$0xff]
  %v142 = vld [vmem:[%s0 + $0x3c0] sm:$0xff]
  %v143 = vld [vmem:[%s0 + $0x3c8] sm:$0xff]
  %v144 = vld [vmem:[%s0 + $0x3d0] sm:$0xff]
  %v145 = vld [vmem:[%s0 + $0x3d8] sm:$0xff]
  %v146 = vld [vmem:[%s0 + $0x3e0] sm:$0xff]
  %v147 = vld [vmem:[%s0 + $0x3e8] sm:$0xff]
  %v148 = vld [vmem:[%s0 + $0x3f0] sm:$0xff]
  %v149 = vld [vmem:[%s0 + $0x3f8] sm:$0xff]
  %v150 = vld [vmem:[%s0 + $0x400] sm:$0xff]
  %v151 = vld [vmem:[%s0 + $0x408] sm:$0xff]
  %v152 = vld [vmem:[%s0 + $0x410] sm:$0xff]
  %v153 = vld [vmem:[%s0 + $0x418] sm:$0xff]
  %v154 = vld [vmem:[%s0 + $0x420] sm:$0xff]
  %v155 = vld [vmem:[%s0 + $0x428] sm:$0xff]
  %v156 = vld [vmem:[%s0 + $0x430] sm:$0xff]
  %v157 = vld [vmem:[%s0 + $0x438] sm:$0xff]
  %v158 = vld [vmem:[%s0 + $0x440] sm:$0xff]
  %v159 = vld [vmem:[%s0 + $0x448] sm:$0xff]
  %v160 = vld [vmem:[%s0 + $0x450] sm:$0xff]
  %v161 = vld [vmem:[%s0 + $0x458] sm:$0xff]
  %v162 = vld [vmem:[%s0 + $0x460] sm:$0xff]
  %v163 = vld [vmem:[%s0 + $0x468] sm:$0xff]
  %v164 = vld [vmem:[%s0 + $0x470] sm:$0xff]
  %v165 = vld [vmem:[%s0 + $0x478] sm:$0xff]
  %v166 = vld [vmem:[%s0 + $0x480] sm:$0xff]
  %v167 = vld [vmem:[%s0 + $0x488] sm:$0xff]
  %v168 = vld [vmem:[%s0 + $0x490] sm:$0xff]
  %v169 = vld [vmem:[%s0 + $0x498] sm:$0xff]
  %v170 = vld [vmem:[%s0 + $0x4a0] sm:$0xff]
  %v171 = vld [vmem:[%s0 + $0x4a8] sm:$0xff]
  %v172 = vld [vmem:[%s0 + $0x4b0] sm:$0xff]
  %v173 = vld [vmem:[%s0 + $0x4b8] sm:$0xff]
  %v174 = vld [vmem:[%s0 + $0x4c0] sm:$0xff]
  %v175 = vld [vmem:[%s0 + $0x4c8] sm:$0xff]
  %v176 = vld [vmem:[%s0 + $0x4d0] sm:$0xff]
  %v177 = vld [vmem:[%s0 + $0x4d8] sm:$0xff]
  %v178 = vld [vmem:[%s0 + $0x4e0] sm:$0xff]
  %v179 = vld [vmem:[%s0 + $0x4e8] sm:$0xff]
  %v180 = vld [vmem:[%s0 + $0x4f0] sm:$0xff]
  %v181 = vld [vmem:[%s0 + $0x4f8] sm:$0xff]
  %v182 = vld [vmem:[%s0 + $0x500] sm:$0xff]
  %v183 = vld [vmem:[%s0 + $0x508] sm:$0xff]
  %v184 = vld [vmem:[%s0 + $0x510] sm:$0xff]
  %v185 = vld [vmem:[%s0 + $0x518] sm:$0xff]
  %v186 = vld [vmem:[%s0 + $0x520] sm:$0xff]
  %v187 = vld [vmem:[%s0 + $0x528] sm:$0xff]
  %v188 = vld [vmem:[%s0 + $0x530] sm:$0xff]
  %v189 = vld [vmem:[%s0 + $0x538] sm:$0xff]
  %v190 = vld [vmem:[%s0 + $0x540] sm:$0xff]
  %v191 = vld [vmem:[%s0 + $0x548] sm:$0xff]
  %v192 = vld [vmem:[%s0 + $0x550] sm:$0xff]
  %v193 = vld [vmem:[%s0 + $0x558] sm:$0xff]
  %v194 = vld [vmem:[%s0 + $0x560] sm:$0xff]
  %v195 = vld [vmem:[%s0 + $0x568] sm:$0xff]
  %v196 = vld [vmem:[%s0 + $0x570] sm:$0xff]
  %v197 = vld [vmem:[%s0 + $0x578] sm:$0xff]
  %v198 = vld [vmem:[%s0 + $0x580] sm:$0xff]
  %v199 = vld [vmem:[%s0 + $0x588] sm:$0xff]
  %v200 = vld [vmem:[%s0 + $0x590] sm:$0xff]
  %v201 = vld [vmem:[%s0 + $0x598] sm:$0xff]
  %v202 = vld [vmem:[%s0 + $0x5a0] sm:$0xff]
  %v203 = vld [vmem:[%s0 + $0x5a8] sm:$0xff]
  %v204 = vld [vmem:[%s0 + $0x5b0] sm:$0xff]
  %v205 = vld [vmem:[%s0 + $0x5b8] sm:$0xff]
  %v206 = vld [vmem:[%s0 + $0x5c0] sm:$0xff]
  %v207 = vld [vmem:[%s0 + $0x5c8] sm:$0xff]
  %v208 = vld [vmem:[%s0 + $0x5d0] sm:$0xff]
  %v209 = vld [vmem:[%s0 + $0x5d8] sm:$0xff]
  %v210 = vld [vmem:[%s0 + $0x5e0] sm:$0xff]
  %v211 = vld [vmem:[%s0 + $0x5e8] sm:$0xff]
  %v212 = vld [vmem:[%s0 + $0x5f0] sm:$0xff]
  %v213 = vld [vmem:[%s0 + $0x5f8] sm:$0xff]
  %v214 = vld [vmem:[%s0 + $0x600] sm:$0xff]
  %v215 = vld [vmem:[%s0 + $0x608] sm:$0xff]
  %v216 = vld [vmem:[%s0 + $0x610] sm:$0xff]
  %v217 = vld [vmem:[%s0 + $0x618] sm:$0xff]
  %v218 = vld [vmem:[%s0 + $0x620] sm:$0xff]
  %v219 = vld [vmem:[%s0 + $0x628] sm:$0xff]
  %v220 = vld [vmem:[%s0 + $0x630] sm:$0xff]
  %v221 = vld [vmem:[%s0 + $0x638] sm:$0xff]
  %v222 = vld [vmem:[%s0 + $0x640] sm:$0xff]
  %v223 = vld [vmem:[%s0 + $0x648] sm:$0xff]
  %v224 = vld [vmem:[%s0 + $0x650] sm:$0xff]
  %v225 = vld [vmem:[%s0 + $0x658] sm:$0xff]
  %v226 = vld [vmem:[%s0 + $0x660] sm:$0xff]
  %v227 = vld [vmem:[%s0 + $0x668] sm:$0xff]
  %v228 = vld [vmem:[%s0 + $0x670] sm:$0xff]
  %v229 = vld [vmem:[%s0 + $0x678] sm:$0xff]
  %v230 = vld [vmem:[%s0 + $0x680] sm:$0xff]
  %v231 = vld [vmem:[%s0 + $0x688] sm:$0xff]
  %v232 = vld [vmem:[%s0 + $0x690] sm:$0xff]
  %v233 = vld [vmem:[%s0 + $0x698] sm:$0xff]
  %v234 = vld [vmem:[%s0 + $0x6a0] sm:$0xff]
  %v235 = vld [vmem:[%s0 + $0x6a8] sm:$0xff]
  %v236 = vld [vmem:[%s0 + $0x6b0] sm:$0xff]
  %v237 = vld [vmem:[%s0 + $0x6b8] sm:$0xff]
  %v238 = vld [vmem:[%s0 + $0x6c0] sm:$0xff]
  %v239 = vld [vmem:[%s0 + $0x6c8] sm:$0xff]
  %v240 = vld [vmem:[%s0 + $0x6d0] sm:$0xff]
  %v241 = vld [vmem:[%s0 + $0x6d8] sm:$0xff]
  %v242 = vld [vmem:[%s0 + $0x6e0] sm:$0xff]
  %v243 = vld [vmem:[%s0 + $0x6e8] sm:$0xff]
  %v244 = vld [vmem:[%s0 + $0x6f0] sm:$0xff]
  %v245 = vld [vmem:[%s0 + $0x6f8] sm:$0xff]
  %v246 = vld [vmem:[%s0 + $0x700] sm:$0xff]
  %v247 = vld [vmem:[%s0 + $0x708] sm:$0xff]
  %v248 = vld [vmem:[%s0 + $0x710] sm:$0xff]
  %v249 = vld [vmem:[%s0 + $0x718] sm:$0xff]
  %v250 = vld [vmem:[%s0 + $0x720] sm:$0xff]
  %v251 = vld [vmem:[%s0 + $0x728] sm:$0xff]
  %v252 = vld [vmem:[%s0 + $0x730] sm:$0xff]
  %v253 = vld [vmem:[%s0 + $0x738] sm:$0xff]
  %v254 = vld [vmem:[%s0 + $0x740] sm:$0xff]
  %v255 = vld [vmem:[%s0 + $0x748] sm:$0xff]
  %v256 = vld [vmem:[%s0 + $0x750] sm:$0xff]
  %v257 = vld [vmem:[%s0 + $0x758] sm:$0xff]
  %v258 = vld [vmem:[%s0 + $0x760] sm:$0xff]
  %v259 = vld [vmem:[%s0 + $0x768] sm:$0xff]
  %v260 = vld [vmem:[%s0 + $0x770] sm:$0xff]
  %v261 = vld [vmem:[%s0 + $0x778] sm:$0xff]
  %v262 = vld [vmem:[%s0 + $0x780] sm:$0xff]
  %v263 = vld [vmem:[%s0 + $0x788] sm:$0xff]
  %v264 = vld [vmem:[%s0 + $0x790] sm:$0xff]
  %v265 = vld [vmem:[%s0 + $0x798] sm:$0xff]
  %v266 = vld [vmem:[%s0 + $0x7a0] sm:$0xff]
  %v267 = vld [vmem:[%s0 + $0x7a8] sm:$0xff]
  %v268 = vld [vmem:[%s0 + $0x7b0] sm:$0xff]
  %v269 = vld [vmem:[%s0 + $0x7b8] sm:$0xff]
  %v270 = vld [vmem:[%s0 + $0x7c0] sm:$0xff]
  %v271 = vld [vmem:[%s0 + $0x7c8] sm:$0xff]
  %v272 = vld [vmem:[%s0 + $0x7d0] sm:$0xff]
  %v273 = vld [vmem:[%s0 + $0x7d8] sm:$0xff]
  %v274 = vld [vmem:[%s0 + $0x7e0] sm:$0xff]
  %v275 = vld [vmem:[%s0 + $0x7e8] sm:$0xff]
  %v276 = vld [vmem:[%s0 + $0x7f0] sm:$0xff]
  %v277 = vld [vmem:[%s0 + $0x7f8] sm:$0xff]
  %v278 = vld [vmem:[%s2] sm:$0xff]
  %v279 = vld [vmem:[%s2 + $0x8] sm:$0xff]
  %281 = vset.pattern.permute.xlu0 0
  %282 = vperm.xlu0 %281, %v278
  %v283 = vpop.permute.xlu0 %282
  %286 = vset.pattern.permute.xlu0 0
  %287 = vperm.xlu0 %286, %v279
  %v288 = vpop.permute.xlu0 %287
  %290 = vmatprep.subr.mxu0 %v23
  %291 = vmatpush1.msra.mxu0 %v22
  %292 = vmatprep.subr.mxu0 %v39
  %293 = vmatpush1.msra.mxu0 %v38
  %294 = vmatprep.subr.mxu0 %v55
  %295 = vmatpush1.msra.mxu0 %v54
  %296 = vmatprep.subr.mxu0 %v71
  %297 = vmatpush1.msra.mxu0 %v70
  %298 = vmatprep.subr.mxu0 %v87
  %299 = vmatpush1.msra.mxu0 %v86
  %300 = vmatprep.subr.mxu0 %v103
  %301 = vmatpush1.msra.mxu0 %v102
  %302 = vmatprep.subr.mxu0 %v119
  %303 = vmatpush1.msra.mxu0 %v118
  %304 = vmatprep.subr.mxu0 %v135
  %305 = vmatpush1.msra.mxu0 %v134
  %306 = vmatprep.subr.mxu0 %v151
  %307 = vmatpush1.msra.mxu0 %v150
  %308 = vmatprep.subr.mxu0 %v167
  %309 = vmatpush1.msra.mxu0 %v166
  %310 = vmatprep.subr.mxu0 %v183
  %311 = vmatpush1.msra.mxu0 %v182
  %312 = vmatprep.subr.mxu0 %v199
  %313 = vmatpush1.msra.mxu0 %v198
  %314 = vmatprep.subr.mxu0 %v215
  %315 = vmatpush1.msra.mxu0 %v214
  %316 = vmatprep.subr.mxu0 %v231
  %317 = vmatpush1.msra.mxu0 %v230
  %318 = vmatprep.subr.mxu0 %v247
  %319 = vmatpush1.msra.mxu0 %v246
  %320 = vmatprep.subr.mxu0 %v263
  %321 = vmatpush1.msra.mxu0 %v262
  %322 = vmatprep.subr.mxu0 0.0
  %323 = vmatpush1.msra.mxu0 0.0
  %324 = vmatprep.subr.mxu0 0.0
  %325 = vmatpush1.msra.mxu0 0.0
  %326 = vmatprep.subr.mxu0 0.0
  %327 = vmatpush1.msra.mxu0 0.0
  %328 = vmatprep.subr.mxu0 0.0
  %329 = vmatpush1.msra.mxu0 0.0
  %330 = vmatprep.subr.mxu0 0.0
  %331 = vmatpush1.msra.mxu0 0.0
  %332 = vmatprep.subr.mxu0 0.0
  %333 = vmatpush1.msra.mxu0 0.0
  %334 = vmatprep.subr.mxu0 0.0
  %335 = vmatpush1.msra.mxu0 0.0
  %336 = vmatprep.subr.mxu0 0.0
  %337 = vmatpush1.msra.mxu0 0.0
  %338 = vmatprep.subr.mxu0 0.0
  %339 = vmatpush1.msra.mxu0 0.0
  %340 = vmatprep.subr.mxu0 0.0
  %341 = vmatpush1.msra.mxu0 0.0
  %342 = vmatprep.subr.mxu0 0.0
  %343 = vmatpush1.msra.mxu0 0.0
  %344 = vmatprep.subr.mxu0 0.0
  %345 = vmatpush1.msra.mxu0 0.0
  %346 = vmatprep.subr.mxu0 0.0
  %347 = vmatpush1.msra.mxu0 0.0
  %348 = vmatprep.subr.mxu0 0.0
  %349 = vmatpush1.msra.mxu0 0.0
  %350 = vmatprep.subr.mxu0 0.0
  %351 = vmatpush1.msra.mxu0 0.0
  %352 = vmatprep.subr.mxu0 0.0
  %353 = vmatpush1.msra.mxu0 0.0
  %354 = vmatprep.mubr.f32.mxu0 0.0
  %355 = vmatmul.mubr.f32.gmra.mrb[0].mxu0 %v20
  %v356 = vpop.f32.mrb[0].mxu0
  %v357 = vadd.f32 %v283, %v356
  %v358 = vpop.f32.mrb[0].mxu0
  %v359 = vadd.f32 %v283, %v358
  %360 = vmatprep.mubr.f32.mxu0 0.0
  %361 = vmatmul.mubr.f32.gmra.mrb[0].mxu0 %v21
  %v362 = vpop.f32.mrb[0].mxu0
  %v363 = vadd.f32 %v288, %v362
  %v364 = vpop.f32.mrb[0].mxu0
  %v365 = vadd.f32 %v288, %v364
  %366 = vdwg.mxu0
  %367 = vmatprep.subr.mxu0 %v25
  %368 = vmatpush1.msra.mxu0 %v24
  %369 = vmatprep.subr.mxu0 %v41
  %370 = vmatpush1.msra.mxu0 %v40
  %371 = vmatprep.subr.mxu0 %v57
  %372 = vmatpush1.msra.mxu0 %v56
  %373 = vmatprep.subr.mxu0 %v73
  %374 = vmatpush1.msra.mxu0 %v72
  %375 = vmatprep.subr.mxu0 %v89
  %376 = vmatpush1.msra.mxu0 %v88
  %377 = vmatprep.subr.mxu0 %v105
  %378 = vmatpush1.msra.mxu0 %v104
  %379 = vmatprep.subr.mxu0 %v121
  %380 = vmatpush1.msra.mxu0 %v120
  %381 = vmatprep.subr.mxu0 %v137
  %382 = vmatpush1.msra.mxu0 %v136
  %383 = vmatprep.subr.mxu0 %v153
  %384 = vmatpush1.msra.mxu0 %v152
  %385 = vmatprep.subr.mxu0 %v169
  %386 = vmatpush1.msra.mxu0 %v168
  %387 = vmatprep.subr.mxu0 %v185
  %388 = vmatpush1.msra.mxu0 %v184
  %389 = vmatprep.subr.mxu0 %v201
  %390 = vmatpush1.msra.mxu0 %v200
  %391 = vmatprep.subr.mxu0 %v217
  %392 = vmatpush1.msra.mxu0 %v216
  %393 = vmatprep.subr.mxu0 %v233
  %394 = vmatpush1.msra.mxu0 %v232
  %395 = vmatprep.subr.mxu0 %v249
  %396 = vmatpush1.msra.mxu0 %v248
  %397 = vmatprep.subr.mxu0 %v265
  %398 = vmatpush1.msra.mxu0 %v264
  %399 = vmatprep.subr.mxu0 0.0
  %400 = vmatpush1.msra.mxu0 0.0
  %401 = vmatprep.subr.mxu0 0.0
  %402 = vmatpush1.msra.mxu0 0.0
  %403 = vmatprep.subr.mxu0 0.0
  %404 = vmatpush1.msra.mxu0 0.0
  %405 = vmatprep.subr.mxu0 0.0
  %406 = vmatpush1.msra.mxu0 0.0
  %407 = vmatprep.subr.mxu0 0.0
  %408 = vmatpush1.msra.mxu0 0.0
  %409 = vmatprep.subr.mxu0 0.0
  %410 = vmatpush1.msra.mxu0 0.0
  %411 = vmatprep.subr.mxu0 0.0
  %412 = vmatpush1.msra.mxu0 0.0
  %413 = vmatprep.subr.mxu0 0.0
  %414 = vmatpush1.msra.mxu0 0.0
  %415 = vmatprep.subr.mxu0 0.0
  %416 = vmatpush1.msra.mxu0 0.0
  %417 = vmatprep.subr.mxu0 0.0
  %418 = vmatpush1.msra.mxu0 0.0
  %419 = vmatprep.subr.mxu0 0.0
  %420 = vmatpush1.msra.mxu0 0.0
  %421 = vmatprep.subr.mxu0 0.0
  %422 = vmatpush1.msra.mxu0 0.0
  %423 = vmatprep.subr.mxu0 0.0
  %424 = vmatpush1.msra.mxu0 0.0
  %425 = vmatprep.subr.mxu0 0.0
  %426 = vmatpush1.msra.mxu0 0.0
  %427 = vmatprep.subr.mxu0 0.0
  %428 = vmatpush1.msra.mxu0 0.0
  %429 = vmatprep.subr.mxu0 0.0
  %430 = vmatpush1.msra.mxu0 0.0
  %431 = vmatprep.mubr.f32.mxu0 0.0
  %432 = vmatmul.mubr.f32.gmra.mrb[0].mxu0 %v20
  %v433 = vpop.f32.mrb[0].mxu0
  %v434 = vadd.f32 %v283, %v433
  %v435 = vpop.f32.mrb[0].mxu0
  %v436 = vadd.f32 %v283, %v435
  %437 = vmatprep.mubr.f32.mxu0 0.0
  %438 = vmatmul.mubr.f32.gmra.mrb[0].mxu0 %v21
  %v439 = vpop.f32.mrb[0].mxu0
  %v440 = vadd.f32 %v288, %v439
  %v441 = vpop.f32.mrb[0].mxu0
  %v442 = vadd.f32 %v288, %v441
  %443 = vdwg.mxu0
  %444 = vmatprep.subr.mxu0 %v27
  %445 = vmatpush1.msra.mxu0 %v26
  %446 = vmatprep.subr.mxu0 %v43
  %447 = vmatpush1.msra.mxu0 %v42
  %448 = vmatprep.subr.mxu0 %v59
  %449 = vmatpush1.msra.mxu0 %v58
  %450 = vmatprep.subr.mxu0 %v75
  %451 = vmatpush1.msra.mxu0 %v74
  %452 = vmatprep.subr.mxu0 %v91
  %453 = vmatpush1.msra.mxu0 %v90
  %454 = vmatprep.subr.mxu0 %v107
  %455 = vmatpush1.msra.mxu0 %v106
  %456 = vmatprep.subr.mxu0 %v123
  %457 = vmatpush1.msra.mxu0 %v122
  %458 = vmatprep.subr.mxu0 %v139
  %459 = vmatpush1.msra.mxu0 %v138
  %460 = vmatprep.subr.mxu0 %v155
  %461 = vmatpush1.msra.mxu0 %v154
  %462 = vmatprep.subr.mxu0 %v171
  %463 = vmatpush1.msra.mxu0 %v170
  %464 = vmatprep.subr.mxu0 %v187
  %465 = vmatpush1.msra.mxu0 %v186
  %466 = vmatprep.subr.mxu0 %v203
  %467 = vmatpush1.msra.mxu0 %v202
  %468 = vmatprep.subr.mxu0 %v219
  %469 = vmatpush1.msra.mxu0 %v218
  %470 = vmatprep.subr.mxu0 %v235
  %471 = vmatpush1.msra.mxu0 %v234
  %472 = vmatprep.subr.mxu0 %v251
  %473 = vmatpush1.msra.mxu0 %v250
  %474 = vmatprep.subr.mxu0 %v267
  %475 = vmatpush1.msra.mxu0 %v266
  %476 = vmatprep.subr.mxu0 0.0
  %477 = vmatpush1.msra.mxu0 0.0
  %478 = vmatprep.subr.mxu0 0.0
  %479 = vmatpush1.msra.mxu0 0.0
  %480 = vmatprep.subr.mxu0 0.0
  %481 = vmatpush1.msra.mxu0 0.0
  %482 = vmatprep.subr.mxu0 0.0
  %483 = vmatpush1.msra.mxu0 0.0
  %484 = vmatprep.subr.mxu0 0.0
  %485 = vmatpush1.msra.mxu0 0.0
  %486 = vmatprep.subr.mxu0 0.0
  %487 = vmatpush1.msra.mxu0 0.0
  %488 = vmatprep.subr.mxu0 0.0
  %489 = vmatpush1.msra.mxu0 0.0
  %490 = vmatprep.subr.mxu0 0.0
  %491 = vmatpush1.msra.mxu0 0.0
  %492 = vmatprep.subr.mxu0 0.0
  %493 = vmatpush1.msra.mxu0 0.0
  %494 = vmatprep.subr.mxu0 0.0
  %495 = vmatpush1.msra.mxu0 0.0
  %496 = vmatprep.subr.mxu0 0.0
  %497 = vmatpush1.msra.mxu0 0.0
  %498 = vmatprep.subr.mxu0 0.0
  %499 = vmatpush1.msra.mxu0 0.0
  %500 = vmatprep.subr.mxu0 0.0
  %501 = vmatpush1.msra.mxu0 0.0
  %502 = vmatprep.subr.mxu0 0.0
  %503 = vmatpush1.msra.mxu0 0.0
  %504 = vmatprep.subr.mxu0 0.0
  %505 = vmatpush1.msra.mxu0 0.0
  %506 = vmatprep.subr.mxu0 0.0
  %507 = vmatpush1.msra.mxu0 0.0
  %508 = vmatprep.mubr.f32.mxu0 0.0
  %509 = vmatmul.mubr.f32.gmra.mrb[0].mxu0 %v20
  %v510 = vpop.f32.mrb[0].mxu0
  %v511 = vadd.f32 %v283, %v510
  %v512 = vpop.f32.mrb[0].mxu0
  %v513 = vadd.f32 %v283, %v512
  %514 = vmatprep.mubr.f32.mxu0 0.0
  %515 = vmatmul.mubr.f32.gmra.mrb[0].mxu0 %v21
  %v516 = vpop.f32.mrb[0].mxu0
  %v517 = vadd.f32 %v288, %v516
  %v518 = vpop.f32.mrb[0].mxu0
  %v519 = vadd.f32 %v288, %v518
  %520 = vdwg.mxu0
  %521 = vmatprep.subr.mxu0 %v29
  %522 = vmatpush1.msra.mxu0 %v28
  %523 = vmatprep.subr.mxu0 %v45
  %524 = vmatpush1.msra.mxu0 %v44
  %525 = vmatprep.subr.mxu0 %v61
  %526 = vmatpush1.msra.mxu0 %v60
  %527 = vmatprep.subr.mxu0 %v77
  %528 = vmatpush1.msra.mxu0 %v76
  %529 = vmatprep.subr.mxu0 %v93
  %530 = vmatpush1.msra.mxu0 %v92
  %531 = vmatprep.subr.mxu0 %v109
  %532 = vmatpush1.msra.mxu0 %v108
  %533 = vmatprep.subr.mxu0 %v125
  %534 = vmatpush1.msra.mxu0 %v124
  %535 = vmatprep.subr.mxu0 %v141
  %536 = vmatpush1.msra.mxu0 %v140
  %537 = vmatprep.subr.mxu0 %v157
  %538 = vmatpush1.msra.mxu0 %v156
  %539 = vmatprep.subr.mxu0 %v173
  %540 = vmatpush1.msra.mxu0 %v172
  %541 = vmatprep.subr.mxu0 %v189
  %542 = vmatpush1.msra.mxu0 %v188
  %543 = vmatprep.subr.mxu0 %v205
  %544 = vmatpush1.msra.mxu0 %v204
  %545 = vmatprep.subr.mxu0 %v221
  %546 = vmatpush1.msra.mxu0 %v220
  %547 = vmatprep.subr.mxu0 %v237
  %548 = vmatpush1.msra.mxu0 %v236
  %549 = vmatprep.subr.mxu0 %v253
  %550 = vmatpush1.msra.mxu0 %v252
  %551 = vmatprep.subr.mxu0 %v269
  %552 = vmatpush1.msra.mxu0 %v268
  %553 = vmatprep.subr.mxu0 0.0
  %554 = vmatpush1.msra.mxu0 0.0
  %555 = vmatprep.subr.mxu0 0.0
  %556 = vmatpush1.msra.mxu0 0.0
  %557 = vmatprep.subr.mxu0 0.0
  %558 = vmatpush1.msra.mxu0 0.0
  %559 = vmatprep.subr.mxu0 0.0
  %560 = vmatpush1.msra.mxu0 0.0
  %561 = vmatprep.subr.mxu0 0.0
  %562 = vmatpush1.msra.mxu0 0.0
  %563 = vmatprep.subr.mxu0 0.0
  %564 = vmatpush1.msra.mxu0 0.0
  %565 = vmatprep.subr.mxu0 0.0
  %566 = vmatpush1.msra.mxu0 0.0
  %567 = vmatprep.subr.mxu0 0.0
  %568 = vmatpush1.msra.mxu0 0.0
  %569 = vmatprep.subr.mxu0 0.0
  %570 = vmatpush1.msra.mxu0 0.0
  %571 = vmatprep.subr.mxu0 0.0
  %572 = vmatpush1.msra.mxu0 0.0
  %573 = vmatprep.subr.mxu0 0.0
  %574 = vmatpush1.msra.mxu0 0.0
  %575 = vmatprep.subr.mxu0 0.0
  %576 = vmatpush1.msra.mxu0 0.0
  %577 = vmatprep.subr.mxu0 0.0
  %578 = vmatpush1.msra.mxu0 0.0
  %579 = vmatprep.subr.mxu0 0.0
  %580 = vmatpush1.msra.mxu0 0.0
  %581 = vmatprep.subr.mxu0 0.0
  %582 = vmatpush1.msra.mxu0 0.0
  %583 = vmatprep.subr.mxu0 0.0
  %584 = vmatpush1.msra.mxu0 0.0
  %585 = vmatprep.mubr.f32.mxu0 0.0
  %586 = vmatmul.mubr.f32.gmra.mrb[0].mxu0 %v20
  %v587 = vpop.f32.mrb[0].mxu0
  %v588 = vadd.f32 %v283, %v587
  %v589 = vpop.f32.mrb[0].mxu0
  %v590 = vadd.f32 %v283, %v589
  %591 = vmatprep.mubr.f32.mxu0 0.0
  %592 = vmatmul.mubr.f32.gmra.mrb[0].mxu0 %v21
  %v593 = vpop.f32.mrb[0].mxu0
  %v594 = vadd.f32 %v288, %v593
  %v595 = vpop.f32.mrb[0].mxu0
  %v596 = vadd.f32 %v288, %v595
  %597 = vdwg.mxu0
  %598 = vmatprep.subr.mxu0 %v31
  %599 = vmatpush1.msra.mxu0 %v30
  %600 = vmatprep.subr.mxu0 %v47
  %601 = vmatpush1.msra.mxu0 %v46
  %602 = vmatprep.subr.mxu0 %v63
  %603 = vmatpush1.msra.mxu0 %v62
  %604 = vmatprep.subr.mxu0 %v79
  %605 = vmatpush1.msra.mxu0 %v78
  %606 = vmatprep.subr.mxu0 %v95
  %607 = vmatpush1.msra.mxu0 %v94
  %608 = vmatprep.subr.mxu0 %v111
  %609 = vmatpush1.msra.mxu0 %v110
  %610 = vmatprep.subr.mxu0 %v127
  %611 = vmatpush1.msra.mxu0 %v126
  %612 = vmatprep.subr.mxu0 %v143
  %613 = vmatpush1.msra.mxu0 %v142
  %614 = vmatprep.subr.mxu0 %v159
  %615 = vmatpush1.msra.mxu0 %v158
  %616 = vmatprep.subr.mxu0 %v175
  %617 = vmatpush1.msra.mxu0 %v174
  %618 = vmatprep.subr.mxu0 %v191
  %619 = vmatpush1.msra.mxu0 %v190
  %620 = vmatprep.subr.mxu0 %v207
  %621 = vmatpush1.msra.mxu0 %v206
  %622 = vmatprep.subr.mxu0 %v223
  %623 = vmatpush1.msra.mxu0 %v222
  %624 = vmatprep.subr.mxu0 %v239
  %625 = vmatpush1.msra.mxu0 %v238
  %626 = vmatprep.subr.mxu0 %v255
  %627 = vmatpush1.msra.mxu0 %v254
  %628 = vmatprep.subr.mxu0 %v271
  %629 = vmatpush1.msra.mxu0 %v270
  %630 = vmatprep.subr.mxu0 0.0
  %631 = vmatpush1.msra.mxu0 0.0
  %632 = vmatprep.subr.mxu0 0.0
  %633 = vmatpush1.msra.mxu0 0.0
  %634 = vmatprep.subr.mxu0 0.0
  %635 = vmatpush1.msra.mxu0 0.0
  %636 = vmatprep.subr.mxu0 0.0
  %637 = vmatpush1.msra.mxu0 0.0
  %638 = vmatprep.subr.mxu0 0.0
  %639 = vmatpush1.msra.mxu0 0.0
  %640 = vmatprep.subr.mxu0 0.0
  %641 = vmatpush1.msra.mxu0 0.0
  %642 = vmatprep.subr.mxu0 0.0
  %643 = vmatpush1.msra.mxu0 0.0
  %644 = vmatprep.subr.mxu0 0.0
  %645 = vmatpush1.msra.mxu0 0.0
  %646 = vmatprep.subr.mxu0 0.0
  %647 = vmatpush1.msra.mxu0 0.0
  %648 = vmatprep.subr.mxu0 0.0
  %649 = vmatpush1.msra.mxu0 0.0
  %650 = vmatprep.subr.mxu0 0.0
  %651 = vmatpush1.msra.mxu0 0.0
  %652 = vmatprep.subr.mxu0 0.0
  %653 = vmatpush1.msra.mxu0 0.0
  %654 = vmatprep.subr.mxu0 0.0
  %655 = vmatpush1.msra.mxu0 0.0
  %656 = vmatprep.subr.mxu0 0.0
  %657 = vmatpush1.msra.mxu0 0.0
  %658 = vmatprep.subr.mxu0 0.0
  %659 = vmatpush1.msra.mxu0 0.0
  %660 = vmatprep.subr.mxu0 0.0
  %661 = vmatpush1.msra.mxu0 0.0
  %662 = vmatprep.mubr.f32.mxu0 0.0
  %663 = vmatmul.mubr.f32.gmra.mrb[0].mxu0 %v20
  %v664 = vpop.f32.mrb[0].mxu0
  %v665 = vadd.f32 %v283, %v664
  %v666 = vpop.f32.mrb[0].mxu0
  %v667 = vadd.f32 %v283, %v666
  %668 = vmatprep.mubr.f32.mxu0 0.0
  %669 = vmatmul.mubr.f32.gmra.mrb[0].mxu0 %v21
  %v670 = vpop.f32.mrb[0].mxu0
  %v671 = vadd.f32 %v288, %v670
  %v672 = vpop.f32.mrb[0].mxu0
  %v673 = vadd.f32 %v288, %v672
  %674 = vdwg.mxu0
  %675 = vmatprep.subr.mxu0 %v33
  %676 = vmatpush1.msra.mxu0 %v32
  %677 = vmatprep.subr.mxu0 %v49
  %678 = vmatpush1.msra.mxu0 %v48
  %679 = vmatprep.subr.mxu0 %v65
  %680 = vmatpush1.msra.mxu0 %v64
  %681 = vmatprep.subr.mxu0 %v81
  %682 = vmatpush1.msra.mxu0 %v80
  %683 = vmatprep.subr.mxu0 %v97
  %684 = vmatpush1.msra.mxu0 %v96
  %685 = vmatprep.subr.mxu0 %v113
  %686 = vmatpush1.msra.mxu0 %v112
  %687 = vmatprep.subr.mxu0 %v129
  %688 = vmatpush1.msra.mxu0 %v128
  %689 = vmatprep.subr.mxu0 %v145
  %690 = vmatpush1.msra.mxu0 %v144
  %691 = vmatprep.subr.mxu0 %v161
  %692 = vmatpush1.msra.mxu0 %v160
  %693 = vmatprep.subr.mxu0 %v177
  %694 = vmatpush1.msra.mxu0 %v176
  %695 = vmatprep.subr.mxu0 %v193
  %696 = vmatpush1.msra.mxu0 %v192
  %697 = vmatprep.subr.mxu0 %v209
  %698 = vmatpush1.msra.mxu0 %v208
  %699 = vmatprep.subr.mxu0 %v225
  %700 = vmatpush1.msra.mxu0 %v224
  %701 = vmatprep.subr.mxu0 %v241
  %702 = vmatpush1.msra.mxu0 %v240
  %703 = vmatprep.subr.mxu0 %v257
  %704 = vmatpush1.msra.mxu0 %v256
  %705 = vmatprep.subr.mxu0 %v273
  %706 = vmatpush1.msra.mxu0 %v272
  %707 = vmatprep.subr.mxu0 0.0
  %708 = vmatpush1.msra.mxu0 0.0
  %709 = vmatprep.subr.mxu0 0.0
  %710 = vmatpush1.msra.mxu0 0.0
  %711 = vmatprep.subr.mxu0 0.0
  %712 = vmatpush1.msra.mxu0 0.0
  %713 = vmatprep.subr.mxu0 0.0
  %714 = vmatpush1.msra.mxu0 0.0
  %715 = vmatprep.subr.mxu0 0.0
  %716 = vmatpush1.msra.mxu0 0.0
  %717 = vmatprep.subr.mxu0 0.0
  %718 = vmatpush1.msra.mxu0 0.0
  %719 = vmatprep.subr.mxu0 0.0
  %720 = vmatpush1.msra.mxu0 0.0
  %721 = vmatprep.subr.mxu0 0.0
  %722 = vmatpush1.msra.mxu0 0.0
  %723 = vmatprep.subr.mxu0 0.0
  %724 = vmatpush1.msra.mxu0 0.0
  %725 = vmatprep.subr.mxu0 0.0
  %726 = vmatpush1.msra.mxu0 0.0
  %727 = vmatprep.subr.mxu0 0.0
  %728 = vmatpush1.msra.mxu0 0.0
  %729 = vmatprep.subr.mxu0 0.0
  %730 = vmatpush1.msra.mxu0 0.0
  %731 = vmatprep.subr.mxu0 0.0
  %732 = vmatpush1.msra.mxu0 0.0
  %733 = vmatprep.subr.mxu0 0.0
  %734 = vmatpush1.msra.mxu0 0.0
  %735 = vmatprep.subr.mxu0 0.0
  %736 = vmatpush1.msra.mxu0 0.0
  %737 = vmatprep.subr.mxu0 0.0
  %738 = vmatpush1.msra.mxu0 0.0
  %739 = vmatprep.mubr.f32.mxu0 0.0
  %740 = vmatmul.mubr.f32.gmra.mrb[0].mxu0 %v20
  %v741 = vpop.f32.mrb[0].mxu0
  %v742 = vadd.f32 %v283, %v741
  %v743 = vpop.f32.mrb[0].mxu0
  %v744 = vadd.f32 %v283, %v743
  %745 = vmatprep.mubr.f32.mxu0 0.0
  %746 = vmatmul.mubr.f32.gmra.mrb[0].mxu0 %v21
  %v747 = vpop.f32.mrb[0].mxu0
  %v748 = vadd.f32 %v288, %v747
  %v749 = vpop.f32.mrb[0].mxu0
  %v750 = vadd.f32 %v288, %v749
  %751 = vdwg.mxu0
  %752 = vmatprep.subr.mxu0 %v35
  %753 = vmatpush1.msra.mxu0 %v34
  %754 = vmatprep.subr.mxu0 %v51
  %755 = vmatpush1.msra.mxu0 %v50
  %756 = vmatprep.subr.mxu0 %v67
  %757 = vmatpush1.msra.mxu0 %v66
  %758 = vmatprep.subr.mxu0 %v83
  %759 = vmatpush1.msra.mxu0 %v82
  %760 = vmatprep.subr.mxu0 %v99
  %761 = vmatpush1.msra.mxu0 %v98
  %762 = vmatprep.subr.mxu0 %v115
  %763 = vmatpush1.msra.mxu0 %v114
  %764 = vmatprep.subr.mxu0 %v131
  %765 = vmatpush1.msra.mxu0 %v130
  %766 = vmatprep.subr.mxu0 %v147
  %767 = vmatpush1.msra.mxu0 %v146
  %768 = vmatprep.subr.mxu0 %v163
  %769 = vmatpush1.msra.mxu0 %v162
  %770 = vmatprep.subr.mxu0 %v179
  %771 = vmatpush1.msra.mxu0 %v178
  %772 = vmatprep.subr.mxu0 %v195
  %773 = vmatpush1.msra.mxu0 %v194
  %774 = vmatprep.subr.mxu0 %v211
  %775 = vmatpush1.msra.mxu0 %v210
  %776 = vmatprep.subr.mxu0 %v227
  %777 = vmatpush1.msra.mxu0 %v226
  %778 = vmatprep.subr.mxu0 %v243
  %779 = vmatpush1.msra.mxu0 %v242
  %780 = vmatprep.subr.mxu0 %v259
  %781 = vmatpush1.msra.mxu0 %v258
  %782 = vmatprep.subr.mxu0 %v275
  %783 = vmatpush1.msra.mxu0 %v274
  %784 = vmatprep.subr.mxu0 0.0
  %785 = vmatpush1.msra.mxu0 0.0
  %786 = vmatprep.subr.mxu0 0.0
  %787 = vmatpush1.msra.mxu0 0.0
  %788 = vmatprep.subr.mxu0 0.0
  %789 = vmatpush1.msra.mxu0 0.0
  %790 = vmatprep.subr.mxu0 0.0
  %791 = vmatpush1.msra.mxu0 0.0
  %792 = vmatprep.subr.mxu0 0.0
  %793 = vmatpush1.msra.mxu0 0.0
  %794 = vmatprep.subr.mxu0 0.0
  %795 = vmatpush1.msra.mxu0 0.0
  %796 = vmatprep.subr.mxu0 0.0
  %797 = vmatpush1.msra.mxu0 0.0
  %798 = vmatprep.subr.mxu0 0.0
  %799 = vmatpush1.msra.mxu0 0.0
  %800 = vmatprep.subr.mxu0 0.0
  %801 = vmatpush1.msra.mxu0 0.0
  %802 = vmatprep.subr.mxu0 0.0
  %803 = vmatpush1.msra.mxu0 0.0
  %804 = vmatprep.subr.mxu0 0.0
  %805 = vmatpush1.msra.mxu0 0.0
  %806 = vmatprep.subr.mxu0 0.0
  %807 = vmatpush1.msra.mxu0 0.0
  %808 = vmatprep.subr.mxu0 0.0
  %809 = vmatpush1.msra.mxu0 0.0
  %810 = vmatprep.subr.mxu0 0.0
  %811 = vmatpush1.msra.mxu0 0.0
  %812 = vmatprep.subr.mxu0 0.0
  %813 = vmatpush1.msra.mxu0 0.0
  %814 = vmatprep.subr.mxu0 0.0
  %815 = vmatpush1.msra.mxu0 0.0
  %816 = vmatprep.mubr.f32.mxu0 0.0
  %817 = vmatmul.mubr.f32.gmra.mrb[0].mxu0 %v20
  %v818 = vpop.f32.mrb[0].mxu0
  %v819 = vadd.f32 %v283, %v818
  %v820 = vpop.f32.mrb[0].mxu0
  %v821 = vadd.f32 %v283, %v820
  %822 = vmatprep.mubr.f32.mxu0 0.0
  %823 = vmatmul.mubr.f32.gmra.mrb[0].mxu0 %v21
  %v824 = vpop.f32.mrb[0].mxu0
  %v825 = vadd.f32 %v288, %v824
  %v826 = vpop.f32.mrb[0].mxu0
  %v827 = vadd.f32 %v288, %v826
  %828 = vdwg.mxu0
  %829 = vmatprep.subr.mxu0 %v37
  %830 = vmatpush1.msra.mxu0 %v36
  %831 = vmatprep.subr.mxu0 %v53
  %832 = vmatpush1.msra.mxu0 %v52
  %833 = vmatprep.subr.mxu0 %v69
  %834 = vmatpush1.msra.mxu0 %v68
  %835 = vmatprep.subr.mxu0 %v85
  %836 = vmatpush1.msra.mxu0 %v84
  %837 = vmatprep.subr.mxu0 %v101
  %838 = vmatpush1.msra.mxu0 %v100
  %839 = vmatprep.subr.mxu0 %v117
  %840 = vmatpush1.msra.mxu0 %v116
  %841 = vmatprep.subr.mxu0 %v133
  %842 = vmatpush1.msra.mxu0 %v132
  %843 = vmatprep.subr.mxu0 %v149
  %844 = vmatpush1.msra.mxu0 %v148
  %845 = vmatprep.subr.mxu0 %v165
  %846 = vmatpush1.msra.mxu0 %v164
  %847 = vmatprep.subr.mxu0 %v181
  %848 = vmatpush1.msra.mxu0 %v180
  %849 = vmatprep.subr.mxu0 %v197
  %850 = vmatpush1.msra.mxu0 %v196
  %851 = vmatprep.subr.mxu0 %v213
  %852 = vmatpush1.msra.mxu0 %v212
  %853 = vmatprep.subr.mxu0 %v229
  %854 = vmatpush1.msra.mxu0 %v228
  %855 = vmatprep.subr.mxu0 %v245
  %856 = vmatpush1.msra.mxu0 %v244
  %857 = vmatprep.subr.mxu0 %v261
  %858 = vmatpush1.msra.mxu0 %v260
  %859 = vmatprep.subr.mxu0 %v277
  %860 = vmatpush1.msra.mxu0 %v276
  %861 = vmatprep.subr.mxu0 0.0
  %862 = vmatpush1.msra.mxu0 0.0
  %863 = vmatprep.subr.mxu0 0.0
  %864 = vmatpush1.msra.mxu0 0.0
  %865 = vmatprep.subr.mxu0 0.0
  %866 = vmatpush1.msra.mxu0 0.0
  %867 = vmatprep.subr.mxu0 0.0
  %868 = vmatpush1.msra.mxu0 0.0
  %869 = vmatprep.subr.mxu0 0.0
  %870 = vmatpush1.msra.mxu0 0.0
  %871 = vmatprep.subr.mxu0 0.0
  %872 = vmatpush1.msra.mxu0 0.0
  %873 = vmatprep.subr.mxu0 0.0
  %874 = vmatpush1.msra.mxu0 0.0
  %875 = vmatprep.subr.mxu0 0.0
  %876 = vmatpush1.msra.mxu0 0.0
  %877 = vmatprep.subr.mxu0 0.0
  %878 = vmatpush1.msra.mxu0 0.0
  %879 = vmatprep.subr.mxu0 0.0
  %880 = vmatpush1.msra.mxu0 0.0
  %881 = vmatprep.subr.mxu0 0.0
  %882 = vmatpush1.msra.mxu0 0.0
  %883 = vmatprep.subr.mxu0 0.0
  %884 = vmatpush1.msra.mxu0 0.0
  %885 = vmatprep.subr.mxu0 0.0
  %886 = vmatpush1.msra.mxu0 0.0
  %887 = vmatprep.subr.mxu0 0.0
  %888 = vmatpush1.msra.mxu0 0.0
  %889 = vmatprep.subr.mxu0 0.0
  %890 = vmatpush1.msra.mxu0 0.0
  %891 = vmatprep.subr.mxu0 0.0
  %892 = vmatpush1.msra.mxu0 0.0
  %893 = vmatprep.mubr.f32.mxu0 0.0
  %894 = vmatmul.mubr.f32.gmra.mrb[0].mxu0 %v20
  %v895 = vpop.f32.mrb[0].mxu0
  %v896 = vadd.f32 %v283, %v895
  %v897 = vpop.f32.mrb[0].mxu0
  %v898 = vadd.f32 %v283, %v897
  %899 = vmatprep.mubr.f32.mxu0 0.0
  %900 = vmatmul.mubr.f32.gmra.mrb[0].mxu0 %v21
  %v901 = vpop.f32.mrb[0].mxu0
  %v902 = vadd.f32 %v288, %v901
  %v903 = vpop.f32.mrb[0].mxu0
  %v904 = vadd.f32 %v288, %v903
  %905 = vdwg.mxu0
  %v906 = vadd.f32 %v357, %v359
  %v907 = vadd.f32 %v906, %v434
  %v908 = vadd.f32 %v907, %v436
  %v909 = vadd.f32 %v908, %v511
  %v910 = vadd.f32 %v909, %v513
  %v911 = vadd.f32 %v910, %v588
  %v912 = vadd.f32 %v911, %v590
  %v913 = vadd.f32 %v912, %v665
  %v914 = vadd.f32 %v913, %v667
  %v915 = vadd.f32 %v914, %v742
  %v916 = vadd.f32 %v915, %v744
  %v917 = vadd.f32 %v916, %v819
  %v918 = vadd.f32 %v917, %v821
  %v919 = vadd.f32 %v918, %v896
  %v920 = vadd.f32 %v919, %v898
  %921 = vadd.xlane.f32.xlu0 %v920
  %v922 = vpop.xlane.xlu0 %921
  %v923 = vadd.f32 %v363, %v365
  %v924 = vadd.f32 %v923, %v440
  %v925 = vadd.f32 %v924, %v442
  %v926 = vadd.f32 %v925, %v517
  %v927 = vadd.f32 %v926, %v519
  %v928 = vadd.f32 %v927, %v594
  %v929 = vadd.f32 %v928, %v596
  %v930 = vadd.f32 %v929, %v671
  %v931 = vadd.f32 %v930, %v673
  %v932 = vadd.f32 %v931, %v748
  %v933 = vadd.f32 %v932, %v750
  %v934 = vadd.f32 %v933, %v825
  %v935 = vadd.f32 %v934, %v827
  %v936 = vadd.f32 %v935, %v902
  %v937 = vadd.f32 %v936, %v904
  %938 = vadd.xlane.f32.xlu0 %v937
  %v939 = vpop.xlane.xlu0 %938
  %v940 = vrcp.pop 2048.0
  %v941 = vmul.f32 %v922, %v940
  %v942 = vmul.f32 %v939, %v940
  %v943 = vsub.f32 %v357, %v941
  %v944 = vsub.f32 %v359, %v941
  %v945 = vsub.f32 %v434, %v941
  %v946 = vsub.f32 %v436, %v941
  %v947 = vsub.f32 %v511, %v941
  %v948 = vsub.f32 %v513, %v941
  %v949 = vsub.f32 %v588, %v941
  %v950 = vsub.f32 %v590, %v941
  %v951 = vsub.f32 %v665, %v941
  %v952 = vsub.f32 %v667, %v941
  %v953 = vsub.f32 %v742, %v941
  %v954 = vsub.f32 %v744, %v941
  %v955 = vsub.f32 %v819, %v941
  %v956 = vsub.f32 %v821, %v941
  %v957 = vsub.f32 %v896, %v941
  %v958 = vsub.f32 %v898, %v941
  %v959 = vsub.f32 %v363, %v942
  %v960 = vsub.f32 %v365, %v942
  %v961 = vsub.f32 %v440, %v942
  %v962 = vsub.f32 %v442, %v942
  %v963 = vsub.f32 %v517, %v942
  %v964 = vsub.f32 %v519, %v942
  %v965 = vsub.f32 %v594, %v942
  %v966 = vsub.f32 %v596, %v942
  %v967 = vsub.f32 %v671, %v942
  %v968 = vsub.f32 %v673, %v942
  %v969 = vsub.f32 %v748, %v942
  %v970 = vsub.f32 %v750, %v942
  %v971 = vsub.f32 %v825, %v942
  %v972 = vsub.f32 %v827, %v942
  %v973 = vsub.f32 %v902, %v942
  %v974 = vsub.f32 %v904, %v942
  %v975 = vmul.f32 %v943, %v943
  %v976 = vmul.f32 %v944, %v944
  %v977 = vmul.f32 %v945, %v945
  %v978 = vmul.f32 %v946, %v946
  %v979 = vmul.f32 %v947, %v947
  %v980 = vmul.f32 %v948, %v948
  %v981 = vmul.f32 %v949, %v949
  %v982 = vmul.f32 %v950, %v950
  %v983 = vmul.f32 %v951, %v951
  %v984 = vmul.f32 %v952, %v952
  %v985 = vmul.f32 %v953, %v953
  %v986 = vmul.f32 %v954, %v954
  %v987 = vmul.f32 %v955, %v955
  %v988 = vmul.f32 %v956, %v956
  %v989 = vmul.f32 %v957, %v957
  %v990 = vmul.f32 %v958, %v958
  %v991 = vmul.f32 %v959, %v959
  %v992 = vmul.f32 %v960, %v960
  %v993 = vmul.f32 %v961, %v961
  %v994 = vmul.f32 %v962, %v962
  %v995 = vmul.f32 %v963, %v963
  %v996 = vmul.f32 %v964, %v964
  %v997 = vmul.f32 %v965, %v965
  %v998 = vmul.f32 %v966, %v966
  %v999 = vmul.f32 %v967, %v967
  %v1000 = vmul.f32 %v968, %v968
  %v1001 = vmul.f32 %v969, %v969
  %v1002 = vmul.f32 %v970, %v970
  %v1003 = vmul.f32 %v971, %v971
  %v1004 = vmul.f32 %v972, %v972
  %v1005 = vmul.f32 %v973, %v973
  %v1006 = vmul.f32 %v974, %v974
  %v1007 = vadd.f32 %v975, %v976
  %v1008 = vadd.f32 %v1007, %v977
  %v1009 = vadd.f32 %v1008, %v978
  %v1010 = vadd.f32 %v1009, %v979
  %v1011 = vadd.f32 %v1010, %v980
  %v1012 = vadd.f32 %v1011, %v981
  %v1013 = vadd.f32 %v1012, %v982
  %v1014 = vadd.f32 %v1013, %v983
  %v1015 = vadd.f32 %v1014, %v984
  %v1016 = vadd.f32 %v1015, %v985
  %v1017 = vadd.f32 %v1016, %v986
  %v1018 = vadd.f32 %v1017, %v987
  %v1019 = vadd.f32 %v1018, %v988
  %v1020 = vadd.f32 %v1019, %v989
  %v1021 = vadd.f32 %v1020, %v990
  %1022 = vadd.xlane.f32.xlu0 %v1021
  %v1023 = vpop.xlane.xlu0 %1022
  %v1024 = vadd.f32 %v991, %v992
  %v1025 = vadd.f32 %v1024, %v993
  %v1026 = vadd.f32 %v1025, %v994
  %v1027 = vadd.f32 %v1026, %v995
  %v1028 = vadd.f32 %v1027, %v996
  %v1029 = vadd.f32 %v1028, %v997
  %v1030 = vadd.f32 %v1029, %v998
  %v1031 = vadd.f32 %v1030, %v999
  %v1032 = vadd.f32 %v1031, %v1000
  %v1033 = vadd.f32 %v1032, %v1001
  %v1034 = vadd.f32 %v1033, %v1002
  %v1035 = vadd.f32 %v1034, %v1003
  %v1036 = vadd.f32 %v1035, %v1004
  %v1037 = vadd.f32 %v1036, %v1005
  %v1038 = vadd.f32 %v1037, %v1006
  %1039 = vadd.xlane.f32.xlu0 %v1038
  %v1040 = vpop.xlane.xlu0 %1039
  %v1041 = vmul.f32 %v1023, %v940
  %v1042 = vmul.f32 %v1040, %v940
  %v1043 = vld [vmem:[%s3] sm:$0xff]
  %v1044 = vld [vmem:[%s3 + $0x8] sm:$0xff]
  %v1045 = vadd.f32 %v1041, 1e-05
  %v1046 = vadd.f32 %v1042, 1e-05
  %v1047 = vrsqrt.pop %v1045
  %v1048 = vrsqrt.pop %v1046
  %v1049 = vmul.f32 %v1043, %v1047
  %v1050 = vmul.f32 %v1044, %v1048
  %1052 = vset.pattern.permute.xlu0 0
  %1053 = vperm.xlu0 %1052, %v1049
  %v1054 = vpop.permute.xlu0 %1053
  %1057 = vset.pattern.permute.xlu0 0
  %1058 = vperm.xlu0 %1057, %v1050
  %v1059 = vpop.permute.xlu0 %1058
  %v1061 = vmul.f32 %v943, %v1054
  %v1062 = vmul.f32 %v944, %v1054
  %v1063 = vmul.f32 %v945, %v1054
  %v1064 = vmul.f32 %v946, %v1054
  %v1065 = vmul.f32 %v947, %v1054
  %v1066 = vmul.f32 %v948, %v1054
  %v1067 = vmul.f32 %v949, %v1054
  %v1068 = vmul.f32 %v950, %v1054
  %v1069 = vmul.f32 %v951, %v1054
  %v1070 = vmul.f32 %v952, %v1054
  %v1071 = vmul.f32 %v953, %v1054
  %v1072 = vmul.f32 %v954, %v1054
  %v1073 = vmul.f32 %v955, %v1054
  %v1074 = vmul.f32 %v956, %v1054
  %v1075 = vmul.f32 %v957, %v1054
  %v1076 = vmul.f32 %v958, %v1054
  %v1077 = vmul.f32 %v959, %v1059
  %v1078 = vmul.f32 %v960, %v1059
  %v1079 = vmul.f32 %v961, %v1059
  %v1080 = vmul.f32 %v962, %v1059
  %v1081 = vmul.f32 %v963, %v1059
  %v1082 = vmul.f32 %v964, %v1059
  %v1083 = vmul.f32 %v965, %v1059
  %v1084 = vmul.f32 %v966, %v1059
  %v1085 = vmul.f32 %v967, %v1059
  %v1086 = vmul.f32 %v968, %v1059
  %v1087 = vmul.f32 %v969, %v1059
  %v1088 = vmul.f32 %v970, %v1059
  %v1089 = vmul.f32 %v971, %v1059
  %v1090 = vmul.f32 %v972, %v1059
  %v1091 = vmul.f32 %v973, %v1059
  %v1092 = vmul.f32 %v974, %v1059
  %v1093 = vld [vmem:[%s4] sm:$0xff]
  %v1094 = vld [vmem:[%s4 + $0x8] sm:$0xff]
  %1096 = vset.pattern.permute.xlu0 0
  %1097 = vperm.xlu0 %1096, %v1093
  %v1098 = vpop.permute.xlu0 %1097
  %1101 = vset.pattern.permute.xlu0 0
  %1102 = vperm.xlu0 %1101, %v1094
  %v1103 = vpop.permute.xlu0 %1102
  %v1105 = vadd.f32 %v1061, %v1098
  %v1106 = vadd.f32 %v1062, %v1098
  %v1107 = vadd.f32 %v1063, %v1098
  %v1108 = vadd.f32 %v1064, %v1098
  %v1109 = vadd.f32 %v1065, %v1098
  %v1110 = vadd.f32 %v1066, %v1098
  %v1111 = vadd.f32 %v1067, %v1098
  %v1112 = vadd.f32 %v1068, %v1098
  %v1113 = vadd.f32 %v1069, %v1098
  %v1114 = vadd.f32 %v1070, %v1098
  %v1115 = vadd.f32 %v1071, %v1098
  %v1116 = vadd.f32 %v1072, %v1098
  %v1117 = vadd.f32 %v1073, %v1098
  %v1118 = vadd.f32 %v1074, %v1098
  %v1119 = vadd.f32 %v1075, %v1098
  %v1120 = vadd.f32 %v1076, %v1098
  %v1121 = vadd.f32 %v1077, %v1103
  %v1122 = vadd.f32 %v1078, %v1103
  %v1123 = vadd.f32 %v1079, %v1103
  %v1124 = vadd.f32 %v1080, %v1103
  %v1125 = vadd.f32 %v1081, %v1103
  %v1126 = vadd.f32 %v1082, %v1103
  %v1127 = vadd.f32 %v1083, %v1103
  %v1128 = vadd.f32 %v1084, %v1103
  %v1129 = vadd.f32 %v1085, %v1103
  %v1130 = vadd.f32 %v1086, %v1103
  %v1131 = vadd.f32 %v1087, %v1103
  %v1132 = vadd.f32 %v1088, %v1103
  %v1133 = vadd.f32 %v1089, %v1103
  %v1134 = vadd.f32 %v1090, %v1103
  %v1135 = vadd.f32 %v1091, %v1103
  %v1136 = vadd.f32 %v1092, %v1103
  %vm1137 = vcmp.ge.f32.partialorder %v1105, 0.0
  %vm1138 = vcmp.ge.f32.partialorder %v1106, 0.0
  %vm1139 = vcmp.ge.f32.partialorder %v1107, 0.0
  %vm1140 = vcmp.ge.f32.partialorder %v1108, 0.0
  %vm1141 = vcmp.ge.f32.partialorder %v1109, 0.0
  %vm1142 = vcmp.ge.f32.partialorder %v1110, 0.0
  %vm1143 = vcmp.ge.f32.partialorder %v1111, 0.0
  %vm1144 = vcmp.ge.f32.partialorder %v1112, 0.0
  %vm1145 = vcmp.ge.f32.partialorder %v1113, 0.0
  %vm1146 = vcmp.ge.f32.partialorder %v1114, 0.0
  %vm1147 = vcmp.ge.f32.partialorder %v1115, 0.0
  %vm1148 = vcmp.ge.f32.partialorder %v1116, 0.0
  %vm1149 = vcmp.ge.f32.partialorder %v1117, 0.0
  %vm1150 = vcmp.ge.f32.partialorder %v1118, 0.0
  %vm1151 = vcmp.ge.f32.partialorder %v1119, 0.0
  %vm1152 = vcmp.ge.f32.partialorder %v1120, 0.0
  %vm1153 = vcmp.ge.f32.partialorder %v1121, 0.0
  %vm1154 = vcmp.ge.f32.partialorder %v1122, 0.0
  %vm1155 = vcmp.ge.f32.partialorder %v1123, 0.0
  %vm1156 = vcmp.ge.f32.partialorder %v1124, 0.0
  %vm1157 = vcmp.ge.f32.partialorder %v1125, 0.0
  %vm1158 = vcmp.ge.f32.partialorder %v1126, 0.0
  %vm1159 = vcmp.ge.f32.partialorder %v1127, 0.0
  %vm1160 = vcmp.ge.f32.partialorder %v1128, 0.0
  %vm1161 = vcmp.ge.f32.partialorder %v1129, 0.0
  %vm1162 = vcmp.ge.f32.partialorder %v1130, 0.0
  %vm1163 = vcmp.ge.f32.partialorder %v1131, 0.0
  %vm1164 = vcmp.ge.f32.partialorder %v1132, 0.0
  %vm1165 = vcmp.ge.f32.partialorder %v1133, 0.0
  %vm1166 = vcmp.ge.f32.partialorder %v1134, 0.0
  %vm1167 = vcmp.ge.f32.partialorder %v1135, 0.0
  %vm1168 = vcmp.ge.f32.partialorder %v1136, 0.0
  %v1169 = vmul.f32 %v1105, 0.2
  %v1170 = vmul.f32 %v1106, 0.2
  %v1171 = vmul.f32 %v1107, 0.2
  %v1172 = vmul.f32 %v1108, 0.2
  %v1173 = vmul.f32 %v1109, 0.2
  %v1174 = vmul.f32 %v1110, 0.2
  %v1175 = vmul.f32 %v1111, 0.2
  %v1176 = vmul.f32 %v1112, 0.2
  %v1177 = vmul.f32 %v1113, 0.2
  %v1178 = vmul.f32 %v1114, 0.2
  %v1179 = vmul.f32 %v1115, 0.2
  %v1180 = vmul.f32 %v1116, 0.2
  %v1181 = vmul.f32 %v1117, 0.2
  %v1182 = vmul.f32 %v1118, 0.2
  %v1183 = vmul.f32 %v1119, 0.2
  %v1184 = vmul.f32 %v1120, 0.2
  %v1185 = vmul.f32 %v1121, 0.2
  %v1186 = vmul.f32 %v1122, 0.2
  %v1187 = vmul.f32 %v1123, 0.2
  %v1188 = vmul.f32 %v1124, 0.2
  %v1189 = vmul.f32 %v1125, 0.2
  %v1190 = vmul.f32 %v1126, 0.2
  %v1191 = vmul.f32 %v1127, 0.2
  %v1192 = vmul.f32 %v1128, 0.2
  %v1193 = vmul.f32 %v1129, 0.2
  %v1194 = vmul.f32 %v1130, 0.2
  %v1195 = vmul.f32 %v1131, 0.2
  %v1196 = vmul.f32 %v1132, 0.2
  %v1197 = vmul.f32 %v1133, 0.2
  %v1198 = vmul.f32 %v1134, 0.2
  %v1199 = vmul.f32 %v1135, 0.2
  %v1200 = vmul.f32 %v1136, 0.2
  %v1201 = vsel %vm1137, %v1105, %v1169
  %v1202 = vsel %vm1138, %v1106, %v1170
  %v1203 = vsel %vm1139, %v1107, %v1171
  %v1204 = vsel %vm1140, %v1108, %v1172
  %v1205 = vsel %vm1141, %v1109, %v1173
  %v1206 = vsel %vm1142, %v1110, %v1174
  %v1207 = vsel %vm1143, %v1111, %v1175
  %v1208 = vsel %vm1144, %v1112, %v1176
  %v1209 = vsel %vm1145, %v1113, %v1177
  %v1210 = vsel %vm1146, %v1114, %v1178
  %v1211 = vsel %vm1147, %v1115, %v1179
  %v1212 = vsel %vm1148, %v1116, %v1180
  %v1213 = vsel %vm1149, %v1117, %v1181
  %v1214 = vsel %vm1150, %v1118, %v1182
  %v1215 = vsel %vm1151, %v1119, %v1183
  %v1216 = vsel %vm1152, %v1120, %v1184
  %v1217 = vsel %vm1153, %v1121, %v1185
  %v1218 = vsel %vm1154, %v1122, %v1186
  %v1219 = vsel %vm1155, %v1123, %v1187
  %v1220 = vsel %vm1156, %v1124, %v1188
  %v1221 = vsel %vm1157, %v1125, %v1189
  %v1222 = vsel %vm1158, %v1126, %v1190
  %v1223 = vsel %vm1159, %v1127, %v1191
  %v1224 = vsel %vm1160, %v1128, %v1192
  %v1225 = vsel %vm1161, %v1129, %v1193
  %v1226 = vsel %vm1162, %v1130, %v1194
  %v1227 = vsel %vm1163, %v1131, %v1195
  %v1228 = vsel %vm1164, %v1132, %v1196
  %v1229 = vsel %vm1165, %v1133, %v1197
  %v1230 = vsel %vm1166, %v1134, %v1198
  %v1231 = vsel %vm1167, %v1135, %v1199
  %v1232 = vsel %vm1168, %v1136, %v1200
  %1233 = vst [vmem:[%s5] sm:$0xff] %v1201
  %1234 = vst [vmem:[%s5 + $0x8] sm:$0xff] %v1202
  %1235 = vst [vmem:[%s5 + $0x10] sm:$0xff] %v1203
  %1236 = vst [vmem:[%s5 + $0x18] sm:$0xff] %v1204
  %1237 = vst [vmem:[%s5 + $0x20] sm:$0xff] %v1205
  %1238 = vst [vmem:[%s5 + $0x28] sm:$0xff] %v1206
  %1239 = vst [vmem:[%s5 + $0x30] sm:$0xff] %v1207
  %1240 = vst [vmem:[%s5 + $0x38] sm:$0xff] %v1208
  %1241 = vst [vmem:[%s5 + $0x40] sm:$0xff] %v1209
  %1242 = vst [vmem:[%s5 + $0x48] sm:$0xff] %v1210
  %1243 = vst [vmem:[%s5 + $0x50] sm:$0xff] %v1211
  %1244 = vst [vmem:[%s5 + $0x58] sm:$0xff] %v1212
  %1245 = vst [vmem:[%s5 + $0x60] sm:$0xff] %v1213
  %1246 = vst [vmem:[%s5 + $0x68] sm:$0xff] %v1214
  %1247 = vst [vmem:[%s5 + $0x70] sm:$0xff] %v1215
  %1248 = vst [vmem:[%s5 + $0x78] sm:$0xff] %v1216
  %1249 = vst [vmem:[%s5 + $0x80] sm:$0xff] %v1217
  %1250 = vst [vmem:[%s5 + $0x88] sm:$0xff] %v1218
  %1251 = vst [vmem:[%s5 + $0x90] sm:$0xff] %v1219
  %1252 = vst [vmem:[%s5 + $0x98] sm:$0xff] %v1220
  %1253 = vst [vmem:[%s5 + $0xa0] sm:$0xff] %v1221
  %1254 = vst [vmem:[%s5 + $0xa8] sm:$0xff] %v1222
  %1255 = vst [vmem:[%s5 + $0xb0] sm:$0xff] %v1223
  %1256 = vst [vmem:[%s5 + $0xb8] sm:$0xff] %v1224
  %1257 = vst [vmem:[%s5 + $0xc0] sm:$0xff] %v1225
  %1258 = vst [vmem:[%s5 + $0xc8] sm:$0xff] %v1226
  %1259 = vst [vmem:[%s5 + $0xd0] sm:$0xff] %v1227
  %1260 = vst [vmem:[%s5 + $0xd8] sm:$0xff] %v1228
  %1261 = vst [vmem:[%s5 + $0xe0] sm:$0xff] %v1229
  %1262 = vst [vmem:[%s5 + $0xe8] sm:$0xff] %v1230
  %1263 = vst [vmem:[%s5 + $0xf0] sm:$0xff] %v1231
  %1264 = vst [vmem:[%s5 + $0xf8] sm:$0xff] %v1232
  // Predicated region
  $region22: #{model_d_forward.5} parent=0 // pred_check
    _
  $region23: #{model_d_forward.5} parent=0 // pred_check_branch
    %1266 = sbr.rel (0) target = $region25
  $region24: #{model_d_forward.5} parent=0 // pred_region
    _
  $region25: #{model_d_forward.5} parent=0 // pred_fallthru
    _
  // Predicated region
  $region26: #{model_d_forward.5} parent=0 // pred_check
    _
  $region27: #{model_d_forward.5} parent=0 // pred_check_branch
    %1268 = sbr.rel (0) target = $region29
  $region28: #{model_d_forward.5} parent=0 // pred_region
    _
  $region29: #{model_d_forward.5} parent=0 // pred_fallthru
    _

// kernel: model_d_forward.6
$region0: #{model_d_forward.6}
  #allocation0 [shape = 'u32[]', space=smem, size = 0x4, offset = 0x4, fixed_abs, tag = 'smem constant byte address 0x4 - core index']
  #allocation1 [shape = 'u32[144,128]{1,0:T(1,128)}', space=vmem, size = 0x12000, scoped, tag = 'internal scratch']
  %s0 = inlined_call_operand.vmem [shape: f32[256,512], index: 0, kind: input, shape index: {}]
  %s1 = inlined_call_operand.vmem [shape: f32[32,256], index: 1, kind: input, shape index: {}]
  %s2 = inlined_call_operand.vmem [shape: f32[32,1], index: 2, kind: input, shape index: {}]
  %s3 = inlined_call_operand.vmem [shape: f32[32,1], index: 3, kind: input, shape index: {}]
  %s4 = inlined_call_operand.vmem [shape: f32[32,1], index: 4, kind: input, shape index: {}]
  %s5 = inlined_call_operand.vmem [shape: f32[32,512], index: 5, kind: output, shape index: {}]
  %s6 = sld [smem:[#allocation0]]
  $region30: #{model_d_forward.6} parent=0
    _
  %s8 = ssub.s32 1, %s6
  %s9 = scalar_select 0, %s8, %s6
  // Predicated region
  $region2: #{model_d_forward.6} parent=0 // pred_check
    _
  $region3: #{model_d_forward.6} parent=0 // pred_check_branch
    %11 = sbr.rel (0) target = $region5
  $region4: #{model_d_forward.6} parent=0 // pred_region
    _
  $region5: #{model_d_forward.6} parent=0 // pred_fallthru
    _
  // Predicated region
  $region6: #{model_d_forward.6} parent=0 // pred_check
    _
  $region7: #{model_d_forward.6} parent=0 // pred_check_branch
    %13 = sbr.rel (0) target = $region9
  $region8: #{model_d_forward.6} parent=0 // pred_region
    _
  $region9: #{model_d_forward.6} parent=0 // pred_fallthru
    _
  // Predicated region
  $region10: #{model_d_forward.6} parent=0 // pred_check
    _
  $region11: #{model_d_forward.6} parent=0 // pred_check_branch
    %15 = sbr.rel (0) target = $region13
  $region12: #{model_d_forward.6} parent=0 // pred_region
    _
  $region13: #{model_d_forward.6} parent=0 // pred_fallthru
    _
  // Predicated region
  $region14: #{model_d_forward.6} parent=0 // pred_check
    _
  $region15: #{model_d_forward.6} parent=0 // pred_check_branch
    %17 = sbr.rel (0) target = $region17
  $region16: #{model_d_forward.6} parent=0 // pred_region
    _
  $region17: #{model_d_forward.6} parent=0 // pred_fallthru
    _
  // Predicated region
  $region18: #{model_d_forward.6} parent=0 // pred_check
    _
  $region19: #{model_d_forward.6} parent=0 // pred_check_branch
    %19 = sbr.rel (0) target = $region21
  $region20: #{model_d_forward.6} parent=0 // pred_region
    _
  $region21: #{model_d_forward.6} parent=0 // pred_fallthru
    _
  %v20 = vld [vmem:[%s1] sm:$0xff]
  %v21 = vld [vmem:[%s1 + $0x8] sm:$0xff]
  %v22 = vld [vmem:[%s1 + $0x10] sm:$0xff]
  %v23 = vld [vmem:[%s1 + $0x18] sm:$0xff]
  %v24 = vld [vmem:[%s1 + $0x20] sm:$0xff]
  %v25 = vld [vmem:[%s1 + $0x28] sm:$0xff]
  %v26 = vld [vmem:[%s1 + $0x30] sm:$0xff]
  %v27 = vld [vmem:[%s1 + $0x38] sm:$0xff]
  %v28 = vld [vmem:[%s0] sm:$0xff]
  %v29 = vld [vmem:[%s0 + $0x8] sm:$0xff]
  %v30 = vld [vmem:[%s0 + $0x10] sm:$0xff]
  %v31 = vld [vmem:[%s0 + $0x18] sm:$0xff]
  %v32 = vld [vmem:[%s0 + $0x20] sm:$0xff]
  %v33 = vld [vmem:[%s0 + $0x28] sm:$0xff]
  %v34 = vld [vmem:[%s0 + $0x30] sm:$0xff]
  %v35 = vld [vmem:[%s0 + $0x38] sm:$0xff]
  %v36 = vld [vmem:[%s0 + $0x40] sm:$0xff]
  %v37 = vld [vmem:[%s0 + $0x48] sm:$0xff]
  %v38 = vld [vmem:[%s0 + $0x50] sm:$0xff]
  %v39 = vld [vmem:[%s0 + $0x58] sm:$0xff]
  %v40 = vld [vmem:[%s0 + $0x60] sm:$0xff]
  %v41 = vld [vmem:[%s0 + $0x68] sm:$0xff]
  %v42 = vld [vmem:[%s0 + $0x70] sm:$0xff]
  %v43 = vld [vmem:[%s0 + $0x78] sm:$0xff]
  %v44 = vld [vmem:[%s0 + $0x80] sm:$0xff]
  %v45 = vld [vmem:[%s0 + $0x88] sm:$0xff]
  %v46 = vld [vmem:[%s0 + $0x90] sm:$0xff]
  %v47 = vld [vmem:[%s0 + $0x98] sm:$0xff]
  %v48 = vld [vmem:[%s0 + $0xa0] sm:$0xff]
  %v49 = vld [vmem:[%s0 + $0xa8] sm:$0xff]
  %v50 = vld [vmem:[%s0 + $0xb0] sm:$0xff]
  %v51 = vld [vmem:[%s0 + $0xb8] sm:$0xff]
  %v52 = vld [vmem:[%s0 + $0xc0] sm:$0xff]
  %v53 = vld [vmem:[%s0 + $0xc8] sm:$0xff]
  %v54 = vld [vmem:[%s0 + $0xd0] sm:$0xff]
  %v55 = vld [vmem:[%s0 + $0xd8] sm:$0xff]
  %v56 = vld [vmem:[%s0 + $0xe0] sm:$0xff]
  %v57 = vld [vmem:[%s0 + $0xe8] sm:$0xff]
  %v58 = vld [vmem:[%s0 + $0xf0] sm:$0xff]
  %v59 = vld [vmem:[%s0 + $0xf8] sm:$0xff]
  %v60 = vld [vmem:[%s0 + $0x100] sm:$0xff]
  %v61 = vld [vmem:[%s0 + $0x108] sm:$0xff]
  %v62 = vld [vmem:[%s0 + $0x110] sm:$0xff]
  %v63 = vld [vmem:[%s0 + $0x118] sm:$0xff]
  %v64 = vld [vmem:[%s0 + $0x120] sm:$0xff]
  %v65 = vld [vmem:[%s0 + $0x128] sm:$0xff]
  %v66 = vld [vmem:[%s0 + $0x130] sm:$0xff]
  %v67 = vld [vmem:[%s0 + $0x138] sm:$0xff]
  %v68 = vld [vmem:[%s0 + $0x140] sm:$0xff]
  %v69 = vld [vmem:[%s0 + $0x148] sm:$0xff]
  %v70 = vld [vmem:[%s0 + $0x150] sm:$0xff]
  %v71 = vld [vmem:[%s0 + $0x158] sm:$0xff]
  %v72 = vld [vmem:[%s0 + $0x160] sm:$0xff]
  %v73 = vld [vmem:[%s0 + $0x168] sm:$0xff]
  %v74 = vld [vmem:[%s0 + $0x170] sm:$0xff]
  %v75 = vld [vmem:[%s0 + $0x178] sm:$0xff]
  %v76 = vld [vmem:[%s0 + $0x180] sm:$0xff]
  %v77 = vld [vmem:[%s0 + $0x188] sm:$0xff]
  %v78 = vld [vmem:[%s0 + $0x190] sm:$0xff]
  %v79 = vld [vmem:[%s0 + $0x198] sm:$0xff]
  %v80 = vld [vmem:[%s0 + $0x1a0] sm:$0xff]
  %v81 = vld [vmem:[%s0 + $0x1a8] sm:$0xff]
  %v82 = vld [vmem:[%s0 + $0x1b0] sm:$0xff]
  %v83 = vld [vmem:[%s0 + $0x1b8] sm:$0xff]
  %v84 = vld [vmem:[%s0 + $0x1c0] sm:$0xff]
  %v85 = vld [vmem:[%s0 + $0x1c8] sm:$0xff]
  %v86 = vld [vmem:[%s0 + $0x1d0] sm:$0xff]
  %v87 = vld [vmem:[%s0 + $0x1d8] sm:$0xff]
  %v88 = vld [vmem:[%s0 + $0x1e0] sm:$0xff]
  %v89 = vld [vmem:[%s0 + $0x1e8] sm:$0xff]
  %v90 = vld [vmem:[%s0 + $0x1f0] sm:$0xff]
  %v91 = vld [vmem:[%s0 + $0x1f8] sm:$0xff]
  %v92 = vld [vmem:[%s0 + $0x200] sm:$0xff]
  %v93 = vld [vmem:[%s0 + $0x208] sm:$0xff]
  %v94 = vld [vmem:[%s0 + $0x210] sm:$0xff]
  %v95 = vld [vmem:[%s0 + $0x218] sm:$0xff]
  %v96 = vld [vmem:[%s0 + $0x220] sm:$0xff]
  %v97 = vld [vmem:[%s0 + $0x228] sm:$0xff]
  %v98 = vld [vmem:[%s0 + $0x230] sm:$0xff]
  %v99 = vld [vmem:[%s0 + $0x238] sm:$0xff]
  %v100 = vld [vmem:[%s0 + $0x240] sm:$0xff]
  %v101 = vld [vmem:[%s0 + $0x248] sm:$0xff]
  %v102 = vld [vmem:[%s0 + $0x250] sm:$0xff]
  %v103 = vld [vmem:[%s0 + $0x258] sm:$0xff]
  %v104 = vld [vmem:[%s0 + $0x260] sm:$0xff]
  %v105 = vld [vmem:[%s0 + $0x268] sm:$0xff]
  %v106 = vld [vmem:[%s0 + $0x270] sm:$0xff]
  %v107 = vld [vmem:[%s0 + $0x278] sm:$0xff]
  %v108 = vld [vmem:[%s0 + $0x280] sm:$0xff]
  %v109 = vld [vmem:[%s0 + $0x288] sm:$0xff]
  %v110 = vld [vmem:[%s0 + $0x290] sm:$0xff]
  %v111 = vld [vmem:[%s0 + $0x298] sm:$0xff]
  %v112 = vld [vmem:[%s0 + $0x2a0] sm:$0xff]
  %v113 = vld [vmem:[%s0 + $0x2a8] sm:$0xff]
  %v114 = vld [vmem:[%s0 + $0x2b0] sm:$0xff]
  %v115 = vld [vmem:[%s0 + $0x2b8] sm:$0xff]
  %v116 = vld [vmem:[%s0 + $0x2c0] sm:$0xff]
  %v117 = vld [vmem:[%s0 + $0x2c8] sm:$0xff]
  %v118 = vld [vmem:[%s0 + $0x2d0] sm:$0xff]
  %v119 = vld [vmem:[%s0 + $0x2d8] sm:$0xff]
  %v120 = vld [vmem:[%s0 + $0x2e0] sm:$0xff]
  %v121 = vld [vmem:[%s0 + $0x2e8] sm:$0xff]
  %v122 = vld [vmem:[%s0 + $0x2f0] sm:$0xff]
  %v123 = vld [vmem:[%s0 + $0x2f8] sm:$0xff]
  %v124 = vld [vmem:[%s0 + $0x300] sm:$0xff]
  %v125 = vld [vmem:[%s0 + $0x308] sm:$0xff]
  %v126 = vld [vmem:[%s0 + $0x310] sm:$0xff]
  %v127 = vld [vmem:[%s0 + $0x318] sm:$0xff]
  %v128 = vld [vmem:[%s0 + $0x320] sm:$0xff]
  %v129 = vld [vmem:[%s0 + $0x328] sm:$0xff]
  %v130 = vld [vmem:[%s0 + $0x330] sm:$0xff]
  %v131 = vld [vmem:[%s0 + $0x338] sm:$0xff]
  %v132 = vld [vmem:[%s0 + $0x340] sm:$0xff]
  %v133 = vld [vmem:[%s0 + $0x348] sm:$0xff]
  %v134 = vld [vmem:[%s0 + $0x350] sm:$0xff]
  %v135 = vld [vmem:[%s0 + $0x358] sm:$0xff]
  %v136 = vld [vmem:[%s0 + $0x360] sm:$0xff]
  %v137 = vld [vmem:[%s0 + $0x368] sm:$0xff]
  %v138 = vld [vmem:[%s0 + $0x370] sm:$0xff]
  %v139 = vld [vmem:[%s0 + $0x378] sm:$0xff]
  %v140 = vld [vmem:[%s0 + $0x380] sm:$0xff]
  %v141 = vld [vmem:[%s0 + $0x388] sm:$0xff]
  %v142 = vld [vmem:[%s0 + $0x390] sm:$0xff]
  %v143 = vld [vmem:[%s0 + $0x398] sm:$0xff]
  %v144 = vld [vmem:[%s0 + $0x3a0] sm:$0xff]
  %v145 = vld [vmem:[%s0 + $0x3a8] sm:$0xff]
  %v146 = vld [vmem:[%s0 + $0x3b0] sm:$0xff]
  %v147 = vld [vmem:[%s0 + $0x3b8] sm:$0xff]
  %v148 = vld [vmem:[%s0 + $0x3c0] sm:$0xff]
  %v149 = vld [vmem:[%s0 + $0x3c8] sm:$0xff]
  %v150 = vld [vmem:[%s0 + $0x3d0] sm:$0xff]
  %v151 = vld [vmem:[%s0 + $0x3d8] sm:$0xff]
  %v152 = vld [vmem:[%s0 + $0x3e0] sm:$0xff]
  %v153 = vld [vmem:[%s0 + $0x3e8] sm:$0xff]
  %v154 = vld [vmem:[%s0 + $0x3f0] sm:$0xff]
  %v155 = vld [vmem:[%s0 + $0x3f8] sm:$0xff]
  %v156 = vld [vmem:[%s2] sm:$0xff]
  %v157 = vld [vmem:[%s2 + $0x8] sm:$0xff]
  %v158 = vld [vmem:[%s2 + $0x10] sm:$0xff]
  %v159 = vld [vmem:[%s2 + $0x18] sm:$0xff]
  %161 = vset.pattern.permute.xlu0 0
  %162 = vperm.xlu0 %161, %v156
  %v163 = vpop.permute.xlu0 %162
  %166 = vset.pattern.permute.xlu0 0
  %167 = vperm.xlu0 %166, %v157
  %v168 = vpop.permute.xlu0 %167
  %171 = vset.pattern.permute.xlu0 0
  %172 = vperm.xlu0 %171, %v158
  %v173 = vpop.permute.xlu0 %172
  %176 = vset.pattern.permute.xlu0 0
  %177 = vperm.xlu0 %176, %v159
  %v178 = vpop.permute.xlu0 %177
  %180 = vmatprep.subr.mxu0 %v29
  %181 = vmatpush1.msra.mxu0 %v28
  %182 = vmatprep.subr.mxu0 %v33
  %183 = vmatpush1.msra.mxu0 %v32
  %184 = vmatprep.subr.mxu0 %v37
  %185 = vmatpush1.msra.mxu0 %v36
  %186 = vmatprep.subr.mxu0 %v41
  %187 = vmatpush1.msra.mxu0 %v40
  %188 = vmatprep.subr.mxu0 %v45
  %189 = vmatpush1.msra.mxu0 %v44
  %190 = vmatprep.subr.mxu0 %v49
  %191 = vmatpush1.msra.mxu0 %v48
  %192 = vmatprep.subr.mxu0 %v53
  %193 = vmatpush1.msra.mxu0 %v52
  %194 = vmatprep.subr.mxu0 %v57
  %195 = vmatpush1.msra.mxu0 %v56
  %196 = vmatprep.subr.mxu0 %v61
  %197 = vmatpush1.msra.mxu0 %v60
  %198 = vmatprep.subr.mxu0 %v65
  %199 = vmatpush1.msra.mxu0 %v64
  %200 = vmatprep.subr.mxu0 %v69
  %201 = vmatpush1.msra.mxu0 %v68
  %202 = vmatprep.subr.mxu0 %v73
  %203 = vmatpush1.msra.mxu0 %v72
  %204 = vmatprep.subr.mxu0 %v77
  %205 = vmatpush1.msra.mxu0 %v76
  %206 = vmatprep.subr.mxu0 %v81
  %207 = vmatpush1.msra.mxu0 %v80
  %208 = vmatprep.subr.mxu0 %v85
  %209 = vmatpush1.msra.mxu0 %v84
  %210 = vmatprep.subr.mxu0 %v89
  %211 = vmatpush1.msra.mxu0 %v88
  %212 = vmatprep.subr.mxu0 %v93
  %213 = vmatpush1.msra.mxu0 %v92
  %214 = vmatprep.subr.mxu0 %v97
  %215 = vmatpush1.msra.mxu0 %v96
  %216 = vmatprep.subr.mxu0 %v101
  %217 = vmatpush1.msra.mxu0 %v100
  %218 = vmatprep.subr.mxu0 %v105
  %219 = vmatpush1.msra.mxu0 %v104
  %220 = vmatprep.subr.mxu0 %v109
  %221 = vmatpush1.msra.mxu0 %v108
  %222 = vmatprep.subr.mxu0 %v113
  %223 = vmatpush1.msra.mxu0 %v112
  %224 = vmatprep.subr.mxu0 %v117
  %225 = vmatpush1.msra.mxu0 %v116
  %226 = vmatprep.subr.mxu0 %v121
  %227 = vmatpush1.msra.mxu0 %v120
  %228 = vmatprep.subr.mxu0 %v125
  %229 = vmatpush1.msra.mxu0 %v124
  %230 = vmatprep.subr.mxu0 %v129
  %231 = vmatpush1.msra.mxu0 %v128
  %232 = vmatprep.subr.mxu0 %v133
  %233 = vmatpush1.msra.mxu0 %v132
  %234 = vmatprep.subr.mxu0 %v137
  %235 = vmatpush1.msra.mxu0 %v136
  %236 = vmatprep.subr.mxu0 %v141
  %237 = vmatpush1.msra.mxu0 %v140
  %238 = vmatprep.subr.mxu0 %v145
  %239 = vmatpush1.msra.mxu0 %v144
  %240 = vmatprep.subr.mxu0 %v149
  %241 = vmatpush1.msra.mxu0 %v148
  %242 = vmatprep.subr.mxu0 %v153
  %243 = vmatpush1.msra.mxu0 %v152
  %244 = vmatprep.mubr.f32.mxu0 %v21
  %245 = vmatmul.mubr.f32.gmra.mrb[0].mxu0 %v20
  %v246 = vpop.f32.mrb[0].mxu0
  %v247 = vadd.f32 %v163, %v246
  %v248 = vpop.f32.mrb[0].mxu0
  %v249 = vadd.f32 %v163, %v248
  %250 = vmatprep.mubr.f32.mxu0 %v23
  %251 = vmatmul.mubr.f32.gmra.mrb[0].mxu0 %v22
  %v252 = vpop.f32.mrb[0].mxu0
  %v253 = vadd.f32 %v168, %v252
  %v254 = vpop.f32.mrb[0].mxu0
  %v255 = vadd.f32 %v168, %v254
  %256 = vmatprep.mubr.f32.mxu0 %v25
  %257 = vmatmul.mubr.f32.gmra.mrb[0].mxu0 %v24
  %v258 = vpop.f32.mrb[0].mxu0
  %v259 = vadd.f32 %v173, %v258
  %v260 = vpop.f32.mrb[0].mxu0
  %v261 = vadd.f32 %v173, %v260
  %262 = vmatprep.mubr.f32.mxu0 %v27
  %263 = vmatmul.mubr.f32.gmra.mrb[0].mxu0 %v26
  %v264 = vpop.f32.mrb[0].mxu0
  %v265 = vadd.f32 %v178, %v264
  %v266 = vpop.f32.mrb[0].mxu0
  %v267 = vadd.f32 %v178, %v266
  %268 = vdwg.mxu0
  %269 = vmatprep.subr.mxu0 %v31
  %270 = vmatpush1.msra.mxu0 %v30
  %271 = vmatprep.subr.mxu0 %v35
  %272 = vmatpush1.msra.mxu0 %v34
  %273 = vmatprep.subr.mxu0 %v39
  %274 = vmatpush1.msra.mxu0 %v38
  %275 = vmatprep.subr.mxu0 %v43
  %276 = vmatpush1.msra.mxu0 %v42
  %277 = vmatprep.subr.mxu0 %v47
  %278 = vmatpush1.msra.mxu0 %v46
  %279 = vmatprep.subr.mxu0 %v51
  %280 = vmatpush1.msra.mxu0 %v50
  %281 = vmatprep.subr.mxu0 %v55
  %282 = vmatpush1.msra.mxu0 %v54
  %283 = vmatprep.subr.mxu0 %v59
  %284 = vmatpush1.msra.mxu0 %v58
  %285 = vmatprep.subr.mxu0 %v63
  %286 = vmatpush1.msra.mxu0 %v62
  %287 = vmatprep.subr.mxu0 %v67
  %288 = vmatpush1.msra.mxu0 %v66
  %289 = vmatprep.subr.mxu0 %v71
  %290 = vmatpush1.msra.mxu0 %v70
  %291 = vmatprep.subr.mxu0 %v75
  %292 = vmatpush1.msra.mxu0 %v74
  %293 = vmatprep.subr.mxu0 %v79
  %294 = vmatpush1.msra.mxu0 %v78
  %295 = vmatprep.subr.mxu0 %v83
  %296 = vmatpush1.msra.mxu0 %v82
  %297 = vmatprep.subr.mxu0 %v87
  %298 = vmatpush1.msra.mxu0 %v86
  %299 = vmatprep.subr.mxu0 %v91
  %300 = vmatpush1.msra.mxu0 %v90
  %301 = vmatprep.subr.mxu0 %v95
  %302 = vmatpush1.msra.mxu0 %v94
  %303 = vmatprep.subr.mxu0 %v99
  %304 = vmatpush1.msra.mxu0 %v98
  %305 = vmatprep.subr.mxu0 %v103
  %306 = vmatpush1.msra.mxu0 %v102
  %307 = vmatprep.subr.mxu0 %v107
  %308 = vmatpush1.msra.mxu0 %v106
  %309 = vmatprep.subr.mxu0 %v111
  %310 = vmatpush1.msra.mxu0 %v110
  %311 = vmatprep.subr.mxu0 %v115
  %312 = vmatpush1.msra.mxu0 %v114
  %313 = vmatprep.subr.mxu0 %v119
  %314 = vmatpush1.msra.mxu0 %v118
  %315 = vmatprep.subr.mxu0 %v123
  %316 = vmatpush1.msra.mxu0 %v122
  %317 = vmatprep.subr.mxu0 %v127
  %318 = vmatpush1.msra.mxu0 %v126
  %319 = vmatprep.subr.mxu0 %v131
  %320 = vmatpush1.msra.mxu0 %v130
  %321 = vmatprep.subr.mxu0 %v135
  %322 = vmatpush1.msra.mxu0 %v134
  %323 = vmatprep.subr.mxu0 %v139
  %324 = vmatpush1.msra.mxu0 %v138
  %325 = vmatprep.subr.mxu0 %v143
  %326 = vmatpush1.msra.mxu0 %v142
  %327 = vmatprep.subr.mxu0 %v147
  %328 = vmatpush1.msra.mxu0 %v146
  %329 = vmatprep.subr.mxu0 %v151
  %330 = vmatpush1.msra.mxu0 %v150
  %331 = vmatprep.subr.mxu0 %v155
  %332 = vmatpush1.msra.mxu0 %v154
  %333 = vmatprep.mubr.f32.mxu0 %v21
  %334 = vmatmul.mubr.f32.gmra.mrb[0].mxu0 %v20
  %v335 = vpop.f32.mrb[0].mxu0
  %v336 = vadd.f32 %v163, %v335
  %v337 = vpop.f32.mrb[0].mxu0
  %v338 = vadd.f32 %v163, %v337
  %339 = vmatprep.mubr.f32.mxu0 %v23
  %340 = vmatmul.mubr.f32.gmra.mrb[0].mxu0 %v22
  %v341 = vpop.f32.mrb[0].mxu0
  %v342 = vadd.f32 %v168, %v341
  %v343 = vpop.f32.mrb[0].mxu0
  %v344 = vadd.f32 %v168, %v343
  %345 = vmatprep.mubr.f32.mxu0 %v25
  %346 = vmatmul.mubr.f32.gmra.mrb[0].mxu0 %v24
  %v347 = vpop.f32.mrb[0].mxu0
  %v348 = vadd.f32 %v173, %v347
  %v349 = vpop.f32.mrb[0].mxu0
  %v350 = vadd.f32 %v173, %v349
  %351 = vmatprep.mubr.f32.mxu0 %v27
  %352 = vmatmul.mubr.f32.gmra.mrb[0].mxu0 %v26
  %v353 = vpop.f32.mrb[0].mxu0
  %v354 = vadd.f32 %v178, %v353
  %v355 = vpop.f32.mrb[0].mxu0
  %v356 = vadd.f32 %v178, %v355
  %357 = vdwg.mxu0
  %v358 = vadd.f32 %v247, %v249
  %v359 = vadd.f32 %v358, %v336
  %v360 = vadd.f32 %v359, %v338
  %361 = vadd.xlane.f32.xlu0 %v360
  %v362 = vpop.xlane.xlu0 %361
  %v363 = vadd.f32 %v253, %v255
  %v364 = vadd.f32 %v363, %v342
  %v365 = vadd.f32 %v364, %v344
  %366 = vadd.xlane.f32.xlu0 %v365
  %v367 = vpop.xlane.xlu0 %366
  %v368 = vadd.f32 %v259, %v261
  %v369 = vadd.f32 %v368, %v348
  %v370 = vadd.f32 %v369, %v350
  %371 = vadd.xlane.f32.xlu0 %v370
  %v372 = vpop.xlane.xlu0 %371
  %v373 = vadd.f32 %v265, %v267
  %v374 = vadd.f32 %v373, %v354
  %v375 = vadd.f32 %v374, %v356
  %376 = vadd.xlane.f32.xlu0 %v375
  %v377 = vpop.xlane.xlu0 %376
  %v378 = vrcp.pop 512.0
  %v379 = vmul.f32 %v362, %v378
  %v380 = vmul.f32 %v367, %v378
  %v381 = vmul.f32 %v372, %v378
  %v382 = vmul.f32 %v377, %v378
  %v383 = vsub.f32 %v247, %v379
  %v384 = vsub.f32 %v249, %v379
  %v385 = vsub.f32 %v336, %v379
  %v386 = vsub.f32 %v338, %v379
  %v387 = vsub.f32 %v253, %v380
  %v388 = vsub.f32 %v255, %v380
  %v389 = vsub.f32 %v342, %v380
  %v390 = vsub.f32 %v344, %v380
  %v391 = vsub.f32 %v259, %v381
  %v392 = vsub.f32 %v261, %v381
  %v393 = vsub.f32 %v348, %v381
  %v394 = vsub.f32 %v350, %v381
  %v395 = vsub.f32 %v265, %v382
  %v396 = vsub.f32 %v267, %v382
  %v397 = vsub.f32 %v354, %v382
  %v398 = vsub.f32 %v356, %v382
  %v399 = vmul.f32 %v383, %v383
  %v400 = vmul.f32 %v384, %v384
  %v401 = vmul.f32 %v385, %v385
  %v402 = vmul.f32 %v386, %v386
  %v403 = vmul.f32 %v387, %v387
  %v404 = vmul.f32 %v388, %v388
  %v405 = vmul.f32 %v389, %v389
  %v406 = vmul.f32 %v390, %v390
  %v407 = vmul.f32 %v391, %v391
  %v408 = vmul.f32 %v392, %v392
  %v409 = vmul.f32 %v393, %v393
  %v410 = vmul.f32 %v394, %v394
  %v411 = vmul.f32 %v395, %v395
  %v412 = vmul.f32 %v396, %v396
  %v413 = vmul.f32 %v397, %v397
  %v414 = vmul.f32 %v398, %v398
  %v415 = vadd.f32 %v399, %v400
  %v416 = vadd.f32 %v415, %v401
  %v417 = vadd.f32 %v416, %v402
  %418 = vadd.xlane.f32.xlu0 %v417
  %v419 = vpop.xlane.xlu0 %418
  %v420 = vadd.f32 %v403, %v404
  %v421 = vadd.f32 %v420, %v405
  %v422 = vadd.f32 %v421, %v406
  %423 = vadd.xlane.f32.xlu0 %v422
  %v424 = vpop.xlane.xlu0 %423
  %v425 = vadd.f32 %v407, %v408
  %v426 = vadd.f32 %v425, %v409
  %v427 = vadd.f32 %v426, %v410
  %428 = vadd.xlane.f32.xlu0 %v427
  %v429 = vpop.xlane.xlu0 %428
  %v430 = vadd.f32 %v411, %v412
  %v431 = vadd.f32 %v430, %v413
  %v432 = vadd.f32 %v431, %v414
  %433 = vadd.xlane.f32.xlu0 %v432
  %v434 = vpop.xlane.xlu0 %433
  %v435 = vmul.f32 %v419, %v378
  %v436 = vmul.f32 %v424, %v378
  %v437 = vmul.f32 %v429, %v378
  %v438 = vmul.f32 %v434, %v378
  %v439 = vld [vmem:[%s3] sm:$0xff]
  %v440 = vld [vmem:[%s3 + $0x8] sm:$0xff]
  %v441 = vld [vmem:[%s3 + $0x10] sm:$0xff]
  %v442 = vld [vmem:[%s3 + $0x18] sm:$0xff]
  %v443 = vadd.f32 %v435, 1e-05
  %v444 = vadd.f32 %v436, 1e-05
  %v445 = vadd.f32 %v437, 1e-05
  %v446 = vadd.f32 %v438, 1e-05
  %v447 = vrsqrt.pop %v443
  %v448 = vrsqrt.pop %v444
  %v449 = vrsqrt.pop %v445
  %v450 = vrsqrt.pop %v446
  %v451 = vmul.f32 %v439, %v447
  %v452 = vmul.f32 %v440, %v448
  %v453 = vmul.f32 %v441, %v449
  %v454 = vmul.f32 %v442, %v450
  %456 = vset.pattern.permute.xlu0 0
  %457 = vperm.xlu0 %456, %v451
  %v458 = vpop.permute.xlu0 %457
  %461 = vset.pattern.permute.xlu0 0
  %462 = vperm.xlu0 %461, %v452
  %v463 = vpop.permute.xlu0 %462
  %466 = vset.pattern.permute.xlu0 0
  %467 = vperm.xlu0 %466, %v453
  %v468 = vpop.permute.xlu0 %467
  %471 = vset.pattern.permute.xlu0 0
  %472 = vperm.xlu0 %471, %v454
  %v473 = vpop.permute.xlu0 %472
  %v475 = vmul.f32 %v383, %v458
  %v476 = vmul.f32 %v384, %v458
  %v477 = vmul.f32 %v385, %v458
  %v478 = vmul.f32 %v386, %v458
  %v479 = vmul.f32 %v387, %v463
  %v480 = vmul.f32 %v388, %v463
  %v481 = vmul.f32 %v389, %v463
  %v482 = vmul.f32 %v390, %v463
  %v483 = vmul.f32 %v391, %v468
  %v484 = vmul.f32 %v392, %v468
  %v485 = vmul.f32 %v393, %v468
  %v486 = vmul.f32 %v394, %v468
  %v487 = vmul.f32 %v395, %v473
  %v488 = vmul.f32 %v396, %v473
  %v489 = vmul.f32 %v397, %v473
  %v490 = vmul.f32 %v398, %v473
  %v491 = vld [vmem:[%s4] sm:$0xff]
  %v492 = vld [vmem:[%s4 + $0x8] sm:$0xff]
  %v493 = vld [vmem:[%s4 + $0x10] sm:$0xff]
  %v494 = vld [vmem:[%s4 + $0x18] sm:$0xff]
  %496 = vset.pattern.permute.xlu0 0
  %497 = vperm.xlu0 %496, %v491
  %v498 = vpop.permute.xlu0 %497
  %501 = vset.pattern.permute.xlu0 0
  %502 = vperm.xlu0 %501, %v492
  %v503 = vpop.permute.xlu0 %502
  %506 = vset.pattern.permute.xlu0 0
  %507 = vperm.xlu0 %506, %v493
  %v508 = vpop.permute.xlu0 %507
  %511 = vset.pattern.permute.xlu0 0
  %512 = vperm.xlu0 %511, %v494
  %v513 = vpop.permute.xlu0 %512
  %v515 = vadd.f32 %v475, %v498
  %v516 = vadd.f32 %v476, %v498
  %v517 = vadd.f32 %v477, %v498
  %v518 = vadd.f32 %v478, %v498
  %v519 = vadd.f32 %v479, %v503
  %v520 = vadd.f32 %v480, %v503
  %v521 = vadd.f32 %v481, %v503
  %v522 = vadd.f32 %v482, %v503
  %v523 = vadd.f32 %v483, %v508
  %v524 = vadd.f32 %v484, %v508
  %v525 = vadd.f32 %v485, %v508
  %v526 = vadd.f32 %v486, %v508
  %v527 = vadd.f32 %v487, %v513
  %v528 = vadd.f32 %v488, %v513
  %v529 = vadd.f32 %v489, %v513
  %v530 = vadd.f32 %v490, %v513
  %vm531 = vcmp.ge.f32.partialorder %v515, 0.0
  %vm532 = vcmp.ge.f32.partialorder %v516, 0.0
  %vm533 = vcmp.ge.f32.partialorder %v517, 0.0
  %vm534 = vcmp.ge.f32.partialorder %v518, 0.0
  %vm535 = vcmp.ge.f32.partialorder %v519, 0.0
  %vm536 = vcmp.ge.f32.partialorder %v520, 0.0
  %vm537 = vcmp.ge.f32.partialorder %v521, 0.0
  %vm538 = vcmp.ge.f32.partialorder %v522, 0.0
  %vm539 = vcmp.ge.f32.partialorder %v523, 0.0
  %vm540 = vcmp.ge.f32.partialorder %v524, 0.0
  %vm541 = vcmp.ge.f32.partialorder %v525, 0.0
  %vm542 = vcmp.ge.f32.partialorder %v526, 0.0
  %vm543 = vcmp.ge.f32.partialorder %v527, 0.0
  %vm544 = vcmp.ge.f32.partialorder %v528, 0.0
  %vm545 = vcmp.ge.f32.partialorder %v529, 0.0
  %vm546 = vcmp.ge.f32.partialorder %v530, 0.0
  %v547 = vmul.f32 %v515, 0.2
  %v548 = vmul.f32 %v516, 0.2
  %v549 = vmul.f32 %v517, 0.2
  %v550 = vmul.f32 %v518, 0.2
  %v551 = vmul.f32 %v519, 0.2
  %v552 = vmul.f32 %v520, 0.2
  %v553 = vmul.f32 %v521, 0.2
  %v554 = vmul.f32 %v522, 0.2
  %v555 = vmul.f32 %v523, 0.2
  %v556 = vmul.f32 %v524, 0.2
  %v557 = vmul.f32 %v525, 0.2
  %v558 = vmul.f32 %v526, 0.2
  %v559 = vmul.f32 %v527, 0.2
  %v560 = vmul.f32 %v528, 0.2
  %v561 = vmul.f32 %v529, 0.2
  %v562 = vmul.f32 %v530, 0.2
  %v563 = vsel %vm531, %v515, %v547
  %v564 = vsel %vm532, %v516, %v548
  %v565 = vsel %vm533, %v517, %v549
  %v566 = vsel %vm534, %v518, %v550
  %v567 = vsel %vm535, %v519, %v551
  %v568 = vsel %vm536, %v520, %v552
  %v569 = vsel %vm537, %v521, %v553
  %v570 = vsel %vm538, %v522, %v554
  %v571 = vsel %vm539, %v523, %v555
  %v572 = vsel %vm540, %v524, %v556
  %v573 = vsel %vm541, %v525, %v557
  %v574 = vsel %vm542, %v526, %v558
  %v575 = vsel %vm543, %v527, %v559
  %v576 = vsel %vm544, %v528, %v560
  %v577 = vsel %vm545, %v529, %v561
  %v578 = vsel %vm546, %v530, %v562
  %579 = vst [vmem:[%s5] sm:$0xff] %v563
  %580 = vst [vmem:[%s5 + $0x8] sm:$0xff] %v564
  %581 = vst [vmem:[%s5 + $0x10] sm:$0xff] %v565
  %582 = vst [vmem:[%s5 + $0x18] sm:$0xff] %v566
  %583 = vst [vmem:[%s5 + $0x20] sm:$0xff] %v567
  %584 = vst [vmem:[%s5 + $0x28] sm:$0xff] %v568
  %585 = vst [vmem:[%s5 + $0x30] sm:$0xff] %v569
  %586 = vst [vmem:[%s5 + $0x38] sm:$0xff] %v570
  %587 = vst [vmem:[%s5 + $0x40] sm:$0xff] %v571
  %588 = vst [vmem:[%s5 + $0x48] sm:$0xff] %v572
  %589 = vst [vmem:[%s5 + $0x50] sm:$0xff] %v573
  %590 = vst [vmem:[%s5 + $0x58] sm:$0xff] %v574
  %591 = vst [vmem:[%s5 + $0x60] sm:$0xff] %v575
  %592 = vst [vmem:[%s5 + $0x68] sm:$0xff] %v576
  %593 = vst [vmem:[%s5 + $0x70] sm:$0xff] %v577
  %594 = vst [vmem:[%s5 + $0x78] sm:$0xff] %v578
  // Predicated region
  $region22: #{model_d_forward.6} parent=0 // pred_check
    _
  $region23: #{model_d_forward.6} parent=0 // pred_check_branch
    %596 = sbr.rel (0) target = $region25
  $region24: #{model_d_forward.6} parent=0 // pred_region
    _
  $region25: #{model_d_forward.6} parent=0 // pred_fallthru
    _
  // Predicated region
  $region26: #{model_d_forward.6} parent=0 // pred_check
    _
  $region27: #{model_d_forward.6} parent=0 // pred_check_branch
    %598 = sbr.rel (0) target = $region29
  $region28: #{model_d_forward.6} parent=0 // pred_region
    _
  $region29: #{model_d_forward.6} parent=0 // pred_fallthru
    _

// kernel: tile.7
$region0: #{tile.7}
  %s0 = inlined_call_operand.vmem [shape: f32[10,2,64], index: 0, kind: input, shape index: {}]
  %s1 = inlined_call_operand.vmem [shape: f32[10,128], index: 1, kind: output, shape index: {}]
  $region1: #{tile.7} parent=0
    #allocation0 [shape = 'u8[40960]{0}', space=vmem, size = 0xa000, scoped, tag = 'scoped mem for input reshape']
    %s3 = sshllo.u32 0, 2
    %s4 = smul.addr 2, 9
    %s5 = scalar_lea.vmem %s0, %s4
    %v6 = vld [vmem:[%s5] sm:%s3]
    %s7 = scalar_lea.vmem [#allocation0], 72
    %8 = vst [vmem:[%s7] sm:%s3] %v6
    %s9 = smul.addr 2, 8
    %s10 = scalar_lea.vmem %s0, %s9
    %v11 = vld [vmem:[%s10] sm:%s3]
    %s12 = scalar_lea.vmem [#allocation0], 64
    %13 = vst [vmem:[%s12] sm:%s3] %v11
    %s14 = smul.addr 2, 7
    %s15 = scalar_lea.vmem %s0, %s14
    %v16 = vld [vmem:[%s15] sm:%s3]
    %s17 = scalar_lea.vmem [#allocation0], 56
    %18 = vst [vmem:[%s17] sm:%s3] %v16
    %s19 = smul.addr 2, 6
    %s20 = scalar_lea.vmem %s0, %s19
    %v21 = vld [vmem:[%s20] sm:%s3]
    %s22 = scalar_lea.vmem [#allocation0], 48
    %23 = vst [vmem:[%s22] sm:%s3] %v21
    %s24 = smul.addr 2, 5
    %s25 = scalar_lea.vmem %s0, %s24
    %v26 = vld [vmem:[%s25] sm:%s3]
    %s27 = scalar_lea.vmem [#allocation0], 40
    %28 = vst [vmem:[%s27] sm:%s3] %v26
    %s29 = smul.addr 2, 4
    %s30 = scalar_lea.vmem %s0, %s29
    %v31 = vld [vmem:[%s30] sm:%s3]
    %s32 = scalar_lea.vmem [#allocation0], 32
    %33 = vst [vmem:[%s32] sm:%s3] %v31
    %s34 = smul.addr 2, 3
    %s35 = scalar_lea.vmem %s0, %s34
    %v36 = vld [vmem:[%s35] sm:%s3]
    %s37 = scalar_lea.vmem [#allocation0], 24
    %38 = vst [vmem:[%s37] sm:%s3] %v36
    %s39 = smul.addr 2, 2
    %s40 = scalar_lea.vmem %s0, %s39
    %v41 = vld [vmem:[%s40] sm:%s3]
    %s42 = scalar_lea.vmem [#allocation0], 16
    %43 = vst [vmem:[%s42] sm:%s3] %v41
    %s44 = scalar_lea.vmem %s0, 2
    %v45 = vld [vmem:[%s44] sm:%s3]
    %s46 = scalar_lea.vmem [#allocation0], 8
    %47 = vst [vmem:[%s46] sm:%s3] %v45
    %v48 = vld [vmem:[%s0] sm:%s3]
    %49 = vst [vmem:[#allocation0] sm:%s3] %v48
    %v50 = vld [vmem:[#allocation0] ss:$8 sm:$0xf]
    %v51 = vld [vmem:[#allocation0] ss:$8 sm:$0xf0]
    %vm52 = vcmask 1047556
    %v53 = vsel %vm52, %v51, %v50
    %vm54 = vcmask 523264
    %55 = vst.msk [vmem:[%s1] sm:$0xff] %vm54, %v53
    %s56 = scalar_lea.vmem [#allocation0], 64
    %s57 = smov 3
    %v58 = vld [vmem:[%s56] ss:$8 sm:%s57]
    %vm59 = vcmask 523264
    %s60 = scalar_lea.vmem %s1, 8
    %61 = vst.msk [vmem:[%s60] sm:$0x3] %vm59, %v58
    %s62 = scalar_lea.vmem [#allocation0], 1
    %v63 = vld [vmem:[%s62] ss:$8 sm:$0xf]
    %s64 = scalar_lea.vmem [#allocation0], 1
    %v65 = vld [vmem:[%s64] ss:$8 sm:$0xf0]
    %vm66 = vcmask 1047556
    %v67 = vsel %vm66, %v65, %v63
    %68 = vrot.lane.b32.xlu0 %v67, 64
    %v69 = vpop.permute.xlu0 %68
    %vm70 = vcmask 1048064
    %71 = vst.msk [vmem:[%s1] sm:$0xff] %vm70, %v69
    %s72 = scalar_lea.vmem [#allocation0], 65
    %s73 = smov 3
    %v74 = vld [vmem:[%s72] ss:$8 sm:%s73]
    %75 = vrot.lane.b32.xlu0 %v74, 64
    %v76 = vpop.permute.xlu0 %75
    %vm77 = vcmask 1048064
    %s78 = scalar_lea.vmem %s1, 8
    %79 = vst.msk [vmem:[%s78] sm:$0x3] %vm77, %v76

// kernel: model_d_forward.7
$region0: #{model_d_forward.7}
  #allocation0 [shape = 'u32[]', space=smem, size = 0x4, offset = 0x4, fixed_abs, tag = 'smem constant byte address 0x4 - core index']
  #allocation1 [shape = 'u32[144,128]{1,0:T(1,128)}', space=vmem, size = 0x12000, scoped, tag = 'internal scratch']
  #allocation2 [shape = 'f32[1,1]{1,0:T(1,128)S(1)}', space=vmem, size = 0x200, scoped, tag = 'scoped memory for model_d_forward.7']
  %s0 = inlined_call_operand.vmem [shape: f32[512,128], index: 0, kind: input, shape index: {}]
  %s1 = inlined_call_operand.vmem [shape: f32[10,512], index: 1, kind: input, shape index: {}]
  %s2 = inlined_call_operand.vmem [shape: f32[10,1], index: 2, kind: input, shape index: {}]
  %s3 = inlined_call_operand.vmem [shape: f32[10,128], index: 3, kind: input, shape index: {}]
  %s4 = inlined_call_operand.<no memory space> [shape: f32[1,1], index: 4, kind: input, shape index: {}]
  %s5 = inlined_call_operand.vmem [shape: f32[2,1], index: 5, kind: output, shape index: {}]
  %s6 = sld [smem:[#allocation0]]
  $region30: #{model_d_forward.7} parent=0
    _
  %s8 = ssub.s32 1, %s6
  %s9 = scalar_select 0, %s8, %s6
  %v10 = vstv %s4
  %11 = vst [vmem:[#allocation2] sm:$0x1] %v10
  // Predicated region
  $region2: #{model_d_forward.7} parent=0 // pred_check
    _
  $region3: #{model_d_forward.7} parent=0 // pred_check_branch
    %13 = sbr.rel (0) target = $region5
  $region4: #{model_d_forward.7} parent=0 // pred_region
    _
  $region5: #{model_d_forward.7} parent=0 // pred_fallthru
    _
  // Predicated region
  $region6: #{model_d_forward.7} parent=0 // pred_check
    _
  $region7: #{model_d_forward.7} parent=0 // pred_check_branch
    %15 = sbr.rel (0) target = $region9
  $region8: #{model_d_forward.7} parent=0 // pred_region
    _
  $region9: #{model_d_forward.7} parent=0 // pred_fallthru
    _
  // Predicated region
  $region10: #{model_d_forward.7} parent=0 // pred_check
    _
  $region11: #{model_d_forward.7} parent=0 // pred_check_branch
    %17 = sbr.rel (0) target = $region13
  $region12: #{model_d_forward.7} parent=0 // pred_region
    _
  $region13: #{model_d_forward.7} parent=0 // pred_fallthru
    _
  // Predicated region
  $region14: #{model_d_forward.7} parent=0 // pred_check
    _
  $region15: #{model_d_forward.7} parent=0 // pred_check_branch
    %19 = sbr.rel (0) target = $region17
  $region16: #{model_d_forward.7} parent=0 // pred_region
    _
  $region17: #{model_d_forward.7} parent=0 // pred_fallthru
    _
  // Predicated region
  $region18: #{model_d_forward.7} parent=0 // pred_check
    _
  $region19: #{model_d_forward.7} parent=0 // pred_check_branch
    %21 = sbr.rel (0) target = $region21
  $region20: #{model_d_forward.7} parent=0 // pred_region
    _
  $region21: #{model_d_forward.7} parent=0 // pred_fallthru
    _
  %v22 = vld [vmem:[%s1] sm:$0xff]
  %v23 = vld [vmem:[%s1 + $0x8] sm:$0xff]
  %v24 = vld [vmem:[%s1 + $0x10] sm:$0xff]
  %v25 = vld [vmem:[%s1 + $0x18] sm:$0xff]
  %v26 = vld [vmem:[%s1 + $0x20] sm:$0x3]
  %v27 = vld [vmem:[%s1 + $0x28] sm:$0x3]
  %v28 = vld [vmem:[%s1 + $0x30] sm:$0x3]
  %v29 = vld [vmem:[%s1 + $0x38] sm:$0x3]
  %v30 = vld [vmem:[%s0] sm:$0xff]
  %v31 = vld [vmem:[%s0 + $0x8] sm:$0xff]
  %v32 = vld [vmem:[%s0 + $0x10] sm:$0xff]
  %v33 = vld [vmem:[%s0 + $0x18] sm:$0xff]
  %v34 = vld [vmem:[%s0 + $0x20] sm:$0xff]
  %v35 = vld [vmem:[%s0 + $0x28] sm:$0xff]
  %v36 = vld [vmem:[%s0 + $0x30] sm:$0xff]
  %v37 = vld [vmem:[%s0 + $0x38] sm:$0xff]
  %v38 = vld [vmem:[%s0 + $0x40] sm:$0xff]
  %v39 = vld [vmem:[%s0 + $0x48] sm:$0xff]
  %v40 = vld [vmem:[%s0 + $0x50] sm:$0xff]
  %v41 = vld [vmem:[%s0 + $0x58] sm:$0xff]
  %v42 = vld [vmem:[%s0 + $0x60] sm:$0xff]
  %v43 = vld [vmem:[%s0 + $0x68] sm:$0xff]
  %v44 = vld [vmem:[%s0 + $0x70] sm:$0xff]
  %v45 = vld [vmem:[%s0 + $0x78] sm:$0xff]
  %v46 = vld [vmem:[%s0 + $0x80] sm:$0xff]
  %v47 = vld [vmem:[%s0 + $0x88] sm:$0xff]
  %v48 = vld [vmem:[%s0 + $0x90] sm:$0xff]
  %v49 = vld [vmem:[%s0 + $0x98] sm:$0xff]
  %v50 = vld [vmem:[%s0 + $0xa0] sm:$0xff]
  %v51 = vld [vmem:[%s0 + $0xa8] sm:$0xff]
  %v52 = vld [vmem:[%s0 + $0xb0] sm:$0xff]
  %v53 = vld [vmem:[%s0 + $0xb8] sm:$0xff]
  %v54 = vld [vmem:[%s0 + $0xc0] sm:$0xff]
  %v55 = vld [vmem:[%s0 + $0xc8] sm:$0xff]
  %v56 = vld [vmem:[%s0 + $0xd0] sm:$0xff]
  %v57 = vld [vmem:[%s0 + $0xd8] sm:$0xff]
  %v58 = vld [vmem:[%s0 + $0xe0] sm:$0xff]
  %v59 = vld [vmem:[%s0 + $0xe8] sm:$0xff]
  %v60 = vld [vmem:[%s0 + $0xf0] sm:$0xff]
  %v61 = vld [vmem:[%s0 + $0xf8] sm:$0xff]
  %v62 = vld [vmem:[%s0 + $0x100] sm:$0xff]
  %v63 = vld [vmem:[%s0 + $0x108] sm:$0xff]
  %v64 = vld [vmem:[%s0 + $0x110] sm:$0xff]
  %v65 = vld [vmem:[%s0 + $0x118] sm:$0xff]
  %v66 = vld [vmem:[%s0 + $0x120] sm:$0xff]
  %v67 = vld [vmem:[%s0 + $0x128] sm:$0xff]
  %v68 = vld [vmem:[%s0 + $0x130] sm:$0xff]
  %v69 = vld [vmem:[%s0 + $0x138] sm:$0xff]
  %v70 = vld [vmem:[%s0 + $0x140] sm:$0xff]
  %v71 = vld [vmem:[%s0 + $0x148] sm:$0xff]
  %v72 = vld [vmem:[%s0 + $0x150] sm:$0xff]
  %v73 = vld [vmem:[%s0 + $0x158] sm:$0xff]
  %v74 = vld [vmem:[%s0 + $0x160] sm:$0xff]
  %v75 = vld [vmem:[%s0 + $0x168] sm:$0xff]
  %v76 = vld [vmem:[%s0 + $0x170] sm:$0xff]
  %v77 = vld [vmem:[%s0 + $0x178] sm:$0xff]
  %v78 = vld [vmem:[%s0 + $0x180] sm:$0xff]
  %v79 = vld [vmem:[%s0 + $0x188] sm:$0xff]
  %v80 = vld [vmem:[%s0 + $0x190] sm:$0xff]
  %v81 = vld [vmem:[%s0 + $0x198] sm:$0xff]
  %v82 = vld [vmem:[%s0 + $0x1a0] sm:$0xff]
  %v83 = vld [vmem:[%s0 + $0x1a8] sm:$0xff]
  %v84 = vld [vmem:[%s0 + $0x1b0] sm:$0xff]
  %v85 = vld [vmem:[%s0 + $0x1b8] sm:$0xff]
  %v86 = vld [vmem:[%s0 + $0x1c0] sm:$0xff]
  %v87 = vld [vmem:[%s0 + $0x1c8] sm:$0xff]
  %v88 = vld [vmem:[%s0 + $0x1d0] sm:$0xff]
  %v89 = vld [vmem:[%s0 + $0x1d8] sm:$0xff]
  %v90 = vld [vmem:[%s0 + $0x1e0] sm:$0xff]
  %v91 = vld [vmem:[%s0 + $0x1e8] sm:$0xff]
  %v92 = vld [vmem:[%s0 + $0x1f0] sm:$0xff]
  %v93 = vld [vmem:[%s0 + $0x1f8] sm:$0xff]
  %v94 = vld [vmem:[%s2] sm:$0xff]
  %v95 = vld [vmem:[%s2 + $0x8] sm:$0x3]
  %97 = vset.pattern.permute.xlu0 0
  %98 = vperm.xlu0 %97, %v94
  %v99 = vpop.permute.xlu0 %98
  %102 = vset.pattern.permute.xlu0 0
  %103 = vperm.xlu0 %102, %v95
  %v104 = vpop.permute.xlu0 %103
  %106 = vmatprep.subr.mxu0 0.0
  %107 = vmatpush1.msra.mxu0 %v30
  %108 = vmatprep.subr.mxu0 0.0
  %109 = vmatpush1.msra.mxu0 %v31
  %110 = vmatprep.subr.mxu0 0.0
  %111 = vmatpush1.msra.mxu0 %v32
  %112 = vmatprep.subr.mxu0 0.0
  %113 = vmatpush1.msra.mxu0 %v33
  %114 = vmatprep.subr.mxu0 0.0
  %115 = vmatpush1.msra.mxu0 %v34
  %116 = vmatprep.subr.mxu0 0.0
  %117 = vmatpush1.msra.mxu0 %v35
  %118 = vmatprep.subr.mxu0 0.0
  %119 = vmatpush1.msra.mxu0 %v36
  %120 = vmatprep.subr.mxu0 0.0
  %121 = vmatpush1.msra.mxu0 %v37
  %122 = vmatprep.subr.mxu0 0.0
  %123 = vmatpush1.msra.mxu0 %v38
  %124 = vmatprep.subr.mxu0 0.0
  %125 = vmatpush1.msra.mxu0 %v39
  %126 = vmatprep.subr.mxu0 0.0
  %127 = vmatpush1.msra.mxu0 %v40
  %128 = vmatprep.subr.mxu0 0.0
  %129 = vmatpush1.msra.mxu0 %v41
  %130 = vmatprep.subr.mxu0 0.0
  %131 = vmatpush1.msra.mxu0 %v42
  %132 = vmatprep.subr.mxu0 0.0
  %133 = vmatpush1.msra.mxu0 %v43
  %134 = vmatprep.subr.mxu0 0.0
  %135 = vmatpush1.msra.mxu0 %v44
  %136 = vmatprep.subr.mxu0 0.0
  %137 = vmatpush1.msra.mxu0 %v45
  %138 = vmatprep.subr.mxu0 0.0
  %139 = vmatpush1.msra.mxu0 %v46
  %140 = vmatprep.subr.mxu0 0.0
  %141 = vmatpush1.msra.mxu0 %v47
  %142 = vmatprep.subr.mxu0 0.0
  %143 = vmatpush1.msra.mxu0 %v48
  %144 = vmatprep.subr.mxu0 0.0
  %145 = vmatpush1.msra.mxu0 %v49
  %146 = vmatprep.subr.mxu0 0.0
  %147 = vmatpush1.msra.mxu0 %v50
  %148 = vmatprep.subr.mxu0 0.0
  %149 = vmatpush1.msra.mxu0 %v51
  %150 = vmatprep.subr.mxu0 0.0
  %151 = vmatpush1.msra.mxu0 %v52
  %152 = vmatprep.subr.mxu0 0.0
  %153 = vmatpush1.msra.mxu0 %v53
  %154 = vmatprep.subr.mxu0 0.0
  %155 = vmatpush1.msra.mxu0 %v54
  %156 = vmatprep.subr.mxu0 0.0
  %157 = vmatpush1.msra.mxu0 %v55
  %158 = vmatprep.subr.mxu0 0.0
  %159 = vmatpush1.msra.mxu0 %v56
  %160 = vmatprep.subr.mxu0 0.0
  %161 = vmatpush1.msra.mxu0 %v57
  %162 = vmatprep.subr.mxu0 0.0
  %163 = vmatpush1.msra.mxu0 %v58
  %164 = vmatprep.subr.mxu0 0.0
  %165 = vmatpush1.msra.mxu0 %v59
  %166 = vmatprep.subr.mxu0 0.0
  %167 = vmatpush1.msra.mxu0 %v60
  %168 = vmatprep.subr.mxu0 0.0
  %169 = vmatpush1.msra.mxu0 %v61
  %170 = vmatprep.mubr.f32.mxu0 %v23
  %171 = vmatmul.mubr.f32.gmra.mrb[0].mxu0 %v22
  %v172 = vpop.f32.mrb[0].mxu0
  %v173 = vadd.f32 %v99, %v172
  %v174 = vpop.f32.mrb[0].mxu0
  %175 = vmatprep.mubr.f32.mxu0 %v27
  %176 = vmatmul.mubr.f32.gmra.mrb[0].mxu0 %v26
  %v177 = vpop.f32.mrb[0].mxu0
  %v178 = vadd.f32 %v104, %v177
  %v179 = vpop.f32.mrb[0].mxu0
  %180 = vdwg.mxu0
  %181 = vmatprep.subr.mxu0 0.0
  %182 = vmatpush1.msra.mxu0 %v62
  %183 = vmatprep.subr.mxu0 0.0
  %184 = vmatpush1.msra.mxu0 %v63
  %185 = vmatprep.subr.mxu0 0.0
  %186 = vmatpush1.msra.mxu0 %v64
  %187 = vmatprep.subr.mxu0 0.0
  %188 = vmatpush1.msra.mxu0 %v65
  %189 = vmatprep.subr.mxu0 0.0
  %190 = vmatpush1.msra.mxu0 %v66
  %191 = vmatprep.subr.mxu0 0.0
  %192 = vmatpush1.msra.mxu0 %v67
  %193 = vmatprep.subr.mxu0 0.0
  %194 = vmatpush1.msra.mxu0 %v68
  %195 = vmatprep.subr.mxu0 0.0
  %196 = vmatpush1.msra.mxu0 %v69
  %197 = vmatprep.subr.mxu0 0.0
  %198 = vmatpush1.msra.mxu0 %v70
  %199 = vmatprep.subr.mxu0 0.0
  %200 = vmatpush1.msra.mxu0 %v71
  %201 = vmatprep.subr.mxu0 0.0
  %202 = vmatpush1.msra.mxu0 %v72
  %203 = vmatprep.subr.mxu0 0.0
  %204 = vmatpush1.msra.mxu0 %v73
  %205 = vmatprep.subr.mxu0 0.0
  %206 = vmatpush1.msra.mxu0 %v74
  %207 = vmatprep.subr.mxu0 0.0
  %208 = vmatpush1.msra.mxu0 %v75
  %209 = vmatprep.subr.mxu0 0.0
  %210 = vmatpush1.msra.mxu0 %v76
  %211 = vmatprep.subr.mxu0 0.0
  %212 = vmatpush1.msra.mxu0 %v77
  %213 = vmatprep.subr.mxu0 0.0
  %214 = vmatpush1.msra.mxu0 %v78
  %215 = vmatprep.subr.mxu0 0.0
  %216 = vmatpush1.msra.mxu0 %v79
  %217 = vmatprep.subr.mxu0 0.0
  %218 = vmatpush1.msra.mxu0 %v80
  %219 = vmatprep.subr.mxu0 0.0
  %220 = vmatpush1.msra.mxu0 %v81
  %221 = vmatprep.subr.mxu0 0.0
  %222 = vmatpush1.msra.mxu0 %v82
  %223 = vmatprep.subr.mxu0 0.0
  %224 = vmatpush1.msra.mxu0 %v83
  %225 = vmatprep.subr.mxu0 0.0
  %226 = vmatpush1.msra.mxu0 %v84
  %227 = vmatprep.subr.mxu0 0.0
  %228 = vmatpush1.msra.mxu0 %v85
  %229 = vmatprep.subr.mxu0 0.0
  %230 = vmatpush1.msra.mxu0 %v86
  %231 = vmatprep.subr.mxu0 0.0
  %232 = vmatpush1.msra.mxu0 %v87
  %233 = vmatprep.subr.mxu0 0.0
  %234 = vmatpush1.msra.mxu0 %v88
  %235 = vmatprep.subr.mxu0 0.0
  %236 = vmatpush1.msra.mxu0 %v89
  %237 = vmatprep.subr.mxu0 0.0
  %238 = vmatpush1.msra.mxu0 %v90
  %239 = vmatprep.subr.mxu0 0.0
  %240 = vmatpush1.msra.mxu0 %v91
  %241 = vmatprep.subr.mxu0 0.0
  %242 = vmatpush1.msra.mxu0 %v92
  %243 = vmatprep.subr.mxu0 0.0
  %244 = vmatpush1.msra.mxu0 %v93
  %245 = vmatprep.mubr.f32.mxu0 %v25
  %246 = vmatmul.mubr.f32.gmra.mrb[0].mxu0 %v24
  %v247 = vpop.f32.mrb[0].mxu0
  %v248 = vadd.f32 %v173, %v247
  %v249 = vpop.f32.mrb[0].mxu0
  %250 = vmatprep.mubr.f32.mxu0 %v29
  %251 = vmatmul.mubr.f32.gmra.mrb[0].mxu0 %v28
  %v252 = vpop.f32.mrb[0].mxu0
  %v253 = vadd.f32 %v178, %v252
  %v254 = vpop.f32.mrb[0].mxu0
  %255 = vdwg.mxu0
  %vm256 = vcmp.ge.f32.partialorder %v248, 0.0
  %vm257 = vcmp.ge.f32.partialorder %v253, 0.0
  %v258 = vmul.f32 %v248, 0.2
  %v259 = vmul.f32 %v253, 0.2
  %v260 = vsel %vm256, %v248, %v258
  %v261 = vsel %vm257, %v253, %v259
  %v262 = vld [vmem:[%s3] sm:$0xff]
  %v263 = vld [vmem:[%s3 + $0x8] sm:$0x3]
  %v264 = vmul.f32 %v260, %v262
  %v265 = vmul.f32 %v261, %v263
  %v266 = vlaneseq
  %v267 = vand.u32 %v266, 127
  %vm268 = vcmp.ge.s32.totalorder %v267, 0
  %vm269 = vcmp.lt.s32.totalorder %v267, 64
  %vm270 = vmand %vm268, %vm269
  %v271 = vsel %vm270, %v264, 0.0
  %v272 = vsel %vm270, %v265, 0.0
  %273 = vadd.xlane.f32.xlu0 %v271
  %v274 = vpop.xlane.xlu0 %273
  %vm275 = vcmask 1041408
  %v276 = vsel %vm275, %v272, 0.0
  %277 = vadd.xlane.f32.xlu0 %v276
  %v278 = vpop.xlane.xlu0 %277
  %v279 = vsel %vm275, %v278, 0.0
  %v280 = vadd.f32 %v274, %v279
  %v281 = vrot.slane %v280, 4
  %v282 = vadd.f32 %v280, %v281
  %v283 = vrot.slane %v282, 2
  %v284 = vadd.f32 %v282, %v283
  %v285 = vrot.slane %v284, 1
  %v286 = vadd.f32 %v284, %v285
  %vm287 = vcmp.ge.s32.totalorder %v267, 64
  %vm288 = vcmp.lt.s32.totalorder %v267, 128
  %vm289 = vmand %vm287, %vm288
  %v290 = vsel %vm289, %v264, 0.0
  %v291 = vsel %vm289, %v265, 0.0
  %292 = vadd.xlane.f32.xlu0 %v290
  %v293 = vpop.xlane.xlu0 %292
  %v294 = vsel %vm275, %v291, 0.0
  %295 = vadd.xlane.f32.xlu0 %v294
  %v296 = vpop.xlane.xlu0 %295
  %v297 = vsel %vm275, %v296, 0.0
  %v298 = vadd.f32 %v293, %v297
  %v299 = vrot.slane %v298, 4
  %v300 = vadd.f32 %v298, %v299
  %v301 = vrot.slane %v300, 2
  %v302 = vadd.f32 %v300, %v301
  %v303 = vrot.slane %v302, 1
  %v304 = vadd.f32 %v302, %v303
  %vm305 = vcmask 1040384
  %v306 = vsel %vm305, %v286, %v304
  %v307 = vld [vmem:[#allocation2] sm:$0x1]
  %v309 = vlaneseq
  %v310 = vshrl.u32 %v309, 7
  %v311 = vsub.s32 0, %v310
  %v312 = vrot.slane %v307, %v311
  %v314 = vadd.f32 %v306, %v312
  %vm315 = vcmask 1024
  %316 = vst.msk [vmem:[%s5] sm:$0x3] %vm315, %v314
  // Predicated region
  $region22: #{model_d_forward.7} parent=0 // pred_check
    _
  $region23: #{model_d_forward.7} parent=0 // pred_check_branch
    %318 = sbr.rel (0) target = $region25
  $region24: #{model_d_forward.7} parent=0 // pred_region
    _
  $region25: #{model_d_forward.7} parent=0 // pred_fallthru
    _
  // Predicated region
  $region26: #{model_d_forward.7} parent=0 // pred_check
    _
  $region27: #{model_d_forward.7} parent=0 // pred_check_branch
    %320 = sbr.rel (0) target = $region29
  $region28: #{model_d_forward.7} parent=0 // pred_region
    _
  $region29: #{model_d_forward.7} parent=0 // pred_fallthru
    _

</llo_original>
